<compile_context>
chip_gen: v5e
topology: v5e:2x2
jax: 0.10.0
libtpu: 0.0.40
codegen_flags: <defaults>
</compile_context>

<pallas_src>
import functools

import jax
import jax.numpy as jnp
from jax.experimental import pallas as pl
from jax.experimental.pallas import tpu as pltpu

STATE_DIM = 4
ACTION_DIM = 1
HIDDEN1 = 400
HIDDEN2 = 300
MAX_ACTION = 60.0

# Max batch (lane-axis) tile.  1024 keeps per-tile VMEM well under all
# generations' limits while amortising the ~0.35 us per-grid-step overhead.
_TB_MAX = 1024


def _round_up(x, m):
    return ((x + m - 1) // m) * m


def _pick_tile(batch):
    """Choose (tile, padded_batch) for the lane-axis batch dimension."""
    b = _round_up(max(batch, 1), 128)           # lane granularity
    if b <= 384:
        return b, b                             # single small tile
    # Batches >= 512: at least two tiles so both v7x TensorCores get work;
    # tile is a multiple of 256 (full MXU N-feed on v6e/v7x), capped at _TB_MAX.
    tb = min(_TB_MAX, _round_up(b // 2, 256))
    return tb, _round_up(b, tb)


def actor_kernel(s_ref, w1_ref, b1_ref, w2_ref, b2_ref, w3_ref, b3_ref, o_ref):
    # layer 1: (400, 4) @ (4, tb) + b1, relu        (MXU, f32 accumulation)
    h = jnp.dot(w1_ref[...], s_ref[...], preferred_element_type=jnp.float32)
    h = jnp.maximum(h + b1_ref[...], 0.0)
    # layer 2: (300, 400) @ (400, tb) + b2, relu    (w2 may be bf16; acc stays f32)
    h = jnp.dot(w2_ref[...], h.astype(w2_ref.dtype),
                preferred_element_type=jnp.float32)
    h = jnp.maximum(h + b2_ref[...], 0.0)
    # layer 3 (out_features == 1): VPU multiply against the f32 w3 column +
    # sublane reduction -> lane-dense (1, tb) row, no degenerate MXU matmul.
    z = jnp.sum(h * w3_ref[...], axis=0, keepdims=True)
    o_ref[...] = MAX_ACTION * jnp.tanh(z + b3_ref[0, 0])


def _weight_spec(shape, single_buffer):
    """Constant-index (grid-invariant) weight/bias block."""
    if single_buffer:
        # These blocks never rotate -> a second pipeline buffer is pure waste.
        return pl.BlockSpec(shape, lambda i: (0, 0),
                            pipeline_mode=pl.Buffered(buffer_count=1))
    return pl.BlockSpec(shape, lambda i: (0, 0))


@functools.partial(jax.jit, static_argnames=("w2_dtype", "single_buffer_weights"))
def _actor_forward(state, params, w2_dtype, single_buffer_weights):
    B = state.shape[0]
    tb, b_pad = _pick_tile(B)
    grid = (b_pad // tb,)

    # Batch on the lane axis; pad to a tile multiple (padded columns compute a
    # discarded tanh(b3), which is finite and harmless).
    x = state.astype(jnp.float32).T                       # (STATE_DIM, B)
    if b_pad != B:
        x = jnp.pad(x, ((0, 0), (0, b_pad - B)))

    # PyTorch (out, in) layout is exactly what the transposed kernel needs.
    w1 = params["w1"].astype(jnp.float32)                             # (400, 4)
    b1 = params["b1"].reshape(HIDDEN1, 1).astype(jnp.float32)         # (400, 1)
    w2 = params["w2"].astype(w2_dtype)                                # (300, 400)
    b2 = params["b2"].reshape(HIDDEN2, 1).astype(jnp.float32)         # (300, 1)
    w3 = params["w3"].reshape(HIDDEN2, 1).astype(jnp.float32)         # (300, 1)
    b3 = params["b3"].reshape(1, 1).astype(jnp.float32)               # (1, 1)

    wspec = functools.partial(_weight_spec, single_buffer=single_buffer_weights)

    grid_spec = pltpu.PrefetchScalarGridSpec(
        num_scalar_prefetch=0,
        grid=grid,
        in_specs=[
            pl.BlockSpec((STATE_DIM, tb), lambda i: (0, i)),      # state tile
            wspec((HIDDEN1, STATE_DIM)),                          # w1
            wspec((HIDDEN1, 1)),                                  # b1
            wspec((HIDDEN2, HIDDEN1)),                            # w2 (dominant DMA)
            wspec((HIDDEN2, 1)),                                  # b2
            wspec((HIDDEN2, 1)),                                  # w3 column (f32)
            pl.BlockSpec(memory_space=pltpu.MemorySpace.SMEM),    # b3 scalar
        ],
        out_specs=pl.BlockSpec((ACTION_DIM, tb), lambda i: (0, i)),   # lane-dense
    )

    out = pl.pallas_call(
        actor_kernel,
        out_shape=jax.ShapeDtypeStruct((ACTION_DIM, b_pad), jnp.float32),
        grid_spec=grid_spec,
        compiler_params=pltpu.CompilerParams(
            dimension_semantics=("parallel",),
        ),
    )(x, w1, b1, w2, b2, w3, b3)
    return out[:, :B].T                                           # (B, ACTION_DIM)


_SINGLE_BUFFER_WEIGHTS = None   # resolved on first call


def actor_forward(state, params, w2_dtype=jnp.float32):
    """state: (B, STATE_DIM) f32 -> (B, ACTION_DIM) f32.

    w2_dtype=jnp.bfloat16 halves the dominant w2 HBM->VMEM DMA (worth it on
    v5e/v6e); keep the f32 default on v7x.  Only w2 is compressed; everything
    else and all accumulation stay f32.
    """
    global _SINGLE_BUFFER_WEIGHTS
    if _SINGLE_BUFFER_WEIGHTS is None:
        try:
            out = _actor_forward(state, params, w2_dtype=w2_dtype,
                                 single_buffer_weights=True)
            jax.block_until_ready(out)
            _SINGLE_BUFFER_WEIGHTS = True
            return out
        except Exception:
            # jax build without pl.Buffered(1) support for constant blocks:
            # fall back to default double buffering (only costs ~1.3 MB VMEM).
            _SINGLE_BUFFER_WEIGHTS = False
    return _actor_forward(state, params, w2_dtype=w2_dtype,
                          single_buffer_weights=_SINGLE_BUFFER_WEIGHTS)


def init_params(key):
    """PyTorch nn.Linear layout ((out, in) weights), default U[-1/sqrt(fan_in)] init."""
    ks = jax.random.split(key, 6)

    def uniform(k, shape, fan_in):
        bound = 1.0 / float(fan_in) ** 0.5
        return jax.random.uniform(k, shape, jnp.float32, -bound, bound)

    return {
        "w1": uniform(ks[0], (HIDDEN1, STATE_DIM), STATE_DIM),
        "b1": uniform(ks[1], (HIDDEN1,), STATE_DIM),
        "w2": uniform(ks[2], (HIDDEN2, HIDDEN1), HIDDEN1),
        "b2": uniform(ks[3], (HIDDEN2,), HIDDEN1),
        "w3": uniform(ks[4], (ACTION_DIM, HIDDEN2), HIDDEN2),
        "b3": uniform(ks[5], (ACTION_DIM,), HIDDEN2),
    }


def actor_reference(state, params):
    """Pure-JAX reference matching the PyTorch forward (full-precision matmuls)."""
    dot = functools.partial(jnp.dot, precision=jax.lax.Precision.HIGHEST)
    a = jnp.maximum(dot(state, params["w1"].T) + params["b1"], 0.0)
    a = jnp.maximum(dot(a, params["w2"].T) + params["b2"], 0.0)
    return MAX_ACTION * jnp.tanh(dot(a, params["w3"].T) + params["b3"])


if __name__ == "__main__":
    key = jax.random.PRNGKey(0)
    k_param, k_state, k_big = jax.random.split(key, 3)

    params = init_params(k_param)

    # Small batch (per-env-step DDPG inference shape).
    B = 8
    state = jax.random.normal(k_state, (B, STATE_DIM), jnp.float32)
    out = jax.block_until_ready(actor_forward(state, params))
    ref = actor_reference(state, params)
    assert out.shape == (B, ACTION_DIM)
    assert jnp.allclose(out, ref, atol=1e-4, rtol=1e-4), "f32 mismatch vs reference"

    # Larger, non-multiple-of-128 batch: exercises padding and the multi-tile
    # grid path (>= 2 tiles -> both TensorCores on v7x).
    B2 = 533
    state2 = jax.random.normal(k_big, (B2, STATE_DIM), jnp.float32)
    out2 = jax.block_until_ready(actor_forward(state2, params))
    ref2 = actor_reference(state2, params)
    assert out2.shape == (B2, ACTION_DIM)
    assert jnp.allclose(out2, ref2, atol=1e-4, rtol=1e-4), "f32 multi-tile mismatch"

    # bf16-w2 path (halves the dominant w2 DMA; mainly for v5e/v6e).  Only w2
    # is compressed, so it stays close to the f32 reference.
    out_bf16 = jax.block_until_ready(
        actor_forward(state, params, w2_dtype=jnp.bfloat16))
    assert out_bf16.shape == (B, ACTION_DIM)
    assert bool(jnp.all(jnp.isfinite(out_bf16)))
    assert jnp.allclose(out_bf16, ref, atol=0.5, rtol=0.05), "bf16-w2 path too far off"

    print("KERNEL_OK")
</pallas_src>

<mosaic_0001>
module attributes {stable_mosaic.version = 11 : i64} {
  func.func @actor_kernel(%arg0: i32, %arg1: memref<4x128xf32, #tpu.memory_space<vmem>>, %arg2: memref<400x4xf32, #tpu.memory_space<vmem>>, %arg3: memref<400x1xf32, #tpu.memory_space<vmem>>, %arg4: memref<300x400xf32, #tpu.memory_space<vmem>>, %arg5: memref<300x1xf32, #tpu.memory_space<vmem>>, %arg6: memref<300x1xf32, #tpu.memory_space<vmem>>, %arg7: memref<1x1xf32, #tpu.memory_space<smem>>, %arg8: memref<1x128xf32, #tpu.memory_space<vmem>>) attributes {dimension_semantics = [#tpu.dimension_semantics<parallel>], iteration_bounds = array<i64: 1>, scalar_prefetch = 0 : i64, scratch_operands = 0 : i64, tpu.core_type = #tpu.core_type<tc>, window_params = [{transform_indices = @transform_0, window_bounds = array<i64: 4, 128>}, {pipeline_mode = #tpu.pipeline_mode<synchronous>, transform_indices = @transform_1, window_bounds = array<i64: 400, 4>}, {pipeline_mode = #tpu.pipeline_mode<synchronous>, transform_indices = @transform_2, window_bounds = array<i64: 400, 1>}, {pipeline_mode = #tpu.pipeline_mode<synchronous>, transform_indices = @transform_3, window_bounds = array<i64: 300, 400>}, {pipeline_mode = #tpu.pipeline_mode<synchronous>, transform_indices = @transform_4, window_bounds = array<i64: 300, 1>}, {pipeline_mode = #tpu.pipeline_mode<synchronous>, transform_indices = @transform_5, window_bounds = array<i64: 300, 1>}, {transform_indices = @transform_6, window_bounds = array<i64: 1, 1>}, {transform_indices = @transform_7, window_bounds = array<i64: 1, 128>}]} {
    %c0 = arith.constant 0 : index
    %c0_0 = arith.constant 0 : index
    %0 = vector.load %arg2[%c0, %c0_0] : memref<400x4xf32, #tpu.memory_space<vmem>>, vector<400x4xf32>
    %c0_1 = arith.constant 0 : index
    %c0_2 = arith.constant 0 : index
    %1 = vector.load %arg1[%c0_1, %c0_2] : memref<4x128xf32, #tpu.memory_space<vmem>>, vector<4x128xf32>
    %cst = arith.constant dense<0.000000e+00> : vector<400x128xf32>
    %2 = tpu.matmul %0, %1, %cst {dimension_numbers = #tpu.dot_dimension_numbers<[1], [0], [0], [1], [0, 0, 1, 1], [], []>} : vector<400x4xf32>, vector<4x128xf32>, vector<400x128xf32> -> vector<400x128xf32>
    %c0_3 = arith.constant 0 : index
    %c0_4 = arith.constant 0 : index
    %3 = vector.load %arg3[%c0_3, %c0_4] : memref<400x1xf32, #tpu.memory_space<vmem>>, vector<400x1xf32>
    %4 = vector.broadcast %3 : vector<400x1xf32> to vector<400x128xf32>
    %5 = arith.addf %2, %4 : vector<400x128xf32>
    %cst_5 = arith.constant 0.000000e+00 : f32
    %6 = vector.broadcast %cst_5 : f32 to vector<400x128xf32>
    %7 = arith.maximumf %5, %6 : vector<400x128xf32>
    %c0_6 = arith.constant 0 : index
    %c0_7 = arith.constant 0 : index
    %8 = vector.load %arg4[%c0_6, %c0_7] : memref<300x400xf32, #tpu.memory_space<vmem>>, vector<300x400xf32>
    %cst_8 = arith.constant dense<0.000000e+00> : vector<300x128xf32>
    %9 = tpu.matmul %8, %7, %cst_8 {dimension_numbers = #tpu.dot_dimension_numbers<[1], [0], [0], [1], [0, 0, 1, 1], [], []>} : vector<300x400xf32>, vector<400x128xf32>, vector<300x128xf32> -> vector<300x128xf32>
    %c0_9 = arith.constant 0 : index
    %c0_10 = arith.constant 0 : index
    %10 = vector.load %arg5[%c0_9, %c0_10] : memref<300x1xf32, #tpu.memory_space<vmem>>, vector<300x1xf32>
    %11 = vector.broadcast %10 : vector<300x1xf32> to vector<300x128xf32>
    %12 = arith.addf %9, %11 : vector<300x128xf32>
    %cst_11 = arith.constant 0.000000e+00 : f32
    %13 = vector.broadcast %cst_11 : f32 to vector<300x128xf32>
    %14 = arith.maximumf %12, %13 : vector<300x128xf32>
    %c0_12 = arith.constant 0 : index
    %c0_13 = arith.constant 0 : index
    %15 = vector.load %arg6[%c0_12, %c0_13] : memref<300x1xf32, #tpu.memory_space<vmem>>, vector<300x1xf32>
    %16 = vector.broadcast %15 : vector<300x1xf32> to vector<300x128xf32>
    %17 = arith.mulf %14, %16 : vector<300x128xf32>
    %cst_14 = arith.constant dense<0.000000e+00> : vector<128xf32>
    %18 = vector.multi_reduction <add>, %17, %cst_14 [0] : vector<300x128xf32> to vector<128xf32>
    %19 = vector.shape_cast %18 : vector<128xf32> to vector<1x128xf32>
    %c0_15 = arith.constant 0 : index
    %c0_16 = arith.constant 0 : index
    %20 = memref.load %arg7[%c0_15, %c0_16] : memref<1x1xf32, #tpu.memory_space<smem>>
    %21 = vector.broadcast %20 : f32 to vector<1x128xf32>
    %22 = arith.addf %19, %21 : vector<1x128xf32>
    %23 = math.tanh %22 : vector<1x128xf32>
    %cst_17 = arith.constant 6.000000e+01 : f32
    %24 = vector.broadcast %cst_17 : f32 to vector<1x128xf32>
    %25 = arith.mulf %24, %23 : vector<1x128xf32>
    %c0_18 = arith.constant 0 : index
    %c0_19 = arith.constant 0 : index
    %26 = vector.load %arg8[%c0_18, %c0_19] : memref<1x128xf32, #tpu.memory_space<vmem>>, vector<1x128xf32>
    tpu.vector_store %arg8[%c0_18, %c0_19], %25 {strides = array<i32>} : memref<1x128xf32, #tpu.memory_space<vmem>>, vector<1x128xf32>,
    return
  }
  func.func @transform_0(%arg0: i32) -> (i32, i32) {
    %c0_i32 = arith.constant 0 : i32
    %c0_i32_0 = arith.constant 0 : i32
    return %c0_i32, %arg0 : i32, i32
  }
  func.func @transform_1(%arg0: i32) -> (i32, i32) {
    %c0_i32 = arith.constant 0 : i32
    %c0_i32_0 = arith.constant 0 : i32
    %c0_i32_1 = arith.constant 0 : i32
    return %c0_i32, %c0_i32_0 : i32, i32
  }
  func.func @transform_2(%arg0: i32) -> (i32, i32) {
    %c0_i32 = arith.constant 0 : i32
    %c0_i32_0 = arith.constant 0 : i32
    %c0_i32_1 = arith.constant 0 : i32
    return %c0_i32, %c0_i32_0 : i32, i32
  }
  func.func @transform_3(%arg0: i32) -> (i32, i32) {
    %c0_i32 = arith.constant 0 : i32
    %c0_i32_0 = arith.constant 0 : i32
    %c0_i32_1 = arith.constant 0 : i32
    return %c0_i32, %c0_i32_0 : i32, i32
  }
  func.func @transform_4(%arg0: i32) -> (i32, i32) {
    %c0_i32 = arith.constant 0 : i32
    %c0_i32_0 = arith.constant 0 : i32
    %c0_i32_1 = arith.constant 0 : i32
    return %c0_i32, %c0_i32_0 : i32, i32
  }
  func.func @transform_5(%arg0: i32) -> (i32, i32) {
    %c0_i32 = arith.constant 0 : i32
    %c0_i32_0 = arith.constant 0 : i32
    %c0_i32_1 = arith.constant 0 : i32
    return %c0_i32, %c0_i32_0 : i32, i32
  }
  func.func @transform_6(%arg0: i32) -> (i32, i32) {
    %c0_i32 = arith.constant 0 : i32
    %c0_i32_0 = arith.constant 0 : i32
    %c0_i32_1 = arith.constant 0 : i32
    return %c0_i32, %c0_i32_0 : i32, i32
  }
  func.func @transform_7(%arg0: i32) -> (i32, i32) {
    %c0_i32 = arith.constant 0 : i32
    %c0_i32_0 = arith.constant 0 : i32
    return %c0_i32, %arg0 : i32, i32
  }
}

module attributes {stable_mosaic.version = 11 : i64} {
  func.func @actor_kernel(%arg0: i32, %arg1: memref<4x128xf32, #tpu.memory_space<vmem>>, %arg2: memref<400x4xf32, #tpu.memory_space<vmem>>, %arg3: memref<400x1xf32, #tpu.memory_space<vmem>>, %arg4: memref<300x400xf32, #tpu.memory_space<vmem>>, %arg5: memref<300x1xf32, #tpu.memory_space<vmem>>, %arg6: memref<300x1xf32, #tpu.memory_space<vmem>>, %arg7: memref<1x1xf32, #tpu.memory_space<smem>>, %arg8: memref<1x128xf32, #tpu.memory_space<vmem>>) attributes {dimension_semantics = [#tpu.dimension_semantics<parallel>], iteration_bounds = array<i64: 1>, scalar_prefetch = 0 : i64, scratch_operands = 0 : i64, tpu.core_type = #tpu.core_type<tc>, window_params = [{transform_indices = @transform_0, window_bounds = array<i64: 4, 128>}, {pipeline_mode = #tpu.pipeline_mode<synchronous>, transform_indices = @transform_1, window_bounds = array<i64: 400, 4>}, {pipeline_mode = #tpu.pipeline_mode<synchronous>, transform_indices = @transform_2, window_bounds = array<i64: 400, 1>}, {pipeline_mode = #tpu.pipeline_mode<synchronous>, transform_indices = @transform_3, window_bounds = array<i64: 300, 400>}, {pipeline_mode = #tpu.pipeline_mode<synchronous>, transform_indices = @transform_4, window_bounds = array<i64: 300, 1>}, {pipeline_mode = #tpu.pipeline_mode<synchronous>, transform_indices = @transform_5, window_bounds = array<i64: 300, 1>}, {transform_indices = @transform_6, window_bounds = array<i64: 1, 1>}, {transform_indices = @transform_7, window_bounds = array<i64: 1, 128>}]} {
    %c0 = arith.constant 0 : index
    %c0_0 = arith.constant 0 : index
    %0 = vector.load %arg2[%c0, %c0_0] : memref<400x4xf32, #tpu.memory_space<vmem>>, vector<400x4xf32>
    %c0_1 = arith.constant 0 : index
    %c0_2 = arith.constant 0 : index
    %1 = vector.load %arg1[%c0_1, %c0_2] : memref<4x128xf32, #tpu.memory_space<vmem>>, vector<4x128xf32>
    %cst = arith.constant dense<0.000000e+00> : vector<400x128xf32>
    %2 = tpu.matmul %0, %1, %cst {dimension_numbers = #tpu.dot_dimension_numbers<[1], [0], [0], [1], [0, 0, 1, 1], [], []>} : vector<400x4xf32>, vector<4x128xf32>, vector<400x128xf32> -> vector<400x128xf32>
    %c0_3 = arith.constant 0 : index
    %c0_4 = arith.constant 0 : index
    %3 = vector.load %arg3[%c0_3, %c0_4] : memref<400x1xf32, #tpu.memory_space<vmem>>, vector<400x1xf32>
    %4 = vector.broadcast %3 : vector<400x1xf32> to vector<400x128xf32>
    %5 = arith.addf %2, %4 : vector<400x128xf32>
    %cst_5 = arith.constant 0.000000e+00 : f32
    %6 = vector.broadcast %cst_5 : f32 to vector<400x128xf32>
    %7 = arith.maximumf %5, %6 : vector<400x128xf32>
    %c0_6 = arith.constant 0 : index
    %c0_7 = arith.constant 0 : index
    %8 = vector.load %arg4[%c0_6, %c0_7] : memref<300x400xf32, #tpu.memory_space<vmem>>, vector<300x400xf32>
    %cst_8 = arith.constant dense<0.000000e+00> : vector<300x128xf32>
    %9 = tpu.matmul %8, %7, %cst_8 {dimension_numbers = #tpu.dot_dimension_numbers<[1], [0], [0], [1], [0, 0, 1, 1], [], []>} : vector<300x400xf32>, vector<400x128xf32>, vector<300x128xf32> -> vector<300x128xf32>
    %c0_9 = arith.constant 0 : index
    %c0_10 = arith.constant 0 : index
    %10 = vector.load %arg5[%c0_9, %c0_10] : memref<300x1xf32, #tpu.memory_space<vmem>>, vector<300x1xf32>
    %11 = vector.broadcast %10 : vector<300x1xf32> to vector<300x128xf32>
    %12 = arith.addf %9, %11 : vector<300x128xf32>
    %cst_11 = arith.constant 0.000000e+00 : f32
    %13 = vector.broadcast %cst_11 : f32 to vector<300x128xf32>
    %14 = arith.maximumf %12, %13 : vector<300x128xf32>
    %c0_12 = arith.constant 0 : index
    %c0_13 = arith.constant 0 : index
    %15 = vector.load %arg6[%c0_12, %c0_13] : memref<300x1xf32, #tpu.memory_space<vmem>>, vector<300x1xf32>
    %16 = vector.broadcast %15 : vector<300x1xf32> to vector<300x128xf32>
    %17 = arith.mulf %14, %16 : vector<300x128xf32>
    %cst_14 = arith.constant dense<0.000000e+00> : vector<128xf32>
    %18 = vector.multi_reduction <add>, %17, %cst_14 [0] : vector<300x128xf32> to vector<128xf32>
    %19 = vector.shape_cast %18 : vector<128xf32> to vector<1x128xf32>
    %c0_15 = arith.constant 0 : index
    %c0_16 = arith.constant 0 : index
    %20 = memref.load %arg7[%c0_15, %c0_16] : memref<1x1xf32, #tpu.memory_space<smem>>
    %21 = vector.broadcast %20 : f32 to vector<1x128xf32>
    %22 = arith.addf %19, %21 : vector<1x128xf32>
    %23 = math.tanh %22 : vector<1x128xf32>
    %cst_17 = arith.constant 6.000000e+01 : f32
    %24 = vector.broadcast %cst_17 : f32 to vector<1x128xf32>
    %25 = arith.mulf %24, %23 : vector<1x128xf32>
    %c0_18 = arith.constant 0 : index
    %c0_19 = arith.constant 0 : index
    %26 = vector.load %arg8[%c0_18, %c0_19] : memref<1x128xf32, #tpu.memory_space<vmem>>, vector<1x128xf32>
    tpu.vector_store %arg8[%c0_18, %c0_19], %25 {strides = array<i32>} : memref<1x128xf32, #tpu.memory_space<vmem>>, vector<1x128xf32>,
    return
  }
  func.func @transform_0(%arg0: i32) -> (i32, i32) {
    %c0_i32 = arith.constant 0 : i32
    %c0_i32_0 = arith.constant 0 : i32
    return %c0_i32, %arg0 : i32, i32
  }
  func.func @transform_1(%arg0: i32) -> (i32, i32) {
    %c0_i32 = arith.constant 0 : i32
    %c0_i32_0 = arith.constant 0 : i32
    %c0_i32_1 = arith.constant 0 : i32
    return %c0_i32, %c0_i32_0 : i32, i32
  }
  func.func @transform_2(%arg0: i32) -> (i32, i32) {
    %c0_i32 = arith.constant 0 : i32
    %c0_i32_0 = arith.constant 0 : i32
    %c0_i32_1 = arith.constant 0 : i32
    return %c0_i32, %c0_i32_0 : i32, i32
  }
  func.func @transform_3(%arg0: i32) -> (i32, i32) {
    %c0_i32 = arith.constant 0 : i32
    %c0_i32_0 = arith.constant 0 : i32
    %c0_i32_1 = arith.constant 0 : i32
    return %c0_i32, %c0_i32_0 : i32, i32
  }
  func.func @transform_4(%arg0: i32) -> (i32, i32) {
    %c0_i32 = arith.constant 0 : i32
    %c0_i32_0 = arith.constant 0 : i32
    %c0_i32_1 = arith.constant 0 : i32
    return %c0_i32, %c0_i32_0 : i32, i32
  }
  func.func @transform_5(%arg0: i32) -> (i32, i32) {
    %c0_i32 = arith.constant 0 : i32
    %c0_i32_0 = arith.constant 0 : i32
    %c0_i32_1 = arith.constant 0 : i32
    return %c0_i32, %c0_i32_0 : i32, i32
  }
  func.func @transform_6(%arg0: i32) -> (i32, i32) {
    %c0_i32 = arith.constant 0 : i32
    %c0_i32_0 = arith.constant 0 : i32
    %c0_i32_1 = arith.constant 0 : i32
    return %c0_i32, %c0_i32_0 : i32, i32
  }
  func.func @transform_7(%arg0: i32) -> (i32, i32) {
    %c0_i32 = arith.constant 0 : i32
    %c0_i32_0 = arith.constant 0 : i32
    return %c0_i32, %arg0 : i32, i32
  }
}

</mosaic_0001>

<llo_original>
// kernel: _actor_forward.1
$region0: #{_actor_forward.1}
  #allocation0 [shape = 'u32[]', space=smem, size = 0x4, offset = 0x4, fixed_abs, tag = 'smem constant byte address 0x4 - core index']
  #allocation1 [shape = 'u32[72,128]{1,0:T(1,128)}', space=vmem, size = 0x9000, scoped, tag = 'internal scratch']
  #allocation2 [shape = 'f32[1,1]{1,0:T(1,128)S(6)}', space=smem, size = 0x200, scoped, tag = 'scoped memory for _actor_forward.1']
  %s0 = inlined_call_operand.vmem [shape: f32[4,128], index: 0, kind: input, shape index: {}]
  %s1 = inlined_call_operand.vmem [shape: f32[400,4], index: 1, kind: input, shape index: {}]
  %s2 = inlined_call_operand.vmem [shape: f32[400,1], index: 2, kind: input, shape index: {}]
  %s3 = inlined_call_operand.vmem [shape: f32[300,400], index: 3, kind: input, shape index: {}]
  %s4 = inlined_call_operand.vmem [shape: f32[300,1], index: 4, kind: input, shape index: {}]
  %s5 = inlined_call_operand.vmem [shape: f32[300,1], index: 5, kind: input, shape index: {}]
  %s6 = inlined_call_operand.<no memory space> [shape: f32[1,1], index: 6, kind: input, shape index: {}]
  %s7 = inlined_call_operand.vmem [shape: f32[1,128], index: 7, kind: output, shape index: {}]
  %s8 = sld [smem:[#allocation0]]
  $region38: #{_actor_forward.1} parent=0
    _
  %s10 = ssub.s32 1, %s8
  %s11 = scalar_select 0, %s10, %s8
  %12 = sst [smem:[#allocation2]] %s6
  // Predicated region
  $region2: #{_actor_forward.1} parent=0 // pred_check
    _
  $region3: #{_actor_forward.1} parent=0 // pred_check_branch
    %14 = sbr.rel (0) target = $region5
  $region4: #{_actor_forward.1} parent=0 // pred_region
    _
  $region5: #{_actor_forward.1} parent=0 // pred_fallthru
    _
  // Predicated region
  $region6: #{_actor_forward.1} parent=0 // pred_check
    _
  $region7: #{_actor_forward.1} parent=0 // pred_check_branch
    %16 = sbr.rel (0) target = $region9
  $region8: #{_actor_forward.1} parent=0 // pred_region
    _
  $region9: #{_actor_forward.1} parent=0 // pred_fallthru
    _
  // Predicated region
  $region10: #{_actor_forward.1} parent=0 // pred_check
    _
  $region11: #{_actor_forward.1} parent=0 // pred_check_branch
    %18 = sbr.rel (0) target = $region13
  $region12: #{_actor_forward.1} parent=0 // pred_region
    _
  $region13: #{_actor_forward.1} parent=0 // pred_fallthru
    _
  // Predicated region
  $region14: #{_actor_forward.1} parent=0 // pred_check
    _
  $region15: #{_actor_forward.1} parent=0 // pred_check_branch
    %20 = sbr.rel (0) target = $region17
  $region16: #{_actor_forward.1} parent=0 // pred_region
    _
  $region17: #{_actor_forward.1} parent=0 // pred_fallthru
    _
  // Predicated region
  $region18: #{_actor_forward.1} parent=0 // pred_check
    _
  $region19: #{_actor_forward.1} parent=0 // pred_check_branch
    %22 = sbr.rel (0) target = $region21
  $region20: #{_actor_forward.1} parent=0 // pred_region
    _
  $region21: #{_actor_forward.1} parent=0 // pred_fallthru
    _
  // Predicated region
  $region22: #{_actor_forward.1} parent=0 // pred_check
    _
  $region23: #{_actor_forward.1} parent=0 // pred_check_branch
    %24 = sbr.rel (0) target = $region25
  $region24: #{_actor_forward.1} parent=0 // pred_region
    _
  $region25: #{_actor_forward.1} parent=0 // pred_fallthru
    _
  // Predicated region
  $region26: #{_actor_forward.1} parent=0 // pred_check
    _
  $region27: #{_actor_forward.1} parent=0 // pred_check_branch
    %26 = sbr.rel (0) target = $region29
  $region28: #{_actor_forward.1} parent=0 // pred_region
    _
  $region29: #{_actor_forward.1} parent=0 // pred_fallthru
    _
  %v27 = vld [vmem:[%s1] sm:$0xff]
  %v28 = vld [vmem:[%s1 + $0x8] sm:$0xff]
  %v29 = vld [vmem:[%s1 + $0x10] sm:$0xff]
  %v30 = vld [vmem:[%s1 + $0x18] sm:$0xff]
  %v31 = vld [vmem:[%s1 + $0x20] sm:$0xff]
  %v32 = vld [vmem:[%s1 + $0x28] sm:$0xff]
  %v33 = vld [vmem:[%s1 + $0x30] sm:$0xff]
  %v34 = vld [vmem:[%s1 + $0x38] sm:$0xff]
  %v35 = vld [vmem:[%s1 + $0x40] sm:$0xff]
  %v36 = vld [vmem:[%s1 + $0x48] sm:$0xff]
  %v37 = vld [vmem:[%s1 + $0x50] sm:$0xff]
  %v38 = vld [vmem:[%s1 + $0x58] sm:$0xff]
  %v39 = vld [vmem:[%s1 + $0x60] sm:$0xff]
  %v40 = vld [vmem:[%s1 + $0x68] sm:$0xff]
  %v41 = vld [vmem:[%s1 + $0x70] sm:$0xff]
  %v42 = vld [vmem:[%s1 + $0x78] sm:$0xff]
  %v43 = vld [vmem:[%s1 + $0x80] sm:$0xff]
  %v44 = vld [vmem:[%s1 + $0x88] sm:$0xff]
  %v45 = vld [vmem:[%s1 + $0x90] sm:$0xff]
  %v46 = vld [vmem:[%s1 + $0x98] sm:$0xff]
  %v47 = vld [vmem:[%s1 + $0xa0] sm:$0xff]
  %v48 = vld [vmem:[%s1 + $0xa8] sm:$0xff]
  %v49 = vld [vmem:[%s1 + $0xb0] sm:$0xff]
  %v50 = vld [vmem:[%s1 + $0xb8] sm:$0xff]
  %v51 = vld [vmem:[%s1 + $0xc0] sm:$0xff]
  %v52 = vld [vmem:[%s1 + $0xc8] sm:$0xff]
  %v53 = vld [vmem:[%s1 + $0xd0] sm:$0xff]
  %v54 = vld [vmem:[%s1 + $0xd8] sm:$0xff]
  %v55 = vld [vmem:[%s1 + $0xe0] sm:$0xff]
  %v56 = vld [vmem:[%s1 + $0xe8] sm:$0xff]
  %v57 = vld [vmem:[%s1 + $0xf0] sm:$0xff]
  %v58 = vld [vmem:[%s1 + $0xf8] sm:$0xff]
  %v59 = vld [vmem:[%s1 + $0x100] sm:$0xff]
  %v60 = vld [vmem:[%s1 + $0x108] sm:$0xff]
  %v61 = vld [vmem:[%s1 + $0x110] sm:$0xff]
  %v62 = vld [vmem:[%s1 + $0x118] sm:$0xff]
  %v63 = vld [vmem:[%s1 + $0x120] sm:$0xff]
  %v64 = vld [vmem:[%s1 + $0x128] sm:$0xff]
  %v65 = vld [vmem:[%s1 + $0x130] sm:$0xff]
  %v66 = vld [vmem:[%s1 + $0x138] sm:$0xff]
  %v67 = vld [vmem:[%s1 + $0x140] sm:$0xff]
  %v68 = vld [vmem:[%s1 + $0x148] sm:$0xff]
  %v69 = vld [vmem:[%s1 + $0x150] sm:$0xff]
  %v70 = vld [vmem:[%s1 + $0x158] sm:$0xff]
  %v71 = vld [vmem:[%s1 + $0x160] sm:$0xff]
  %v72 = vld [vmem:[%s1 + $0x168] sm:$0xff]
  %v73 = vld [vmem:[%s1 + $0x170] sm:$0xff]
  %v74 = vld [vmem:[%s1 + $0x178] sm:$0xff]
  %v75 = vld [vmem:[%s1 + $0x180] sm:$0xff]
  %v76 = vld [vmem:[%s1 + $0x188] sm:$0xff]
  %v77 = vld [vmem:[%s0] sm:$0xf]
  %v78 = vld [vmem:[%s2] sm:$0xff]
  %v79 = vld [vmem:[%s2 + $0x8] sm:$0xff]
  %v80 = vld [vmem:[%s2 + $0x10] sm:$0xff]
  %v81 = vld [vmem:[%s2 + $0x18] sm:$0xff]
  %v82 = vld [vmem:[%s2 + $0x20] sm:$0xff]
  %v83 = vld [vmem:[%s2 + $0x28] sm:$0xff]
  %v84 = vld [vmem:[%s2 + $0x30] sm:$0xff]
  %v85 = vld [vmem:[%s2 + $0x38] sm:$0xff]
  %v86 = vld [vmem:[%s2 + $0x40] sm:$0xff]
  %v87 = vld [vmem:[%s2 + $0x48] sm:$0xff]
  %v88 = vld [vmem:[%s2 + $0x50] sm:$0xff]
  %v89 = vld [vmem:[%s2 + $0x58] sm:$0xff]
  %v90 = vld [vmem:[%s2 + $0x60] sm:$0xff]
  %v91 = vld [vmem:[%s2 + $0x68] sm:$0xff]
  %v92 = vld [vmem:[%s2 + $0x70] sm:$0xff]
  %v93 = vld [vmem:[%s2 + $0x78] sm:$0xff]
  %v94 = vld [vmem:[%s2 + $0x80] sm:$0xff]
  %v95 = vld [vmem:[%s2 + $0x88] sm:$0xff]
  %v96 = vld [vmem:[%s2 + $0x90] sm:$0xff]
  %v97 = vld [vmem:[%s2 + $0x98] sm:$0xff]
  %v98 = vld [vmem:[%s2 + $0xa0] sm:$0xff]
  %v99 = vld [vmem:[%s2 + $0xa8] sm:$0xff]
  %v100 = vld [vmem:[%s2 + $0xb0] sm:$0xff]
  %v101 = vld [vmem:[%s2 + $0xb8] sm:$0xff]
  %v102 = vld [vmem:[%s2 + $0xc0] sm:$0xff]
  %v103 = vld [vmem:[%s2 + $0xc8] sm:$0xff]
  %v104 = vld [vmem:[%s2 + $0xd0] sm:$0xff]
  %v105 = vld [vmem:[%s2 + $0xd8] sm:$0xff]
  %v106 = vld [vmem:[%s2 + $0xe0] sm:$0xff]
  %v107 = vld [vmem:[%s2 + $0xe8] sm:$0xff]
  %v108 = vld [vmem:[%s2 + $0xf0] sm:$0xff]
  %v109 = vld [vmem:[%s2 + $0xf8] sm:$0xff]
  %v110 = vld [vmem:[%s2 + $0x100] sm:$0xff]
  %v111 = vld [vmem:[%s2 + $0x108] sm:$0xff]
  %v112 = vld [vmem:[%s2 + $0x110] sm:$0xff]
  %v113 = vld [vmem:[%s2 + $0x118] sm:$0xff]
  %v114 = vld [vmem:[%s2 + $0x120] sm:$0xff]
  %v115 = vld [vmem:[%s2 + $0x128] sm:$0xff]
  %v116 = vld [vmem:[%s2 + $0x130] sm:$0xff]
  %v117 = vld [vmem:[%s2 + $0x138] sm:$0xff]
  %v118 = vld [vmem:[%s2 + $0x140] sm:$0xff]
  %v119 = vld [vmem:[%s2 + $0x148] sm:$0xff]
  %v120 = vld [vmem:[%s2 + $0x150] sm:$0xff]
  %v121 = vld [vmem:[%s2 + $0x158] sm:$0xff]
  %v122 = vld [vmem:[%s2 + $0x160] sm:$0xff]
  %v123 = vld [vmem:[%s2 + $0x168] sm:$0xff]
  %v124 = vld [vmem:[%s2 + $0x170] sm:$0xff]
  %v125 = vld [vmem:[%s2 + $0x178] sm:$0xff]
  %v126 = vld [vmem:[%s2 + $0x180] sm:$0xff]
  %v127 = vld [vmem:[%s2 + $0x188] sm:$0xff]
  %129 = vset.pattern.permute.xlu0 0
  %130 = vperm.xlu0 %129, %v78
  %v131 = vpop.permute.xlu0 %130
  %134 = vset.pattern.permute.xlu0 0
  %135 = vperm.xlu0 %134, %v79
  %v136 = vpop.permute.xlu0 %135
  %139 = vset.pattern.permute.xlu0 0
  %140 = vperm.xlu0 %139, %v80
  %v141 = vpop.permute.xlu0 %140
  %144 = vset.pattern.permute.xlu0 0
  %145 = vperm.xlu0 %144, %v81
  %v146 = vpop.permute.xlu0 %145
  %149 = vset.pattern.permute.xlu0 0
  %150 = vperm.xlu0 %149, %v82
  %v151 = vpop.permute.xlu0 %150
  %154 = vset.pattern.permute.xlu0 0
  %155 = vperm.xlu0 %154, %v83
  %v156 = vpop.permute.xlu0 %155
  %159 = vset.pattern.permute.xlu0 0
  %160 = vperm.xlu0 %159, %v84
  %v161 = vpop.permute.xlu0 %160
  %164 = vset.pattern.permute.xlu0 0
  %165 = vperm.xlu0 %164, %v85
  %v166 = vpop.permute.xlu0 %165
  %169 = vset.pattern.permute.xlu0 0
  %170 = vperm.xlu0 %169, %v86
  %v171 = vpop.permute.xlu0 %170
  %174 = vset.pattern.permute.xlu0 0
  %175 = vperm.xlu0 %174, %v87
  %v176 = vpop.permute.xlu0 %175
  %179 = vset.pattern.permute.xlu0 0
  %180 = vperm.xlu0 %179, %v88
  %v181 = vpop.permute.xlu0 %180
  %184 = vset.pattern.permute.xlu0 0
  %185 = vperm.xlu0 %184, %v89
  %v186 = vpop.permute.xlu0 %185
  %189 = vset.pattern.permute.xlu0 0
  %190 = vperm.xlu0 %189, %v90
  %v191 = vpop.permute.xlu0 %190
  %194 = vset.pattern.permute.xlu0 0
  %195 = vperm.xlu0 %194, %v91
  %v196 = vpop.permute.xlu0 %195
  %199 = vset.pattern.permute.xlu0 0
  %200 = vperm.xlu0 %199, %v92
  %v201 = vpop.permute.xlu0 %200
  %204 = vset.pattern.permute.xlu0 0
  %205 = vperm.xlu0 %204, %v93
  %v206 = vpop.permute.xlu0 %205
  %209 = vset.pattern.permute.xlu0 0
  %210 = vperm.xlu0 %209, %v94
  %v211 = vpop.permute.xlu0 %210
  %214 = vset.pattern.permute.xlu0 0
  %215 = vperm.xlu0 %214, %v95
  %v216 = vpop.permute.xlu0 %215
  %219 = vset.pattern.permute.xlu0 0
  %220 = vperm.xlu0 %219, %v96
  %v221 = vpop.permute.xlu0 %220
  %224 = vset.pattern.permute.xlu0 0
  %225 = vperm.xlu0 %224, %v97
  %v226 = vpop.permute.xlu0 %225
  %229 = vset.pattern.permute.xlu0 0
  %230 = vperm.xlu0 %229, %v98
  %v231 = vpop.permute.xlu0 %230
  %234 = vset.pattern.permute.xlu0 0
  %235 = vperm.xlu0 %234, %v99
  %v236 = vpop.permute.xlu0 %235
  %239 = vset.pattern.permute.xlu0 0
  %240 = vperm.xlu0 %239, %v100
  %v241 = vpop.permute.xlu0 %240
  %244 = vset.pattern.permute.xlu0 0
  %245 = vperm.xlu0 %244, %v101
  %v246 = vpop.permute.xlu0 %245
  %249 = vset.pattern.permute.xlu0 0
  %250 = vperm.xlu0 %249, %v102
  %v251 = vpop.permute.xlu0 %250
  %254 = vset.pattern.permute.xlu0 0
  %255 = vperm.xlu0 %254, %v103
  %v256 = vpop.permute.xlu0 %255
  %259 = vset.pattern.permute.xlu0 0
  %260 = vperm.xlu0 %259, %v104
  %v261 = vpop.permute.xlu0 %260
  %264 = vset.pattern.permute.xlu0 0
  %265 = vperm.xlu0 %264, %v105
  %v266 = vpop.permute.xlu0 %265
  %269 = vset.pattern.permute.xlu0 0
  %270 = vperm.xlu0 %269, %v106
  %v271 = vpop.permute.xlu0 %270
  %274 = vset.pattern.permute.xlu0 0
  %275 = vperm.xlu0 %274, %v107
  %v276 = vpop.permute.xlu0 %275
  %279 = vset.pattern.permute.xlu0 0
  %280 = vperm.xlu0 %279, %v108
  %v281 = vpop.permute.xlu0 %280
  %284 = vset.pattern.permute.xlu0 0
  %285 = vperm.xlu0 %284, %v109
  %v286 = vpop.permute.xlu0 %285
  %289 = vset.pattern.permute.xlu0 0
  %290 = vperm.xlu0 %289, %v110
  %v291 = vpop.permute.xlu0 %290
  %294 = vset.pattern.permute.xlu0 0
  %295 = vperm.xlu0 %294, %v111
  %v296 = vpop.permute.xlu0 %295
  %299 = vset.pattern.permute.xlu0 0
  %300 = vperm.xlu0 %299, %v112
  %v301 = vpop.permute.xlu0 %300
  %304 = vset.pattern.permute.xlu0 0
  %305 = vperm.xlu0 %304, %v113
  %v306 = vpop.permute.xlu0 %305
  %309 = vset.pattern.permute.xlu0 0
  %310 = vperm.xlu0 %309, %v114
  %v311 = vpop.permute.xlu0 %310
  %314 = vset.pattern.permute.xlu0 0
  %315 = vperm.xlu0 %314, %v115
  %v316 = vpop.permute.xlu0 %315
  %319 = vset.pattern.permute.xlu0 0
  %320 = vperm.xlu0 %319, %v116
  %v321 = vpop.permute.xlu0 %320
  %324 = vset.pattern.permute.xlu0 0
  %325 = vperm.xlu0 %324, %v117
  %v326 = vpop.permute.xlu0 %325
  %329 = vset.pattern.permute.xlu0 0
  %330 = vperm.xlu0 %329, %v118
  %v331 = vpop.permute.xlu0 %330
  %334 = vset.pattern.permute.xlu0 0
  %335 = vperm.xlu0 %334, %v119
  %v336 = vpop.permute.xlu0 %335
  %339 = vset.pattern.permute.xlu0 0
  %340 = vperm.xlu0 %339, %v120
  %v341 = vpop.permute.xlu0 %340
  %344 = vset.pattern.permute.xlu0 0
  %345 = vperm.xlu0 %344, %v121
  %v346 = vpop.permute.xlu0 %345
  %349 = vset.pattern.permute.xlu0 0
  %350 = vperm.xlu0 %349, %v122
  %v351 = vpop.permute.xlu0 %350
  %354 = vset.pattern.permute.xlu0 0
  %355 = vperm.xlu0 %354, %v123
  %v356 = vpop.permute.xlu0 %355
  %359 = vset.pattern.permute.xlu0 0
  %360 = vperm.xlu0 %359, %v124
  %v361 = vpop.permute.xlu0 %360
  %364 = vset.pattern.permute.xlu0 0
  %365 = vperm.xlu0 %364, %v125
  %v366 = vpop.permute.xlu0 %365
  %369 = vset.pattern.permute.xlu0 0
  %370 = vperm.xlu0 %369, %v126
  %v371 = vpop.permute.xlu0 %370
  %374 = vset.pattern.permute.xlu0 0
  %375 = vperm.xlu0 %374, %v127
  %v376 = vpop.permute.xlu0 %375
  %vm378 = vcmask 31744
  %v380 = vsel %vm378, %v27, 0
  %v383 = vsel %vm378, %v28, 0
  %v386 = vsel %vm378, %v29, 0
  %v389 = vsel %vm378, %v30, 0
  %v392 = vsel %vm378, %v31, 0
  %v395 = vsel %vm378, %v32, 0
  %v398 = vsel %vm378, %v33, 0
  %v401 = vsel %vm378, %v34, 0
  %v404 = vsel %vm378, %v35, 0
  %v407 = vsel %vm378, %v36, 0
  %v410 = vsel %vm378, %v37, 0
  %v413 = vsel %vm378, %v38, 0
  %v416 = vsel %vm378, %v39, 0
  %v419 = vsel %vm378, %v40, 0
  %v422 = vsel %vm378, %v41, 0
  %v425 = vsel %vm378, %v42, 0
  %v428 = vsel %vm378, %v43, 0
  %v431 = vsel %vm378, %v44, 0
  %v434 = vsel %vm378, %v45, 0
  %v437 = vsel %vm378, %v46, 0
  %v440 = vsel %vm378, %v47, 0
  %v443 = vsel %vm378, %v48, 0
  %v446 = vsel %vm378, %v49, 0
  %v449 = vsel %vm378, %v50, 0
  %v452 = vsel %vm378, %v51, 0
  %v455 = vsel %vm378, %v52, 0
  %v458 = vsel %vm378, %v53, 0
  %v461 = vsel %vm378, %v54, 0
  %v464 = vsel %vm378, %v55, 0
  %v467 = vsel %vm378, %v56, 0
  %v470 = vsel %vm378, %v57, 0
  %v473 = vsel %vm378, %v58, 0
  %v476 = vsel %vm378, %v59, 0
  %v479 = vsel %vm378, %v60, 0
  %v482 = vsel %vm378, %v61, 0
  %v485 = vsel %vm378, %v62, 0
  %v488 = vsel %vm378, %v63, 0
  %v491 = vsel %vm378, %v64, 0
  %v494 = vsel %vm378, %v65, 0
  %v497 = vsel %vm378, %v66, 0
  %v500 = vsel %vm378, %v67, 0
  %v503 = vsel %vm378, %v68, 0
  %v506 = vsel %vm378, %v69, 0
  %v509 = vsel %vm378, %v70, 0
  %v512 = vsel %vm378, %v71, 0
  %v515 = vsel %vm378, %v72, 0
  %v518 = vsel %vm378, %v73, 0
  %v521 = vsel %vm378, %v74, 0
  %v524 = vsel %vm378, %v75, 0
  %v527 = vsel %vm378, %v76, 0
  %vm529 = vcmask 1043456
  %v531 = vsel %vm529, %v77, 0
  %533 = vmatpush.msra.mxu0 0.0
  %534 = vmatpush.msra.mxu0 0.0
  %535 = vmatpush.msra.mxu0 0.0
  %536 = vmatpush.msra.mxu0 0.0
  %537 = vmatpush.msra.mxu0 0.0
  %538 = vmatpush.msra.mxu0 0.0
  %539 = vmatpush.msra.mxu0 0.0
  %540 = vmatpush.msra.mxu0 0.0
  %541 = vmatpush.msra.mxu0 0.0
  %542 = vmatpush.msra.mxu0 0.0
  %543 = vmatpush.msra.mxu0 0.0
  %544 = vmatpush.msra.mxu0 0.0
  %545 = vmatpush.msra.mxu0 0.0
  %546 = vmatpush.msra.mxu0 0.0
  %547 = vmatpush.msra.mxu0 0.0
  %548 = vmatpush.msra.mxu0 %v531
  %549 = vmatmul.f32.gmra.mxu0 %v380
  %v550 = vpop.f32.mrf.mxu0
  %v551 = vadd.f32 %v131, %v550
  %552 = vmatmul.f32.gmra.mxu0 %v383
  %v553 = vpop.f32.mrf.mxu0
  %v554 = vadd.f32 %v136, %v553
  %555 = vmatmul.f32.gmra.mxu0 %v386
  %v556 = vpop.f32.mrf.mxu0
  %v557 = vadd.f32 %v141, %v556
  %558 = vmatmul.f32.gmra.mxu0 %v389
  %v559 = vpop.f32.mrf.mxu0
  %v560 = vadd.f32 %v146, %v559
  %561 = vmatmul.f32.gmra.mxu0 %v392
  %v562 = vpop.f32.mrf.mxu0
  %v563 = vadd.f32 %v151, %v562
  %564 = vmatmul.f32.gmra.mxu0 %v395
  %v565 = vpop.f32.mrf.mxu0
  %v566 = vadd.f32 %v156, %v565
  %567 = vmatmul.f32.gmra.mxu0 %v398
  %v568 = vpop.f32.mrf.mxu0
  %v569 = vadd.f32 %v161, %v568
  %570 = vmatmul.f32.gmra.mxu0 %v401
  %v571 = vpop.f32.mrf.mxu0
  %v572 = vadd.f32 %v166, %v571
  %573 = vmatmul.f32.gmra.mxu0 %v404
  %v574 = vpop.f32.mrf.mxu0
  %v575 = vadd.f32 %v171, %v574
  %576 = vmatmul.f32.gmra.mxu0 %v407
  %v577 = vpop.f32.mrf.mxu0
  %v578 = vadd.f32 %v176, %v577
  %579 = vmatmul.f32.gmra.mxu0 %v410
  %v580 = vpop.f32.mrf.mxu0
  %v581 = vadd.f32 %v181, %v580
  %582 = vmatmul.f32.gmra.mxu0 %v413
  %v583 = vpop.f32.mrf.mxu0
  %v584 = vadd.f32 %v186, %v583
  %585 = vmatmul.f32.gmra.mxu0 %v416
  %v586 = vpop.f32.mrf.mxu0
  %v587 = vadd.f32 %v191, %v586
  %588 = vmatmul.f32.gmra.mxu0 %v419
  %v589 = vpop.f32.mrf.mxu0
  %v590 = vadd.f32 %v196, %v589
  %591 = vmatmul.f32.gmra.mxu0 %v422
  %v592 = vpop.f32.mrf.mxu0
  %v593 = vadd.f32 %v201, %v592
  %594 = vmatmul.f32.gmra.mxu0 %v425
  %v595 = vpop.f32.mrf.mxu0
  %v596 = vadd.f32 %v206, %v595
  %597 = vmatmul.f32.gmra.mxu0 %v428
  %v598 = vpop.f32.mrf.mxu0
  %v599 = vadd.f32 %v211, %v598
  %600 = vmatmul.f32.gmra.mxu0 %v431
  %v601 = vpop.f32.mrf.mxu0
  %v602 = vadd.f32 %v216, %v601
  %603 = vmatmul.f32.gmra.mxu0 %v434
  %v604 = vpop.f32.mrf.mxu0
  %v605 = vadd.f32 %v221, %v604
  %606 = vmatmul.f32.gmra.mxu0 %v437
  %v607 = vpop.f32.mrf.mxu0
  %v608 = vadd.f32 %v226, %v607
  %609 = vmatmul.f32.gmra.mxu0 %v440
  %v610 = vpop.f32.mrf.mxu0
  %v611 = vadd.f32 %v231, %v610
  %612 = vmatmul.f32.gmra.mxu0 %v443
  %v613 = vpop.f32.mrf.mxu0
  %v614 = vadd.f32 %v236, %v613
  %615 = vmatmul.f32.gmra.mxu0 %v446
  %v616 = vpop.f32.mrf.mxu0
  %v617 = vadd.f32 %v241, %v616
  %618 = vmatmul.f32.gmra.mxu0 %v449
  %v619 = vpop.f32.mrf.mxu0
  %v620 = vadd.f32 %v246, %v619
  %621 = vmatmul.f32.gmra.mxu0 %v452
  %v622 = vpop.f32.mrf.mxu0
  %v623 = vadd.f32 %v251, %v622
  %624 = vmatmul.f32.gmra.mxu0 %v455
  %v625 = vpop.f32.mrf.mxu0
  %v626 = vadd.f32 %v256, %v625
  %627 = vmatmul.f32.gmra.mxu0 %v458
  %v628 = vpop.f32.mrf.mxu0
  %v629 = vadd.f32 %v261, %v628
  %630 = vmatmul.f32.gmra.mxu0 %v461
  %v631 = vpop.f32.mrf.mxu0
  %v632 = vadd.f32 %v266, %v631
  %633 = vmatmul.f32.gmra.mxu0 %v464
  %v634 = vpop.f32.mrf.mxu0
  %v635 = vadd.f32 %v271, %v634
  %636 = vmatmul.f32.gmra.mxu0 %v467
  %v637 = vpop.f32.mrf.mxu0
  %v638 = vadd.f32 %v276, %v637
  %639 = vmatmul.f32.gmra.mxu0 %v470
  %v640 = vpop.f32.mrf.mxu0
  %v641 = vadd.f32 %v281, %v640
  %642 = vmatmul.f32.gmra.mxu0 %v473
  %v643 = vpop.f32.mrf.mxu0
  %v644 = vadd.f32 %v286, %v643
  %645 = vmatmul.f32.gmra.mxu0 %v476
  %v646 = vpop.f32.mrf.mxu0
  %v647 = vadd.f32 %v291, %v646
  %648 = vmatmul.f32.gmra.mxu0 %v479
  %v649 = vpop.f32.mrf.mxu0
  %v650 = vadd.f32 %v296, %v649
  %651 = vmatmul.f32.gmra.mxu0 %v482
  %v652 = vpop.f32.mrf.mxu0
  %v653 = vadd.f32 %v301, %v652
  %654 = vmatmul.f32.gmra.mxu0 %v485
  %v655 = vpop.f32.mrf.mxu0
  %v656 = vadd.f32 %v306, %v655
  %657 = vmatmul.f32.gmra.mxu0 %v488
  %v658 = vpop.f32.mrf.mxu0
  %v659 = vadd.f32 %v311, %v658
  %660 = vmatmul.f32.gmra.mxu0 %v491
  %v661 = vpop.f32.mrf.mxu0
  %v662 = vadd.f32 %v316, %v661
  %663 = vmatmul.f32.gmra.mxu0 %v494
  %v664 = vpop.f32.mrf.mxu0
  %v665 = vadd.f32 %v321, %v664
  %666 = vmatmul.f32.gmra.mxu0 %v497
  %v667 = vpop.f32.mrf.mxu0
  %v668 = vadd.f32 %v326, %v667
  %669 = vmatmul.f32.gmra.mxu0 %v500
  %v670 = vpop.f32.mrf.mxu0
  %v671 = vadd.f32 %v331, %v670
  %672 = vmatmul.f32.gmra.mxu0 %v503
  %v673 = vpop.f32.mrf.mxu0
  %v674 = vadd.f32 %v336, %v673
  %675 = vmatmul.f32.gmra.mxu0 %v506
  %v676 = vpop.f32.mrf.mxu0
  %v677 = vadd.f32 %v341, %v676
  %678 = vmatmul.f32.gmra.mxu0 %v509
  %v679 = vpop.f32.mrf.mxu0
  %v680 = vadd.f32 %v346, %v679
  %681 = vmatmul.f32.gmra.mxu0 %v512
  %v682 = vpop.f32.mrf.mxu0
  %v683 = vadd.f32 %v351, %v682
  %684 = vmatmul.f32.gmra.mxu0 %v515
  %v685 = vpop.f32.mrf.mxu0
  %v686 = vadd.f32 %v356, %v685
  %687 = vmatmul.f32.gmra.mxu0 %v518
  %v688 = vpop.f32.mrf.mxu0
  %v689 = vadd.f32 %v361, %v688
  %690 = vmatmul.f32.gmra.mxu0 %v521
  %v691 = vpop.f32.mrf.mxu0
  %v692 = vadd.f32 %v366, %v691
  %693 = vmatmul.f32.gmra.mxu0 %v524
  %v694 = vpop.f32.mrf.mxu0
  %v695 = vadd.f32 %v371, %v694
  %696 = vmatmul.f32.gmra.mxu0 %v527
  %v697 = vpop.f32.mrf.mxu0
  %v698 = vadd.f32 %v376, %v697
  %699 = vdwg.mxu0
  %v700 = vmax.f32 %v551, 0.0
  %v701 = vmax.f32 %v554, 0.0
  %v702 = vmax.f32 %v557, 0.0
  %v703 = vmax.f32 %v560, 0.0
  %v704 = vmax.f32 %v563, 0.0
  %v705 = vmax.f32 %v566, 0.0
  %v706 = vmax.f32 %v569, 0.0
  %v707 = vmax.f32 %v572, 0.0
  %v708 = vmax.f32 %v575, 0.0
  %v709 = vmax.f32 %v578, 0.0
  %v710 = vmax.f32 %v581, 0.0
  %v711 = vmax.f32 %v584, 0.0
  %v712 = vmax.f32 %v587, 0.0
  %v713 = vmax.f32 %v590, 0.0
  %v714 = vmax.f32 %v593, 0.0
  %v715 = vmax.f32 %v596, 0.0
  %v716 = vmax.f32 %v599, 0.0
  %v717 = vmax.f32 %v602, 0.0
  %v718 = vmax.f32 %v605, 0.0
  %v719 = vmax.f32 %v608, 0.0
  %v720 = vmax.f32 %v611, 0.0
  %v721 = vmax.f32 %v614, 0.0
  %v722 = vmax.f32 %v617, 0.0
  %v723 = vmax.f32 %v620, 0.0
  %v724 = vmax.f32 %v623, 0.0
  %v725 = vmax.f32 %v626, 0.0
  %v726 = vmax.f32 %v629, 0.0
  %v727 = vmax.f32 %v632, 0.0
  %v728 = vmax.f32 %v635, 0.0
  %v729 = vmax.f32 %v638, 0.0
  %v730 = vmax.f32 %v641, 0.0
  %v731 = vmax.f32 %v644, 0.0
  %v732 = vmax.f32 %v647, 0.0
  %v733 = vmax.f32 %v650, 0.0
  %v734 = vmax.f32 %v653, 0.0
  %v735 = vmax.f32 %v656, 0.0
  %v736 = vmax.f32 %v659, 0.0
  %v737 = vmax.f32 %v662, 0.0
  %v738 = vmax.f32 %v665, 0.0
  %v739 = vmax.f32 %v668, 0.0
  %v740 = vmax.f32 %v671, 0.0
  %v741 = vmax.f32 %v674, 0.0
  %v742 = vmax.f32 %v677, 0.0
  %v743 = vmax.f32 %v680, 0.0
  %v744 = vmax.f32 %v683, 0.0
  %v745 = vmax.f32 %v686, 0.0
  %v746 = vmax.f32 %v689, 0.0
  %v747 = vmax.f32 %v692, 0.0
  %v748 = vmax.f32 %v695, 0.0
  %v749 = vmax.f32 %v698, 0.0
  %v750 = vld [vmem:[%s3] sm:$0xff]
  %v751 = vld [vmem:[%s3 + $0x8] sm:$0xff]
  %v752 = vld [vmem:[%s3 + $0x10] sm:$0xff]
  %v753 = vld [vmem:[%s3 + $0x18] sm:$0xff]
  %v754 = vld [vmem:[%s3 + $0x20] sm:$0xff]
  %v755 = vld [vmem:[%s3 + $0x28] sm:$0xff]
  %v756 = vld [vmem:[%s3 + $0x30] sm:$0xff]
  %v757 = vld [vmem:[%s3 + $0x38] sm:$0xff]
  %v758 = vld [vmem:[%s3 + $0x40] sm:$0xff]
  %v759 = vld [vmem:[%s3 + $0x48] sm:$0xff]
  %v760 = vld [vmem:[%s3 + $0x50] sm:$0xff]
  %v761 = vld [vmem:[%s3 + $0x58] sm:$0xff]
  %v762 = vld [vmem:[%s3 + $0x60] sm:$0xff]
  %v763 = vld [vmem:[%s3 + $0x68] sm:$0xff]
  %v764 = vld [vmem:[%s3 + $0x70] sm:$0xff]
  %v765 = vld [vmem:[%s3 + $0x78] sm:$0xff]
  %v766 = vld [vmem:[%s3 + $0x80] sm:$0xff]
  %v767 = vld [vmem:[%s3 + $0x88] sm:$0xff]
  %v768 = vld [vmem:[%s3 + $0x90] sm:$0xff]
  %v769 = vld [vmem:[%s3 + $0x98] sm:$0xff]
  %v770 = vld [vmem:[%s3 + $0xa0] sm:$0xff]
  %v771 = vld [vmem:[%s3 + $0xa8] sm:$0xff]
  %v772 = vld [vmem:[%s3 + $0xb0] sm:$0xff]
  %v773 = vld [vmem:[%s3 + $0xb8] sm:$0xff]
  %v774 = vld [vmem:[%s3 + $0xc0] sm:$0xff]
  %v775 = vld [vmem:[%s3 + $0xc8] sm:$0xff]
  %v776 = vld [vmem:[%s3 + $0xd0] sm:$0xff]
  %v777 = vld [vmem:[%s3 + $0xd8] sm:$0xff]
  %v778 = vld [vmem:[%s3 + $0xe0] sm:$0xff]
  %v779 = vld [vmem:[%s3 + $0xe8] sm:$0xff]
  %v780 = vld [vmem:[%s3 + $0xf0] sm:$0xff]
  %v781 = vld [vmem:[%s3 + $0xf8] sm:$0xff]
  %v782 = vld [vmem:[%s3 + $0x100] sm:$0xff]
  %v783 = vld [vmem:[%s3 + $0x108] sm:$0xff]
  %v784 = vld [vmem:[%s3 + $0x110] sm:$0xff]
  %v785 = vld [vmem:[%s3 + $0x118] sm:$0xff]
  %v786 = vld [vmem:[%s3 + $0x120] sm:$0xff]
  %v787 = vld [vmem:[%s3 + $0x128] sm:$0xff]
  %v788 = vld [vmem:[%s3 + $0x130] sm:$0xff]
  %v789 = vld [vmem:[%s3 + $0x138] sm:$0xff]
  %v790 = vld [vmem:[%s3 + $0x140] sm:$0xff]
  %v791 = vld [vmem:[%s3 + $0x148] sm:$0xff]
  %v792 = vld [vmem:[%s3 + $0x150] sm:$0xff]
  %v793 = vld [vmem:[%s3 + $0x158] sm:$0xff]
  %v794 = vld [vmem:[%s3 + $0x160] sm:$0xff]
  %v795 = vld [vmem:[%s3 + $0x168] sm:$0xff]
  %v796 = vld [vmem:[%s3 + $0x170] sm:$0xff]
  %v797 = vld [vmem:[%s3 + $0x178] sm:$0xff]
  %v798 = vld [vmem:[%s3 + $0x180] sm:$0xff]
  %v799 = vld [vmem:[%s3 + $0x188] sm:$0xff]
  %v800 = vld [vmem:[%s3 + $0x190] sm:$0xff]
  %v801 = vld [vmem:[%s3 + $0x198] sm:$0xff]
  %v802 = vld [vmem:[%s3 + $0x1a0] sm:$0xff]
  %v803 = vld [vmem:[%s3 + $0x1a8] sm:$0xff]
  %v804 = vld [vmem:[%s3 + $0x1b0] sm:$0xff]
  %v805 = vld [vmem:[%s3 + $0x1b8] sm:$0xff]
  %v806 = vld [vmem:[%s3 + $0x1c0] sm:$0xff]
  %v807 = vld [vmem:[%s3 + $0x1c8] sm:$0xff]
  %v808 = vld [vmem:[%s3 + $0x1d0] sm:$0xff]
  %v809 = vld [vmem:[%s3 + $0x1d8] sm:$0xff]
  %v810 = vld [vmem:[%s3 + $0x1e0] sm:$0xff]
  %v811 = vld [vmem:[%s3 + $0x1e8] sm:$0xff]
  %v812 = vld [vmem:[%s3 + $0x1f0] sm:$0xff]
  %v813 = vld [vmem:[%s3 + $0x1f8] sm:$0xff]
  %v814 = vld [vmem:[%s3 + $0x200] sm:$0xff]
  %v815 = vld [vmem:[%s3 + $0x208] sm:$0xff]
  %v816 = vld [vmem:[%s3 + $0x210] sm:$0xff]
  %v817 = vld [vmem:[%s3 + $0x218] sm:$0xff]
  %v818 = vld [vmem:[%s3 + $0x220] sm:$0xff]
  %v819 = vld [vmem:[%s3 + $0x228] sm:$0xff]
  %v820 = vld [vmem:[%s3 + $0x230] sm:$0xff]
  %v821 = vld [vmem:[%s3 + $0x238] sm:$0xff]
  %v822 = vld [vmem:[%s3 + $0x240] sm:$0xff]
  %v823 = vld [vmem:[%s3 + $0x248] sm:$0xff]
  %v824 = vld [vmem:[%s3 + $0x250] sm:$0xff]
  %v825 = vld [vmem:[%s3 + $0x258] sm:$0xff]
  %v826 = vld [vmem:[%s3 + $0x260] sm:$0xff]
  %v827 = vld [vmem:[%s3 + $0x268] sm:$0xff]
  %v828 = vld [vmem:[%s3 + $0x270] sm:$0xff]
  %v829 = vld [vmem:[%s3 + $0x278] sm:$0xff]
  %v830 = vld [vmem:[%s3 + $0x280] sm:$0xff]
  %v831 = vld [vmem:[%s3 + $0x288] sm:$0xff]
  %v832 = vld [vmem:[%s3 + $0x290] sm:$0xff]
  %v833 = vld [vmem:[%s3 + $0x298] sm:$0xff]
  %v834 = vld [vmem:[%s3 + $0x2a0] sm:$0xff]
  %v835 = vld [vmem:[%s3 + $0x2a8] sm:$0xff]
  %v836 = vld [vmem:[%s3 + $0x2b0] sm:$0xff]
  %v837 = vld [vmem:[%s3 + $0x2b8] sm:$0xff]
  %v838 = vld [vmem:[%s3 + $0x2c0] sm:$0xff]
  %v839 = vld [vmem:[%s3 + $0x2c8] sm:$0xff]
  %v840 = vld [vmem:[%s3 + $0x2d0] sm:$0xff]
  %v841 = vld [vmem:[%s3 + $0x2d8] sm:$0xff]
  %v842 = vld [vmem:[%s3 + $0x2e0] sm:$0xff]
  %v843 = vld [vmem:[%s3 + $0x2e8] sm:$0xff]
  %v844 = vld [vmem:[%s3 + $0x2f0] sm:$0xff]
  %v845 = vld [vmem:[%s3 + $0x2f8] sm:$0xff]
  %v846 = vld [vmem:[%s3 + $0x300] sm:$0xff]
  %v847 = vld [vmem:[%s3 + $0x308] sm:$0xff]
  %v848 = vld [vmem:[%s3 + $0x310] sm:$0xff]
  %v849 = vld [vmem:[%s3 + $0x318] sm:$0xff]
  %v850 = vld [vmem:[%s3 + $0x320] sm:$0xff]
  %v851 = vld [vmem:[%s3 + $0x328] sm:$0xff]
  %v852 = vld [vmem:[%s3 + $0x330] sm:$0xff]
  %v853 = vld [vmem:[%s3 + $0x338] sm:$0xff]
  %v854 = vld [vmem:[%s3 + $0x340] sm:$0xff]
  %v855 = vld [vmem:[%s3 + $0x348] sm:$0xff]
  %v856 = vld [vmem:[%s3 + $0x350] sm:$0xff]
  %v857 = vld [vmem:[%s3 + $0x358] sm:$0xff]
  %v858 = vld [vmem:[%s3 + $0x360] sm:$0xff]
  %v859 = vld [vmem:[%s3 + $0x368] sm:$0xff]
  %v860 = vld [vmem:[%s3 + $0x370] sm:$0xff]
  %v861 = vld [vmem:[%s3 + $0x378] sm:$0xff]
  %v862 = vld [vmem:[%s3 + $0x380] sm:$0xff]
  %v863 = vld [vmem:[%s3 + $0x388] sm:$0xff]
  %v864 = vld [vmem:[%s3 + $0x390] sm:$0xff]
  %v865 = vld [vmem:[%s3 + $0x398] sm:$0xff]
  %v866 = vld [vmem:[%s3 + $0x3a0] sm:$0xff]
  %v867 = vld [vmem:[%s3 + $0x3a8] sm:$0xff]
  %v868 = vld [vmem:[%s3 + $0x3b0] sm:$0xff]
  %v869 = vld [vmem:[%s3 + $0x3b8] sm:$0xff]
  %v870 = vld [vmem:[%s3 + $0x3c0] sm:$0xff]
  %v871 = vld [vmem:[%s3 + $0x3c8] sm:$0xff]
  %v872 = vld [vmem:[%s3 + $0x3d0] sm:$0xff]
  %v873 = vld [vmem:[%s3 + $0x3d8] sm:$0xff]
  %v874 = vld [vmem:[%s3 + $0x3e0] sm:$0xff]
  %v875 = vld [vmem:[%s3 + $0x3e8] sm:$0xff]
  %v876 = vld [vmem:[%s3 + $0x3f0] sm:$0xff]
  %v877 = vld [vmem:[%s3 + $0x3f8] sm:$0xff]
  %v878 = vld [vmem:[%s3 + $0x400] sm:$0xff]
  %v879 = vld [vmem:[%s3 + $0x408] sm:$0xff]
  %v880 = vld [vmem:[%s3 + $0x410] sm:$0xff]
  %v881 = vld [vmem:[%s3 + $0x418] sm:$0xff]
  %v882 = vld [vmem:[%s3 + $0x420] sm:$0xff]
  %v883 = vld [vmem:[%s3 + $0x428] sm:$0xff]
  %v884 = vld [vmem:[%s3 + $0x430] sm:$0xff]
  %v885 = vld [vmem:[%s3 + $0x438] sm:$0xff]
  %v886 = vld [vmem:[%s3 + $0x440] sm:$0xff]
  %v887 = vld [vmem:[%s3 + $0x448] sm:$0xff]
  %v888 = vld [vmem:[%s3 + $0x450] sm:$0xff]
  %v889 = vld [vmem:[%s3 + $0x458] sm:$0xff]
  %v890 = vld [vmem:[%s3 + $0x460] sm:$0xff]
  %v891 = vld [vmem:[%s3 + $0x468] sm:$0xff]
  %v892 = vld [vmem:[%s3 + $0x470] sm:$0xff]
  %v893 = vld [vmem:[%s3 + $0x478] sm:$0xff]
  %v894 = vld [vmem:[%s3 + $0x480] sm:$0xff]
  %v895 = vld [vmem:[%s3 + $0x488] sm:$0xff]
  %v896 = vld [vmem:[%s3 + $0x490] sm:$0xff]
  %v897 = vld [vmem:[%s3 + $0x498] sm:$0xff]
  %v898 = vld [vmem:[%s3 + $0x4a0] sm:$0xf]
  %v899 = vld [vmem:[%s3 + $0x4a8] sm:$0xf]
  %v900 = vld [vmem:[%s3 + $0x4b0] sm:$0xf]
  %v901 = vld [vmem:[%s3 + $0x4b8] sm:$0xf]
  %v902 = vld [vmem:[%s4] sm:$0xff]
  %v903 = vld [vmem:[%s4 + $0x8] sm:$0xff]
  %v904 = vld [vmem:[%s4 + $0x10] sm:$0xff]
  %v905 = vld [vmem:[%s4 + $0x18] sm:$0xff]
  %v906 = vld [vmem:[%s4 + $0x20] sm:$0xff]
  %v907 = vld [vmem:[%s4 + $0x28] sm:$0xff]
  %v908 = vld [vmem:[%s4 + $0x30] sm:$0xff]
  %v909 = vld [vmem:[%s4 + $0x38] sm:$0xff]
  %v910 = vld [vmem:[%s4 + $0x40] sm:$0xff]
  %v911 = vld [vmem:[%s4 + $0x48] sm:$0xff]
  %v912 = vld [vmem:[%s4 + $0x50] sm:$0xff]
  %v913 = vld [vmem:[%s4 + $0x58] sm:$0xff]
  %v914 = vld [vmem:[%s4 + $0x60] sm:$0xff]
  %v915 = vld [vmem:[%s4 + $0x68] sm:$0xff]
  %v916 = vld [vmem:[%s4 + $0x70] sm:$0xff]
  %v917 = vld [vmem:[%s4 + $0x78] sm:$0xff]
  %v918 = vld [vmem:[%s4 + $0x80] sm:$0xff]
  %v919 = vld [vmem:[%s4 + $0x88] sm:$0xff]
  %v920 = vld [vmem:[%s4 + $0x90] sm:$0xff]
  %v921 = vld [vmem:[%s4 + $0x98] sm:$0xff]
  %v922 = vld [vmem:[%s4 + $0xa0] sm:$0xff]
  %v923 = vld [vmem:[%s4 + $0xa8] sm:$0xff]
  %v924 = vld [vmem:[%s4 + $0xb0] sm:$0xff]
  %v925 = vld [vmem:[%s4 + $0xb8] sm:$0xff]
  %v926 = vld [vmem:[%s4 + $0xc0] sm:$0xff]
  %v927 = vld [vmem:[%s4 + $0xc8] sm:$0xff]
  %v928 = vld [vmem:[%s4 + $0xd0] sm:$0xff]
  %v929 = vld [vmem:[%s4 + $0xd8] sm:$0xff]
  %v930 = vld [vmem:[%s4 + $0xe0] sm:$0xff]
  %v931 = vld [vmem:[%s4 + $0xe8] sm:$0xff]
  %v932 = vld [vmem:[%s4 + $0xf0] sm:$0xff]
  %v933 = vld [vmem:[%s4 + $0xf8] sm:$0xff]
  %v934 = vld [vmem:[%s4 + $0x100] sm:$0xff]
  %v935 = vld [vmem:[%s4 + $0x108] sm:$0xff]
  %v936 = vld [vmem:[%s4 + $0x110] sm:$0xff]
  %v937 = vld [vmem:[%s4 + $0x118] sm:$0xff]
  %v938 = vld [vmem:[%s4 + $0x120] sm:$0xff]
  %v939 = vld [vmem:[%s4 + $0x128] sm:$0xf]
  %941 = vset.pattern.permute.xlu0 0
  %942 = vperm.xlu0 %941, %v902
  %v943 = vpop.permute.xlu0 %942
  %946 = vset.pattern.permute.xlu0 0
  %947 = vperm.xlu0 %946, %v903
  %v948 = vpop.permute.xlu0 %947
  %951 = vset.pattern.permute.xlu0 0
  %952 = vperm.xlu0 %951, %v904
  %v953 = vpop.permute.xlu0 %952
  %956 = vset.pattern.permute.xlu0 0
  %957 = vperm.xlu0 %956, %v905
  %v958 = vpop.permute.xlu0 %957
  %961 = vset.pattern.permute.xlu0 0
  %962 = vperm.xlu0 %961, %v906
  %v963 = vpop.permute.xlu0 %962
  %966 = vset.pattern.permute.xlu0 0
  %967 = vperm.xlu0 %966, %v907
  %v968 = vpop.permute.xlu0 %967
  %971 = vset.pattern.permute.xlu0 0
  %972 = vperm.xlu0 %971, %v908
  %v973 = vpop.permute.xlu0 %972
  %976 = vset.pattern.permute.xlu0 0
  %977 = vperm.xlu0 %976, %v909
  %v978 = vpop.permute.xlu0 %977
  %981 = vset.pattern.permute.xlu0 0
  %982 = vperm.xlu0 %981, %v910
  %v983 = vpop.permute.xlu0 %982
  %986 = vset.pattern.permute.xlu0 0
  %987 = vperm.xlu0 %986, %v911
  %v988 = vpop.permute.xlu0 %987
  %991 = vset.pattern.permute.xlu0 0
  %992 = vperm.xlu0 %991, %v912
  %v993 = vpop.permute.xlu0 %992
  %996 = vset.pattern.permute.xlu0 0
  %997 = vperm.xlu0 %996, %v913
  %v998 = vpop.permute.xlu0 %997
  %1001 = vset.pattern.permute.xlu0 0
  %1002 = vperm.xlu0 %1001, %v914
  %v1003 = vpop.permute.xlu0 %1002
  %1006 = vset.pattern.permute.xlu0 0
  %1007 = vperm.xlu0 %1006, %v915
  %v1008 = vpop.permute.xlu0 %1007
  %1011 = vset.pattern.permute.xlu0 0
  %1012 = vperm.xlu0 %1011, %v916
  %v1013 = vpop.permute.xlu0 %1012
  %1016 = vset.pattern.permute.xlu0 0
  %1017 = vperm.xlu0 %1016, %v917
  %v1018 = vpop.permute.xlu0 %1017
  %1021 = vset.pattern.permute.xlu0 0
  %1022 = vperm.xlu0 %1021, %v918
  %v1023 = vpop.permute.xlu0 %1022
  %1026 = vset.pattern.permute.xlu0 0
  %1027 = vperm.xlu0 %1026, %v919
  %v1028 = vpop.permute.xlu0 %1027
  %1031 = vset.pattern.permute.xlu0 0
  %1032 = vperm.xlu0 %1031, %v920
  %v1033 = vpop.permute.xlu0 %1032
  %1036 = vset.pattern.permute.xlu0 0
  %1037 = vperm.xlu0 %1036, %v921
  %v1038 = vpop.permute.xlu0 %1037
  %1041 = vset.pattern.permute.xlu0 0
  %1042 = vperm.xlu0 %1041, %v922
  %v1043 = vpop.permute.xlu0 %1042
  %1046 = vset.pattern.permute.xlu0 0
  %1047 = vperm.xlu0 %1046, %v923
  %v1048 = vpop.permute.xlu0 %1047
  %1051 = vset.pattern.permute.xlu0 0
  %1052 = vperm.xlu0 %1051, %v924
  %v1053 = vpop.permute.xlu0 %1052
  %1056 = vset.pattern.permute.xlu0 0
  %1057 = vperm.xlu0 %1056, %v925
  %v1058 = vpop.permute.xlu0 %1057
  %1061 = vset.pattern.permute.xlu0 0
  %1062 = vperm.xlu0 %1061, %v926
  %v1063 = vpop.permute.xlu0 %1062
  %1066 = vset.pattern.permute.xlu0 0
  %1067 = vperm.xlu0 %1066, %v927
  %v1068 = vpop.permute.xlu0 %1067
  %1071 = vset.pattern.permute.xlu0 0
  %1072 = vperm.xlu0 %1071, %v928
  %v1073 = vpop.permute.xlu0 %1072
  %1076 = vset.pattern.permute.xlu0 0
  %1077 = vperm.xlu0 %1076, %v929
  %v1078 = vpop.permute.xlu0 %1077
  %1081 = vset.pattern.permute.xlu0 0
  %1082 = vperm.xlu0 %1081, %v930
  %v1083 = vpop.permute.xlu0 %1082
  %1086 = vset.pattern.permute.xlu0 0
  %1087 = vperm.xlu0 %1086, %v931
  %v1088 = vpop.permute.xlu0 %1087
  %1091 = vset.pattern.permute.xlu0 0
  %1092 = vperm.xlu0 %1091, %v932
  %v1093 = vpop.permute.xlu0 %1092
  %1096 = vset.pattern.permute.xlu0 0
  %1097 = vperm.xlu0 %1096, %v933
  %v1098 = vpop.permute.xlu0 %1097
  %1101 = vset.pattern.permute.xlu0 0
  %1102 = vperm.xlu0 %1101, %v934
  %v1103 = vpop.permute.xlu0 %1102
  %1106 = vset.pattern.permute.xlu0 0
  %1107 = vperm.xlu0 %1106, %v935
  %v1108 = vpop.permute.xlu0 %1107
  %1111 = vset.pattern.permute.xlu0 0
  %1112 = vperm.xlu0 %1111, %v936
  %v1113 = vpop.permute.xlu0 %1112
  %1116 = vset.pattern.permute.xlu0 0
  %1117 = vperm.xlu0 %1116, %v937
  %v1118 = vpop.permute.xlu0 %1117
  %1121 = vset.pattern.permute.xlu0 0
  %1122 = vperm.xlu0 %1121, %v938
  %v1123 = vpop.permute.xlu0 %1122
  %1126 = vset.pattern.permute.xlu0 0
  %1127 = vperm.xlu0 %1126, %v939
  %v1128 = vpop.permute.xlu0 %1127
  %vm1130 = vcmask 130048
  %v1132 = vsel %vm1130, %v753, 0
  %v1135 = vsel %vm1130, %v757, 0
  %v1138 = vsel %vm1130, %v761, 0
  %v1141 = vsel %vm1130, %v765, 0
  %v1144 = vsel %vm1130, %v769, 0
  %v1147 = vsel %vm1130, %v773, 0
  %v1150 = vsel %vm1130, %v777, 0
  %v1153 = vsel %vm1130, %v781, 0
  %v1156 = vsel %vm1130, %v785, 0
  %v1159 = vsel %vm1130, %v789, 0
  %v1162 = vsel %vm1130, %v793, 0
  %v1165 = vsel %vm1130, %v797, 0
  %v1168 = vsel %vm1130, %v801, 0
  %v1171 = vsel %vm1130, %v805, 0
  %v1174 = vsel %vm1130, %v809, 0
  %v1177 = vsel %vm1130, %v813, 0
  %v1180 = vsel %vm1130, %v817, 0
  %v1183 = vsel %vm1130, %v821, 0
  %v1186 = vsel %vm1130, %v825, 0
  %v1189 = vsel %vm1130, %v829, 0
  %v1192 = vsel %vm1130, %v833, 0
  %v1195 = vsel %vm1130, %v837, 0
  %v1198 = vsel %vm1130, %v841, 0
  %v1201 = vsel %vm1130, %v845, 0
  %v1204 = vsel %vm1130, %v849, 0
  %v1207 = vsel %vm1130, %v853, 0
  %v1210 = vsel %vm1130, %v857, 0
  %v1213 = vsel %vm1130, %v861, 0
  %v1216 = vsel %vm1130, %v865, 0
  %v1219 = vsel %vm1130, %v869, 0
  %v1222 = vsel %vm1130, %v873, 0
  %v1225 = vsel %vm1130, %v877, 0
  %v1228 = vsel %vm1130, %v881, 0
  %v1231 = vsel %vm1130, %v885, 0
  %v1234 = vsel %vm1130, %v889, 0
  %v1237 = vsel %vm1130, %v893, 0
  %v1240 = vsel %vm1130, %v897, 0
  %v1243 = vsel %vm1130, %v901, 0
  %1245 = vmatpush.msra.mxu0 %v715
  %1246 = vmatpush.msra.mxu0 %v714
  %1247 = vmatpush.msra.mxu0 %v713
  %1248 = vmatpush.msra.mxu0 %v712
  %1249 = vmatpush.msra.mxu0 %v711
  %1250 = vmatpush.msra.mxu0 %v710
  %1251 = vmatpush.msra.mxu0 %v709
  %1252 = vmatpush.msra.mxu0 %v708
  %1253 = vmatpush.msra.mxu0 %v707
  %1254 = vmatpush.msra.mxu0 %v706
  %1255 = vmatpush.msra.mxu0 %v705
  %1256 = vmatpush.msra.mxu0 %v704
  %1257 = vmatpush.msra.mxu0 %v703
  %1258 = vmatpush.msra.mxu0 %v702
  %1259 = vmatpush.msra.mxu0 %v701
  %1260 = vmatpush.msra.mxu0 %v700
  %1261 = vmatmul.f32.gmra.mxu0 %v750
  %v1262 = vpop.f32.mrf.mxu0
  %v1263 = vadd.f32 %v943, %v1262
  %1264 = vmatmul.f32.gmra.mxu0 %v754
  %v1265 = vpop.f32.mrf.mxu0
  %v1266 = vadd.f32 %v948, %v1265
  %1267 = vmatmul.f32.gmra.mxu0 %v758
  %v1268 = vpop.f32.mrf.mxu0
  %v1269 = vadd.f32 %v953, %v1268
  %1270 = vmatmul.f32.gmra.mxu0 %v762
  %v1271 = vpop.f32.mrf.mxu0
  %v1272 = vadd.f32 %v958, %v1271
  %1273 = vmatmul.f32.gmra.mxu0 %v766
  %v1274 = vpop.f32.mrf.mxu0
  %v1275 = vadd.f32 %v963, %v1274
  %1276 = vmatmul.f32.gmra.mxu0 %v770
  %v1277 = vpop.f32.mrf.mxu0
  %v1278 = vadd.f32 %v968, %v1277
  %1279 = vmatmul.f32.gmra.mxu0 %v774
  %v1280 = vpop.f32.mrf.mxu0
  %v1281 = vadd.f32 %v973, %v1280
  %1282 = vmatmul.f32.gmra.mxu0 %v778
  %v1283 = vpop.f32.mrf.mxu0
  %v1284 = vadd.f32 %v978, %v1283
  %1285 = vmatmul.f32.gmra.mxu0 %v782
  %v1286 = vpop.f32.mrf.mxu0
  %v1287 = vadd.f32 %v983, %v1286
  %1288 = vmatmul.f32.gmra.mxu0 %v786
  %v1289 = vpop.f32.mrf.mxu0
  %v1290 = vadd.f32 %v988, %v1289
  %1291 = vmatmul.f32.gmra.mxu0 %v790
  %v1292 = vpop.f32.mrf.mxu0
  %v1293 = vadd.f32 %v993, %v1292
  %1294 = vmatmul.f32.gmra.mxu0 %v794
  %v1295 = vpop.f32.mrf.mxu0
  %v1296 = vadd.f32 %v998, %v1295
  %1297 = vmatmul.f32.gmra.mxu0 %v798
  %v1298 = vpop.f32.mrf.mxu0
  %v1299 = vadd.f32 %v1003, %v1298
  %1300 = vmatmul.f32.gmra.mxu0 %v802
  %v1301 = vpop.f32.mrf.mxu0
  %v1302 = vadd.f32 %v1008, %v1301
  %1303 = vmatmul.f32.gmra.mxu0 %v806
  %v1304 = vpop.f32.mrf.mxu0
  %v1305 = vadd.f32 %v1013, %v1304
  %1306 = vmatmul.f32.gmra.mxu0 %v810
  %v1307 = vpop.f32.mrf.mxu0
  %v1308 = vadd.f32 %v1018, %v1307
  %1309 = vmatmul.f32.gmra.mxu0 %v814
  %v1310 = vpop.f32.mrf.mxu0
  %v1311 = vadd.f32 %v1023, %v1310
  %1312 = vmatmul.f32.gmra.mxu0 %v818
  %v1313 = vpop.f32.mrf.mxu0
  %v1314 = vadd.f32 %v1028, %v1313
  %1315 = vmatmul.f32.gmra.mxu0 %v822
  %v1316 = vpop.f32.mrf.mxu0
  %v1317 = vadd.f32 %v1033, %v1316
  %1318 = vmatmul.f32.gmra.mxu0 %v826
  %v1319 = vpop.f32.mrf.mxu0
  %v1320 = vadd.f32 %v1038, %v1319
  %1321 = vmatmul.f32.gmra.mxu0 %v830
  %v1322 = vpop.f32.mrf.mxu0
  %v1323 = vadd.f32 %v1043, %v1322
  %1324 = vmatmul.f32.gmra.mxu0 %v834
  %v1325 = vpop.f32.mrf.mxu0
  %v1326 = vadd.f32 %v1048, %v1325
  %1327 = vmatmul.f32.gmra.mxu0 %v838
  %v1328 = vpop.f32.mrf.mxu0
  %v1329 = vadd.f32 %v1053, %v1328
  %1330 = vmatmul.f32.gmra.mxu0 %v842
  %v1331 = vpop.f32.mrf.mxu0
  %v1332 = vadd.f32 %v1058, %v1331
  %1333 = vmatmul.f32.gmra.mxu0 %v846
  %v1334 = vpop.f32.mrf.mxu0
  %v1335 = vadd.f32 %v1063, %v1334
  %1336 = vmatmul.f32.gmra.mxu0 %v850
  %v1337 = vpop.f32.mrf.mxu0
  %v1338 = vadd.f32 %v1068, %v1337
  %1339 = vmatmul.f32.gmra.mxu0 %v854
  %v1340 = vpop.f32.mrf.mxu0
  %v1341 = vadd.f32 %v1073, %v1340
  %1342 = vmatmul.f32.gmra.mxu0 %v858
  %v1343 = vpop.f32.mrf.mxu0
  %v1344 = vadd.f32 %v1078, %v1343
  %1345 = vmatmul.f32.gmra.mxu0 %v862
  %v1346 = vpop.f32.mrf.mxu0
  %v1347 = vadd.f32 %v1083, %v1346
  %1348 = vmatmul.f32.gmra.mxu0 %v866
  %v1349 = vpop.f32.mrf.mxu0
  %v1350 = vadd.f32 %v1088, %v1349
  %1351 = vmatmul.f32.gmra.mxu0 %v870
  %v1352 = vpop.f32.mrf.mxu0
  %v1353 = vadd.f32 %v1093, %v1352
  %1354 = vmatmul.f32.gmra.mxu0 %v874
  %v1355 = vpop.f32.mrf.mxu0
  %v1356 = vadd.f32 %v1098, %v1355
  %1357 = vmatmul.f32.gmra.mxu0 %v878
  %v1358 = vpop.f32.mrf.mxu0
  %v1359 = vadd.f32 %v1103, %v1358
  %1360 = vmatmul.f32.gmra.mxu0 %v882
  %v1361 = vpop.f32.mrf.mxu0
  %v1362 = vadd.f32 %v1108, %v1361
  %1363 = vmatmul.f32.gmra.mxu0 %v886
  %v1364 = vpop.f32.mrf.mxu0
  %v1365 = vadd.f32 %v1113, %v1364
  %1366 = vmatmul.f32.gmra.mxu0 %v890
  %v1367 = vpop.f32.mrf.mxu0
  %v1368 = vadd.f32 %v1118, %v1367
  %1369 = vmatmul.f32.gmra.mxu0 %v894
  %v1370 = vpop.f32.mrf.mxu0
  %v1371 = vadd.f32 %v1123, %v1370
  %1372 = vmatmul.f32.gmra.mxu0 %v898
  %v1373 = vpop.f32.mrf.mxu0
  %v1374 = vadd.f32 %v1128, %v1373
  %1375 = vdwg.mxu0
  %1376 = vmatpush.msra.mxu0 %v731
  %1377 = vmatpush.msra.mxu0 %v730
  %1378 = vmatpush.msra.mxu0 %v729
  %1379 = vmatpush.msra.mxu0 %v728
  %1380 = vmatpush.msra.mxu0 %v727
  %1381 = vmatpush.msra.mxu0 %v726
  %1382 = vmatpush.msra.mxu0 %v725
  %1383 = vmatpush.msra.mxu0 %v724
  %1384 = vmatpush.msra.mxu0 %v723
  %1385 = vmatpush.msra.mxu0 %v722
  %1386 = vmatpush.msra.mxu0 %v721
  %1387 = vmatpush.msra.mxu0 %v720
  %1388 = vmatpush.msra.mxu0 %v719
  %1389 = vmatpush.msra.mxu0 %v718
  %1390 = vmatpush.msra.mxu0 %v717
  %1391 = vmatpush.msra.mxu0 %v716
  %1392 = vmatmul.f32.gmra.mxu0 %v751
  %v1393 = vpop.f32.mrf.mxu0
  %v1394 = vadd.f32 %v1263, %v1393
  %1395 = vmatmul.f32.gmra.mxu0 %v755
  %v1396 = vpop.f32.mrf.mxu0
  %v1397 = vadd.f32 %v1266, %v1396
  %1398 = vmatmul.f32.gmra.mxu0 %v759
  %v1399 = vpop.f32.mrf.mxu0
  %v1400 = vadd.f32 %v1269, %v1399
  %1401 = vmatmul.f32.gmra.mxu0 %v763
  %v1402 = vpop.f32.mrf.mxu0
  %v1403 = vadd.f32 %v1272, %v1402
  %1404 = vmatmul.f32.gmra.mxu0 %v767
  %v1405 = vpop.f32.mrf.mxu0
  %v1406 = vadd.f32 %v1275, %v1405
  %1407 = vmatmul.f32.gmra.mxu0 %v771
  %v1408 = vpop.f32.mrf.mxu0
  %v1409 = vadd.f32 %v1278, %v1408
  %1410 = vmatmul.f32.gmra.mxu0 %v775
  %v1411 = vpop.f32.mrf.mxu0
  %v1412 = vadd.f32 %v1281, %v1411
  %1413 = vmatmul.f32.gmra.mxu0 %v779
  %v1414 = vpop.f32.mrf.mxu0
  %v1415 = vadd.f32 %v1284, %v1414
  %1416 = vmatmul.f32.gmra.mxu0 %v783
  %v1417 = vpop.f32.mrf.mxu0
  %v1418 = vadd.f32 %v1287, %v1417
  %1419 = vmatmul.f32.gmra.mxu0 %v787
  %v1420 = vpop.f32.mrf.mxu0
  %v1421 = vadd.f32 %v1290, %v1420
  %1422 = vmatmul.f32.gmra.mxu0 %v791
  %v1423 = vpop.f32.mrf.mxu0
  %v1424 = vadd.f32 %v1293, %v1423
  %1425 = vmatmul.f32.gmra.mxu0 %v795
  %v1426 = vpop.f32.mrf.mxu0
  %v1427 = vadd.f32 %v1296, %v1426
  %1428 = vmatmul.f32.gmra.mxu0 %v799
  %v1429 = vpop.f32.mrf.mxu0
  %v1430 = vadd.f32 %v1299, %v1429
  %1431 = vmatmul.f32.gmra.mxu0 %v803
  %v1432 = vpop.f32.mrf.mxu0
  %v1433 = vadd.f32 %v1302, %v1432
  %1434 = vmatmul.f32.gmra.mxu0 %v807
  %v1435 = vpop.f32.mrf.mxu0
  %v1436 = vadd.f32 %v1305, %v1435
  %1437 = vmatmul.f32.gmra.mxu0 %v811
  %v1438 = vpop.f32.mrf.mxu0
  %v1439 = vadd.f32 %v1308, %v1438
  %1440 = vmatmul.f32.gmra.mxu0 %v815
  %v1441 = vpop.f32.mrf.mxu0
  %v1442 = vadd.f32 %v1311, %v1441
  %1443 = vmatmul.f32.gmra.mxu0 %v819
  %v1444 = vpop.f32.mrf.mxu0
  %v1445 = vadd.f32 %v1314, %v1444
  %1446 = vmatmul.f32.gmra.mxu0 %v823
  %v1447 = vpop.f32.mrf.mxu0
  %v1448 = vadd.f32 %v1317, %v1447
  %1449 = vmatmul.f32.gmra.mxu0 %v827
  %v1450 = vpop.f32.mrf.mxu0
  %v1451 = vadd.f32 %v1320, %v1450
  %1452 = vmatmul.f32.gmra.mxu0 %v831
  %v1453 = vpop.f32.mrf.mxu0
  %v1454 = vadd.f32 %v1323, %v1453
  %1455 = vmatmul.f32.gmra.mxu0 %v835
  %v1456 = vpop.f32.mrf.mxu0
  %v1457 = vadd.f32 %v1326, %v1456
  %1458 = vmatmul.f32.gmra.mxu0 %v839
  %v1459 = vpop.f32.mrf.mxu0
  %v1460 = vadd.f32 %v1329, %v1459
  %1461 = vmatmul.f32.gmra.mxu0 %v843
  %v1462 = vpop.f32.mrf.mxu0
  %v1463 = vadd.f32 %v1332, %v1462
  %1464 = vmatmul.f32.gmra.mxu0 %v847
  %v1465 = vpop.f32.mrf.mxu0
  %v1466 = vadd.f32 %v1335, %v1465
  %1467 = vmatmul.f32.gmra.mxu0 %v851
  %v1468 = vpop.f32.mrf.mxu0
  %v1469 = vadd.f32 %v1338, %v1468
  %1470 = vmatmul.f32.gmra.mxu0 %v855
  %v1471 = vpop.f32.mrf.mxu0
  %v1472 = vadd.f32 %v1341, %v1471
  %1473 = vmatmul.f32.gmra.mxu0 %v859
  %v1474 = vpop.f32.mrf.mxu0
  %v1475 = vadd.f32 %v1344, %v1474
  %1476 = vmatmul.f32.gmra.mxu0 %v863
  %v1477 = vpop.f32.mrf.mxu0
  %v1478 = vadd.f32 %v1347, %v1477
  %1479 = vmatmul.f32.gmra.mxu0 %v867
  %v1480 = vpop.f32.mrf.mxu0
  %v1481 = vadd.f32 %v1350, %v1480
  %1482 = vmatmul.f32.gmra.mxu0 %v871
  %v1483 = vpop.f32.mrf.mxu0
  %v1484 = vadd.f32 %v1353, %v1483
  %1485 = vmatmul.f32.gmra.mxu0 %v875
  %v1486 = vpop.f32.mrf.mxu0
  %v1487 = vadd.f32 %v1356, %v1486
  %1488 = vmatmul.f32.gmra.mxu0 %v879
  %v1489 = vpop.f32.mrf.mxu0
  %v1490 = vadd.f32 %v1359, %v1489
  %1491 = vmatmul.f32.gmra.mxu0 %v883
  %v1492 = vpop.f32.mrf.mxu0
  %v1493 = vadd.f32 %v1362, %v1492
  %1494 = vmatmul.f32.gmra.mxu0 %v887
  %v1495 = vpop.f32.mrf.mxu0
  %v1496 = vadd.f32 %v1365, %v1495
  %1497 = vmatmul.f32.gmra.mxu0 %v891
  %v1498 = vpop.f32.mrf.mxu0
  %v1499 = vadd.f32 %v1368, %v1498
  %1500 = vmatmul.f32.gmra.mxu0 %v895
  %v1501 = vpop.f32.mrf.mxu0
  %v1502 = vadd.f32 %v1371, %v1501
  %1503 = vmatmul.f32.gmra.mxu0 %v899
  %v1504 = vpop.f32.mrf.mxu0
  %v1505 = vadd.f32 %v1374, %v1504
  %1506 = vdwg.mxu0
  %1507 = vmatpush.msra.mxu0 %v747
  %1508 = vmatpush.msra.mxu0 %v746
  %1509 = vmatpush.msra.mxu0 %v745
  %1510 = vmatpush.msra.mxu0 %v744
  %1511 = vmatpush.msra.mxu0 %v743
  %1512 = vmatpush.msra.mxu0 %v742
  %1513 = vmatpush.msra.mxu0 %v741
  %1514 = vmatpush.msra.mxu0 %v740
  %1515 = vmatpush.msra.mxu0 %v739
  %1516 = vmatpush.msra.mxu0 %v738
  %1517 = vmatpush.msra.mxu0 %v737
  %1518 = vmatpush.msra.mxu0 %v736
  %1519 = vmatpush.msra.mxu0 %v735
  %1520 = vmatpush.msra.mxu0 %v734
  %1521 = vmatpush.msra.mxu0 %v733
  %1522 = vmatpush.msra.mxu0 %v732
  %1523 = vmatmul.f32.gmra.mxu0 %v752
  %v1524 = vpop.f32.mrf.mxu0
  %v1525 = vadd.f32 %v1394, %v1524
  %1526 = vmatmul.f32.gmra.mxu0 %v756
  %v1527 = vpop.f32.mrf.mxu0
  %v1528 = vadd.f32 %v1397, %v1527
  %1529 = vmatmul.f32.gmra.mxu0 %v760
  %v1530 = vpop.f32.mrf.mxu0
  %v1531 = vadd.f32 %v1400, %v1530
  %1532 = vmatmul.f32.gmra.mxu0 %v764
  %v1533 = vpop.f32.mrf.mxu0
  %v1534 = vadd.f32 %v1403, %v1533
  %1535 = vmatmul.f32.gmra.mxu0 %v768
  %v1536 = vpop.f32.mrf.mxu0
  %v1537 = vadd.f32 %v1406, %v1536
  %1538 = vmatmul.f32.gmra.mxu0 %v772
  %v1539 = vpop.f32.mrf.mxu0
  %v1540 = vadd.f32 %v1409, %v1539
  %1541 = vmatmul.f32.gmra.mxu0 %v776
  %v1542 = vpop.f32.mrf.mxu0
  %v1543 = vadd.f32 %v1412, %v1542
  %1544 = vmatmul.f32.gmra.mxu0 %v780
  %v1545 = vpop.f32.mrf.mxu0
  %v1546 = vadd.f32 %v1415, %v1545
  %1547 = vmatmul.f32.gmra.mxu0 %v784
  %v1548 = vpop.f32.mrf.mxu0
  %v1549 = vadd.f32 %v1418, %v1548
  %1550 = vmatmul.f32.gmra.mxu0 %v788
  %v1551 = vpop.f32.mrf.mxu0
  %v1552 = vadd.f32 %v1421, %v1551
  %1553 = vmatmul.f32.gmra.mxu0 %v792
  %v1554 = vpop.f32.mrf.mxu0
  %v1555 = vadd.f32 %v1424, %v1554
  %1556 = vmatmul.f32.gmra.mxu0 %v796
  %v1557 = vpop.f32.mrf.mxu0
  %v1558 = vadd.f32 %v1427, %v1557
  %1559 = vmatmul.f32.gmra.mxu0 %v800
  %v1560 = vpop.f32.mrf.mxu0
  %v1561 = vadd.f32 %v1430, %v1560
  %1562 = vmatmul.f32.gmra.mxu0 %v804
  %v1563 = vpop.f32.mrf.mxu0
  %v1564 = vadd.f32 %v1433, %v1563
  %1565 = vmatmul.f32.gmra.mxu0 %v808
  %v1566 = vpop.f32.mrf.mxu0
  %v1567 = vadd.f32 %v1436, %v1566
  %1568 = vmatmul.f32.gmra.mxu0 %v812
  %v1569 = vpop.f32.mrf.mxu0
  %v1570 = vadd.f32 %v1439, %v1569
  %1571 = vmatmul.f32.gmra.mxu0 %v816
  %v1572 = vpop.f32.mrf.mxu0
  %v1573 = vadd.f32 %v1442, %v1572
  %1574 = vmatmul.f32.gmra.mxu0 %v820
  %v1575 = vpop.f32.mrf.mxu0
  %v1576 = vadd.f32 %v1445, %v1575
  %1577 = vmatmul.f32.gmra.mxu0 %v824
  %v1578 = vpop.f32.mrf.mxu0
  %v1579 = vadd.f32 %v1448, %v1578
  %1580 = vmatmul.f32.gmra.mxu0 %v828
  %v1581 = vpop.f32.mrf.mxu0
  %v1582 = vadd.f32 %v1451, %v1581
  %1583 = vmatmul.f32.gmra.mxu0 %v832
  %v1584 = vpop.f32.mrf.mxu0
  %v1585 = vadd.f32 %v1454, %v1584
  %1586 = vmatmul.f32.gmra.mxu0 %v836
  %v1587 = vpop.f32.mrf.mxu0
  %v1588 = vadd.f32 %v1457, %v1587
  %1589 = vmatmul.f32.gmra.mxu0 %v840
  %v1590 = vpop.f32.mrf.mxu0
  %v1591 = vadd.f32 %v1460, %v1590
  %1592 = vmatmul.f32.gmra.mxu0 %v844
  %v1593 = vpop.f32.mrf.mxu0
  %v1594 = vadd.f32 %v1463, %v1593
  %1595 = vmatmul.f32.gmra.mxu0 %v848
  %v1596 = vpop.f32.mrf.mxu0
  %v1597 = vadd.f32 %v1466, %v1596
  %1598 = vmatmul.f32.gmra.mxu0 %v852
  %v1599 = vpop.f32.mrf.mxu0
  %v1600 = vadd.f32 %v1469, %v1599
  %1601 = vmatmul.f32.gmra.mxu0 %v856
  %v1602 = vpop.f32.mrf.mxu0
  %v1603 = vadd.f32 %v1472, %v1602
  %1604 = vmatmul.f32.gmra.mxu0 %v860
  %v1605 = vpop.f32.mrf.mxu0
  %v1606 = vadd.f32 %v1475, %v1605
  %1607 = vmatmul.f32.gmra.mxu0 %v864
  %v1608 = vpop.f32.mrf.mxu0
  %v1609 = vadd.f32 %v1478, %v1608
  %1610 = vmatmul.f32.gmra.mxu0 %v868
  %v1611 = vpop.f32.mrf.mxu0
  %v1612 = vadd.f32 %v1481, %v1611
  %1613 = vmatmul.f32.gmra.mxu0 %v872
  %v1614 = vpop.f32.mrf.mxu0
  %v1615 = vadd.f32 %v1484, %v1614
  %1616 = vmatmul.f32.gmra.mxu0 %v876
  %v1617 = vpop.f32.mrf.mxu0
  %v1618 = vadd.f32 %v1487, %v1617
  %1619 = vmatmul.f32.gmra.mxu0 %v880
  %v1620 = vpop.f32.mrf.mxu0
  %v1621 = vadd.f32 %v1490, %v1620
  %1622 = vmatmul.f32.gmra.mxu0 %v884
  %v1623 = vpop.f32.mrf.mxu0
  %v1624 = vadd.f32 %v1493, %v1623
  %1625 = vmatmul.f32.gmra.mxu0 %v888
  %v1626 = vpop.f32.mrf.mxu0
  %v1627 = vadd.f32 %v1496, %v1626
  %1628 = vmatmul.f32.gmra.mxu0 %v892
  %v1629 = vpop.f32.mrf.mxu0
  %v1630 = vadd.f32 %v1499, %v1629
  %1631 = vmatmul.f32.gmra.mxu0 %v896
  %v1632 = vpop.f32.mrf.mxu0
  %v1633 = vadd.f32 %v1502, %v1632
  %1634 = vmatmul.f32.gmra.mxu0 %v900
  %v1635 = vpop.f32.mrf.mxu0
  %v1636 = vadd.f32 %v1505, %v1635
  %1637 = vdwg.mxu0
  %1638 = vmatpush.msra.mxu0 0.0
  %1639 = vmatpush.msra.mxu0 0.0
  %1640 = vmatpush.msra.mxu0 0.0
  %1641 = vmatpush.msra.mxu0 0.0
  %1642 = vmatpush.msra.mxu0 0.0
  %1643 = vmatpush.msra.mxu0 0.0
  %1644 = vmatpush.msra.mxu0 0.0
  %1645 = vmatpush.msra.mxu0 0.0
  %1646 = vmatpush.msra.mxu0 0.0
  %1647 = vmatpush.msra.mxu0 0.0
  %1648 = vmatpush.msra.mxu0 0.0
  %1649 = vmatpush.msra.mxu0 0.0
  %1650 = vmatpush.msra.mxu0 0.0
  %1651 = vmatpush.msra.mxu0 0.0
  %1652 = vmatpush.msra.mxu0 %v749
  %1653 = vmatpush.msra.mxu0 %v748
  %1654 = vmatmul.f32.gmra.mxu0 %v1132
  %v1655 = vpop.f32.mrf.mxu0
  %v1656 = vadd.f32 %v1525, %v1655
  %1657 = vmatmul.f32.gmra.mxu0 %v1135
  %v1658 = vpop.f32.mrf.mxu0
  %v1659 = vadd.f32 %v1528, %v1658
  %1660 = vmatmul.f32.gmra.mxu0 %v1138
  %v1661 = vpop.f32.mrf.mxu0
  %v1662 = vadd.f32 %v1531, %v1661
  %1663 = vmatmul.f32.gmra.mxu0 %v1141
  %v1664 = vpop.f32.mrf.mxu0
  %v1665 = vadd.f32 %v1534, %v1664
  %1666 = vmatmul.f32.gmra.mxu0 %v1144
  %v1667 = vpop.f32.mrf.mxu0
  %v1668 = vadd.f32 %v1537, %v1667
  %1669 = vmatmul.f32.gmra.mxu0 %v1147
  %v1670 = vpop.f32.mrf.mxu0
  %v1671 = vadd.f32 %v1540, %v1670
  %1672 = vmatmul.f32.gmra.mxu0 %v1150
  %v1673 = vpop.f32.mrf.mxu0
  %v1674 = vadd.f32 %v1543, %v1673
  %1675 = vmatmul.f32.gmra.mxu0 %v1153
  %v1676 = vpop.f32.mrf.mxu0
  %v1677 = vadd.f32 %v1546, %v1676
  %1678 = vmatmul.f32.gmra.mxu0 %v1156
  %v1679 = vpop.f32.mrf.mxu0
  %v1680 = vadd.f32 %v1549, %v1679
  %1681 = vmatmul.f32.gmra.mxu0 %v1159
  %v1682 = vpop.f32.mrf.mxu0
  %v1683 = vadd.f32 %v1552, %v1682
  %1684 = vmatmul.f32.gmra.mxu0 %v1162
  %v1685 = vpop.f32.mrf.mxu0
  %v1686 = vadd.f32 %v1555, %v1685
  %1687 = vmatmul.f32.gmra.mxu0 %v1165
  %v1688 = vpop.f32.mrf.mxu0
  %v1689 = vadd.f32 %v1558, %v1688
  %1690 = vmatmul.f32.gmra.mxu0 %v1168
  %v1691 = vpop.f32.mrf.mxu0
  %v1692 = vadd.f32 %v1561, %v1691
  %1693 = vmatmul.f32.gmra.mxu0 %v1171
  %v1694 = vpop.f32.mrf.mxu0
  %v1695 = vadd.f32 %v1564, %v1694
  %1696 = vmatmul.f32.gmra.mxu0 %v1174
  %v1697 = vpop.f32.mrf.mxu0
  %v1698 = vadd.f32 %v1567, %v1697
  %1699 = vmatmul.f32.gmra.mxu0 %v1177
  %v1700 = vpop.f32.mrf.mxu0
  %v1701 = vadd.f32 %v1570, %v1700
  %1702 = vmatmul.f32.gmra.mxu0 %v1180
  %v1703 = vpop.f32.mrf.mxu0
  %v1704 = vadd.f32 %v1573, %v1703
  %1705 = vmatmul.f32.gmra.mxu0 %v1183
  %v1706 = vpop.f32.mrf.mxu0
  %v1707 = vadd.f32 %v1576, %v1706
  %1708 = vmatmul.f32.gmra.mxu0 %v1186
  %v1709 = vpop.f32.mrf.mxu0
  %v1710 = vadd.f32 %v1579, %v1709
  %1711 = vmatmul.f32.gmra.mxu0 %v1189
  %v1712 = vpop.f32.mrf.mxu0
  %v1713 = vadd.f32 %v1582, %v1712
  %1714 = vmatmul.f32.gmra.mxu0 %v1192
  %v1715 = vpop.f32.mrf.mxu0
  %v1716 = vadd.f32 %v1585, %v1715
  %1717 = vmatmul.f32.gmra.mxu0 %v1195
  %v1718 = vpop.f32.mrf.mxu0
  %v1719 = vadd.f32 %v1588, %v1718
  %1720 = vmatmul.f32.gmra.mxu0 %v1198
  %v1721 = vpop.f32.mrf.mxu0
  %v1722 = vadd.f32 %v1591, %v1721
  %1723 = vmatmul.f32.gmra.mxu0 %v1201
  %v1724 = vpop.f32.mrf.mxu0
  %v1725 = vadd.f32 %v1594, %v1724
  %1726 = vmatmul.f32.gmra.mxu0 %v1204
  %v1727 = vpop.f32.mrf.mxu0
  %v1728 = vadd.f32 %v1597, %v1727
  %1729 = vmatmul.f32.gmra.mxu0 %v1207
  %v1730 = vpop.f32.mrf.mxu0
  %v1731 = vadd.f32 %v1600, %v1730
  %1732 = vmatmul.f32.gmra.mxu0 %v1210
  %v1733 = vpop.f32.mrf.mxu0
  %v1734 = vadd.f32 %v1603, %v1733
  %1735 = vmatmul.f32.gmra.mxu0 %v1213
  %v1736 = vpop.f32.mrf.mxu0
  %v1737 = vadd.f32 %v1606, %v1736
  %1738 = vmatmul.f32.gmra.mxu0 %v1216
  %v1739 = vpop.f32.mrf.mxu0
  %v1740 = vadd.f32 %v1609, %v1739
  %1741 = vmatmul.f32.gmra.mxu0 %v1219
  %v1742 = vpop.f32.mrf.mxu0
  %v1743 = vadd.f32 %v1612, %v1742
  %1744 = vmatmul.f32.gmra.mxu0 %v1222
  %v1745 = vpop.f32.mrf.mxu0
  %v1746 = vadd.f32 %v1615, %v1745
  %1747 = vmatmul.f32.gmra.mxu0 %v1225
  %v1748 = vpop.f32.mrf.mxu0
  %v1749 = vadd.f32 %v1618, %v1748
  %1750 = vmatmul.f32.gmra.mxu0 %v1228
  %v1751 = vpop.f32.mrf.mxu0
  %v1752 = vadd.f32 %v1621, %v1751
  %1753 = vmatmul.f32.gmra.mxu0 %v1231
  %v1754 = vpop.f32.mrf.mxu0
  %v1755 = vadd.f32 %v1624, %v1754
  %1756 = vmatmul.f32.gmra.mxu0 %v1234
  %v1757 = vpop.f32.mrf.mxu0
  %v1758 = vadd.f32 %v1627, %v1757
  %1759 = vmatmul.f32.gmra.mxu0 %v1237
  %v1760 = vpop.f32.mrf.mxu0
  %v1761 = vadd.f32 %v1630, %v1760
  %1762 = vmatmul.f32.gmra.mxu0 %v1240
  %v1763 = vpop.f32.mrf.mxu0
  %v1764 = vadd.f32 %v1633, %v1763
  %1765 = vmatmul.f32.gmra.mxu0 %v1243
  %v1766 = vpop.f32.mrf.mxu0
  %v1767 = vadd.f32 %v1636, %v1766
  %1768 = vdwg.mxu0
  %v1769 = vmax.f32 %v1656, 0.0
  %v1770 = vmax.f32 %v1659, 0.0
  %v1771 = vmax.f32 %v1662, 0.0
  %v1772 = vmax.f32 %v1665, 0.0
  %v1773 = vmax.f32 %v1668, 0.0
  %v1774 = vmax.f32 %v1671, 0.0
  %v1775 = vmax.f32 %v1674, 0.0
  %v1776 = vmax.f32 %v1677, 0.0
  %v1777 = vmax.f32 %v1680, 0.0
  %v1778 = vmax.f32 %v1683, 0.0
  %v1779 = vmax.f32 %v1686, 0.0
  %v1780 = vmax.f32 %v1689, 0.0
  %v1781 = vmax.f32 %v1692, 0.0
  %v1782 = vmax.f32 %v1695, 0.0
  %v1783 = vmax.f32 %v1698, 0.0
  %v1784 = vmax.f32 %v1701, 0.0
  %v1785 = vmax.f32 %v1704, 0.0
  %v1786 = vmax.f32 %v1707, 0.0
  %v1787 = vmax.f32 %v1710, 0.0
  %v1788 = vmax.f32 %v1713, 0.0
  %v1789 = vmax.f32 %v1716, 0.0
  %v1790 = vmax.f32 %v1719, 0.0
  %v1791 = vmax.f32 %v1722, 0.0
  %v1792 = vmax.f32 %v1725, 0.0
  %v1793 = vmax.f32 %v1728, 0.0
  %v1794 = vmax.f32 %v1731, 0.0
  %v1795 = vmax.f32 %v1734, 0.0
  %v1796 = vmax.f32 %v1737, 0.0
  %v1797 = vmax.f32 %v1740, 0.0
  %v1798 = vmax.f32 %v1743, 0.0
  %v1799 = vmax.f32 %v1746, 0.0
  %v1800 = vmax.f32 %v1749, 0.0
  %v1801 = vmax.f32 %v1752, 0.0
  %v1802 = vmax.f32 %v1755, 0.0
  %v1803 = vmax.f32 %v1758, 0.0
  %v1804 = vmax.f32 %v1761, 0.0
  %v1805 = vmax.f32 %v1764, 0.0
  %v1806 = vmax.f32 %v1767, 0.0
  %v1807 = vld [vmem:[%s5] sm:$0xff]
  %v1808 = vld [vmem:[%s5 + $0x8] sm:$0xff]
  %v1809 = vld [vmem:[%s5 + $0x10] sm:$0xff]
  %v1810 = vld [vmem:[%s5 + $0x18] sm:$0xff]
  %v1811 = vld [vmem:[%s5 + $0x20] sm:$0xff]
  %v1812 = vld [vmem:[%s5 + $0x28] sm:$0xff]
  %v1813 = vld [vmem:[%s5 + $0x30] sm:$0xff]
  %v1814 = vld [vmem:[%s5 + $0x38] sm:$0xff]
  %v1815 = vld [vmem:[%s5 + $0x40] sm:$0xff]
  %v1816 = vld [vmem:[%s5 + $0x48] sm:$0xff]
  %v1817 = vld [vmem:[%s5 + $0x50] sm:$0xff]
  %v1818 = vld [vmem:[%s5 + $0x58] sm:$0xff]
  %v1819 = vld [vmem:[%s5 + $0x60] sm:$0xff]
  %v1820 = vld [vmem:[%s5 + $0x68] sm:$0xff]
  %v1821 = vld [vmem:[%s5 + $0x70] sm:$0xff]
  %v1822 = vld [vmem:[%s5 + $0x78] sm:$0xff]
  %v1823 = vld [vmem:[%s5 + $0x80] sm:$0xff]
  %v1824 = vld [vmem:[%s5 + $0x88] sm:$0xff]
  %v1825 = vld [vmem:[%s5 + $0x90] sm:$0xff]
  %v1826 = vld [vmem:[%s5 + $0x98] sm:$0xff]
  %v1827 = vld [vmem:[%s5 + $0xa0] sm:$0xff]
  %v1828 = vld [vmem:[%s5 + $0xa8] sm:$0xff]
  %v1829 = vld [vmem:[%s5 + $0xb0] sm:$0xff]
  %v1830 = vld [vmem:[%s5 + $0xb8] sm:$0xff]
  %v1831 = vld [vmem:[%s5 + $0xc0] sm:$0xff]
  %v1832 = vld [vmem:[%s5 + $0xc8] sm:$0xff]
  %v1833 = vld [vmem:[%s5 + $0xd0] sm:$0xff]
  %v1834 = vld [vmem:[%s5 + $0xd8] sm:$0xff]
  %v1835 = vld [vmem:[%s5 + $0xe0] sm:$0xff]
  %v1836 = vld [vmem:[%s5 + $0xe8] sm:$0xff]
  %v1837 = vld [vmem:[%s5 + $0xf0] sm:$0xff]
  %v1838 = vld [vmem:[%s5 + $0xf8] sm:$0xff]
  %v1839 = vld [vmem:[%s5 + $0x100] sm:$0xff]
  %v1840 = vld [vmem:[%s5 + $0x108] sm:$0xff]
  %v1841 = vld [vmem:[%s5 + $0x110] sm:$0xff]
  %v1842 = vld [vmem:[%s5 + $0x118] sm:$0xff]
  %v1843 = vld [vmem:[%s5 + $0x120] sm:$0xff]
  %v1844 = vld [vmem:[%s5 + $0x128] sm:$0xf]
  %1846 = vset.pattern.permute.xlu0 0
  %1847 = vperm.xlu0 %1846, %v1807
  %v1848 = vpop.permute.xlu0 %1847
  %1851 = vset.pattern.permute.xlu0 0
  %1852 = vperm.xlu0 %1851, %v1808
  %v1853 = vpop.permute.xlu0 %1852
  %1856 = vset.pattern.permute.xlu0 0
  %1857 = vperm.xlu0 %1856, %v1809
  %v1858 = vpop.permute.xlu0 %1857
  %1861 = vset.pattern.permute.xlu0 0
  %1862 = vperm.xlu0 %1861, %v1810
  %v1863 = vpop.permute.xlu0 %1862
  %1866 = vset.pattern.permute.xlu0 0
  %1867 = vperm.xlu0 %1866, %v1811
  %v1868 = vpop.permute.xlu0 %1867
  %1871 = vset.pattern.permute.xlu0 0
  %1872 = vperm.xlu0 %1871, %v1812
  %v1873 = vpop.permute.xlu0 %1872
  %1876 = vset.pattern.permute.xlu0 0
  %1877 = vperm.xlu0 %1876, %v1813
  %v1878 = vpop.permute.xlu0 %1877
  %1881 = vset.pattern.permute.xlu0 0
  %1882 = vperm.xlu0 %1881, %v1814
  %v1883 = vpop.permute.xlu0 %1882
  %1886 = vset.pattern.permute.xlu0 0
  %1887 = vperm.xlu0 %1886, %v1815
  %v1888 = vpop.permute.xlu0 %1887
  %1891 = vset.pattern.permute.xlu0 0
  %1892 = vperm.xlu0 %1891, %v1816
  %v1893 = vpop.permute.xlu0 %1892
  %1896 = vset.pattern.permute.xlu0 0
  %1897 = vperm.xlu0 %1896, %v1817
  %v1898 = vpop.permute.xlu0 %1897
  %1901 = vset.pattern.permute.xlu0 0
  %1902 = vperm.xlu0 %1901, %v1818
  %v1903 = vpop.permute.xlu0 %1902
  %1906 = vset.pattern.permute.xlu0 0
  %1907 = vperm.xlu0 %1906, %v1819
  %v1908 = vpop.permute.xlu0 %1907
  %1911 = vset.pattern.permute.xlu0 0
  %1912 = vperm.xlu0 %1911, %v1820
  %v1913 = vpop.permute.xlu0 %1912
  %1916 = vset.pattern.permute.xlu0 0
  %1917 = vperm.xlu0 %1916, %v1821
  %v1918 = vpop.permute.xlu0 %1917
  %1921 = vset.pattern.permute.xlu0 0
  %1922 = vperm.xlu0 %1921, %v1822
  %v1923 = vpop.permute.xlu0 %1922
  %1926 = vset.pattern.permute.xlu0 0
  %1927 = vperm.xlu0 %1926, %v1823
  %v1928 = vpop.permute.xlu0 %1927
  %1931 = vset.pattern.permute.xlu0 0
  %1932 = vperm.xlu0 %1931, %v1824
  %v1933 = vpop.permute.xlu0 %1932
  %1936 = vset.pattern.permute.xlu0 0
  %1937 = vperm.xlu0 %1936, %v1825
  %v1938 = vpop.permute.xlu0 %1937
  %1941 = vset.pattern.permute.xlu0 0
  %1942 = vperm.xlu0 %1941, %v1826
  %v1943 = vpop.permute.xlu0 %1942
  %1946 = vset.pattern.permute.xlu0 0
  %1947 = vperm.xlu0 %1946, %v1827
  %v1948 = vpop.permute.xlu0 %1947
  %1951 = vset.pattern.permute.xlu0 0
  %1952 = vperm.xlu0 %1951, %v1828
  %v1953 = vpop.permute.xlu0 %1952
  %1956 = vset.pattern.permute.xlu0 0
  %1957 = vperm.xlu0 %1956, %v1829
  %v1958 = vpop.permute.xlu0 %1957
  %1961 = vset.pattern.permute.xlu0 0
  %1962 = vperm.xlu0 %1961, %v1830
  %v1963 = vpop.permute.xlu0 %1962
  %1966 = vset.pattern.permute.xlu0 0
  %1967 = vperm.xlu0 %1966, %v1831
  %v1968 = vpop.permute.xlu0 %1967
  %1971 = vset.pattern.permute.xlu0 0
  %1972 = vperm.xlu0 %1971, %v1832
  %v1973 = vpop.permute.xlu0 %1972
  %1976 = vset.pattern.permute.xlu0 0
  %1977 = vperm.xlu0 %1976, %v1833
  %v1978 = vpop.permute.xlu0 %1977
  %1981 = vset.pattern.permute.xlu0 0
  %1982 = vperm.xlu0 %1981, %v1834
  %v1983 = vpop.permute.xlu0 %1982
  %1986 = vset.pattern.permute.xlu0 0
  %1987 = vperm.xlu0 %1986, %v1835
  %v1988 = vpop.permute.xlu0 %1987
  %1991 = vset.pattern.permute.xlu0 0
  %1992 = vperm.xlu0 %1991, %v1836
  %v1993 = vpop.permute.xlu0 %1992
  %1996 = vset.pattern.permute.xlu0 0
  %1997 = vperm.xlu0 %1996, %v1837
  %v1998 = vpop.permute.xlu0 %1997
  %2001 = vset.pattern.permute.xlu0 0
  %2002 = vperm.xlu0 %2001, %v1838
  %v2003 = vpop.permute.xlu0 %2002
  %2006 = vset.pattern.permute.xlu0 0
  %2007 = vperm.xlu0 %2006, %v1839
  %v2008 = vpop.permute.xlu0 %2007
  %2011 = vset.pattern.permute.xlu0 0
  %2012 = vperm.xlu0 %2011, %v1840
  %v2013 = vpop.permute.xlu0 %2012
  %2016 = vset.pattern.permute.xlu0 0
  %2017 = vperm.xlu0 %2016, %v1841
  %v2018 = vpop.permute.xlu0 %2017
  %2021 = vset.pattern.permute.xlu0 0
  %2022 = vperm.xlu0 %2021, %v1842
  %v2023 = vpop.permute.xlu0 %2022
  %2026 = vset.pattern.permute.xlu0 0
  %2027 = vperm.xlu0 %2026, %v1843
  %v2028 = vpop.permute.xlu0 %2027
  %2031 = vset.pattern.permute.xlu0 0
  %2032 = vperm.xlu0 %2031, %v1844
  %v2033 = vpop.permute.xlu0 %2032
  %v2035 = vmul.f32 %v1769, %v1848
  %v2036 = vmul.f32 %v1770, %v1853
  %v2037 = vmul.f32 %v1771, %v1858
  %v2038 = vmul.f32 %v1772, %v1863
  %v2039 = vmul.f32 %v1773, %v1868
  %v2040 = vmul.f32 %v1774, %v1873
  %v2041 = vmul.f32 %v1775, %v1878
  %v2042 = vmul.f32 %v1776, %v1883
  %v2043 = vmul.f32 %v1777, %v1888
  %v2044 = vmul.f32 %v1778, %v1893
  %v2045 = vmul.f32 %v1779, %v1898
  %v2046 = vmul.f32 %v1780, %v1903
  %v2047 = vmul.f32 %v1781, %v1908
  %v2048 = vmul.f32 %v1782, %v1913
  %v2049 = vmul.f32 %v1783, %v1918
  %v2050 = vmul.f32 %v1784, %v1923
  %v2051 = vmul.f32 %v1785, %v1928
  %v2052 = vmul.f32 %v1786, %v1933
  %v2053 = vmul.f32 %v1787, %v1938
  %v2054 = vmul.f32 %v1788, %v1943
  %v2055 = vmul.f32 %v1789, %v1948
  %v2056 = vmul.f32 %v1790, %v1953
  %v2057 = vmul.f32 %v1791, %v1958
  %v2058 = vmul.f32 %v1792, %v1963
  %v2059 = vmul.f32 %v1793, %v1968
  %v2060 = vmul.f32 %v1794, %v1973
  %v2061 = vmul.f32 %v1795, %v1978
  %v2062 = vmul.f32 %v1796, %v1983
  %v2063 = vmul.f32 %v1797, %v1988
  %v2064 = vmul.f32 %v1798, %v1993
  %v2065 = vmul.f32 %v1799, %v1998
  %v2066 = vmul.f32 %v1800, %v2003
  %v2067 = vmul.f32 %v1801, %v2008
  %v2068 = vmul.f32 %v1802, %v2013
  %v2069 = vmul.f32 %v1803, %v2018
  %v2070 = vmul.f32 %v1804, %v2023
  %v2071 = vmul.f32 %v1805, %v2028
  %v2072 = vmul.f32 %v1806, %v2033
  %v2073 = vadd.f32 %v2035, %v2036
  %v2074 = vadd.f32 %v2073, %v2037
  %v2075 = vadd.f32 %v2074, %v2038
  %v2076 = vadd.f32 %v2075, %v2039
  %v2077 = vadd.f32 %v2076, %v2040
  %v2078 = vadd.f32 %v2077, %v2041
  %v2079 = vadd.f32 %v2078, %v2042
  %v2080 = vadd.f32 %v2079, %v2043
  %v2081 = vadd.f32 %v2080, %v2044
  %v2082 = vadd.f32 %v2081, %v2045
  %v2083 = vadd.f32 %v2082, %v2046
  %v2084 = vadd.f32 %v2083, %v2047
  %v2085 = vadd.f32 %v2084, %v2048
  %v2086 = vadd.f32 %v2085, %v2049
  %v2087 = vadd.f32 %v2086, %v2050
  %v2088 = vadd.f32 %v2087, %v2051
  %v2089 = vadd.f32 %v2088, %v2052
  %v2090 = vadd.f32 %v2089, %v2053
  %v2091 = vadd.f32 %v2090, %v2054
  %v2092 = vadd.f32 %v2091, %v2055
  %v2093 = vadd.f32 %v2092, %v2056
  %v2094 = vadd.f32 %v2093, %v2057
  %v2095 = vadd.f32 %v2094, %v2058
  %v2096 = vadd.f32 %v2095, %v2059
  %v2097 = vadd.f32 %v2096, %v2060
  %v2098 = vadd.f32 %v2097, %v2061
  %v2099 = vadd.f32 %v2098, %v2062
  %v2100 = vadd.f32 %v2099, %v2063
  %v2101 = vadd.f32 %v2100, %v2064
  %v2102 = vadd.f32 %v2101, %v2065
  %v2103 = vadd.f32 %v2102, %v2066
  %v2104 = vadd.f32 %v2103, %v2067
  %v2105 = vadd.f32 %v2104, %v2068
  %v2106 = vadd.f32 %v2105, %v2069
  %v2107 = vadd.f32 %v2106, %v2070
  %v2108 = vadd.f32 %v2107, %v2071
  %v2109 = vsel %vm529, %v2072, 0.0
  %v2110 = vadd.f32 %v2108, %v2109
  %v2111 = vrot.slane %v2110, 4
  %v2112 = vadd.f32 %v2110, %v2111
  %v2113 = vrot.slane %v2112, 2
  %v2114 = vadd.f32 %v2112, %v2113
  %v2115 = vrot.slane %v2114, 1
  %v2116 = vadd.f32 %v2114, %v2115
  %s2117 = sld [smem:[#allocation2]]
  %v2118 = vstv %s2117
  %v2119 = vadd.f32 %v2116, %v2118
  %v2120 = vtanh.pop %v2119
  %v2121 = vmul.f32 %v2120, 60.0
  %2122 = vst [vmem:[%s7] sm:$0x1] %v2121
  // Predicated region
  $region30: #{_actor_forward.1} parent=0 // pred_check
    _
  $region31: #{_actor_forward.1} parent=0 // pred_check_branch
    %2124 = sbr.rel (0) target = $region33
  $region32: #{_actor_forward.1} parent=0 // pred_region
    _
  $region33: #{_actor_forward.1} parent=0 // pred_fallthru
    _
  // Predicated region
  $region34: #{_actor_forward.1} parent=0 // pred_check
    _
  $region35: #{_actor_forward.1} parent=0 // pred_check_branch
    %2126 = sbr.rel (0) target = $region37
  $region36: #{_actor_forward.1} parent=0 // pred_region
    _
  $region37: #{_actor_forward.1} parent=0 // pred_fallthru
    _

// kernel: _actor_forward.1
$region0: #{_actor_forward.1}
  #allocation0 [shape = 'u32[]', space=smem, size = 0x4, offset = 0x4, fixed_abs, tag = 'smem constant byte address 0x4 - core index']
  #allocation1 [shape = 'u32[72,128]{1,0:T(1,128)}', space=vmem, size = 0x9000, scoped, tag = 'internal scratch']
  #allocation2 [shape = 'f32[1,1]{1,0:T(1,128)S(6)}', space=smem, size = 0x200, scoped, tag = 'scoped memory for _actor_forward.1']
  %s0 = inlined_call_operand.vmem [shape: f32[4,128], index: 0, kind: input, shape index: {}]
  %s1 = inlined_call_operand.vmem [shape: f32[400,4], index: 1, kind: input, shape index: {}]
  %s2 = inlined_call_operand.vmem [shape: f32[400,1], index: 2, kind: input, shape index: {}]
  %s3 = inlined_call_operand.vmem [shape: f32[300,400], index: 3, kind: input, shape index: {}]
  %s4 = inlined_call_operand.vmem [shape: f32[300,1], index: 4, kind: input, shape index: {}]
  %s5 = inlined_call_operand.vmem [shape: f32[300,1], index: 5, kind: input, shape index: {}]
  %s6 = inlined_call_operand.<no memory space> [shape: f32[1,1], index: 6, kind: input, shape index: {}]
  %s7 = inlined_call_operand.vmem [shape: f32[1,128], index: 7, kind: output, shape index: {}]
  %s8 = sld [smem:[#allocation0]]
  $region38: #{_actor_forward.1} parent=0
    _
  %s10 = ssub.s32 1, %s8
  %s11 = scalar_select 0, %s10, %s8
  %12 = sst [smem:[#allocation2]] %s6
  // Predicated region
  $region2: #{_actor_forward.1} parent=0 // pred_check
    _
  $region3: #{_actor_forward.1} parent=0 // pred_check_branch
    %14 = sbr.rel (0) target = $region5
  $region4: #{_actor_forward.1} parent=0 // pred_region
    _
  $region5: #{_actor_forward.1} parent=0 // pred_fallthru
    _
  // Predicated region
  $region6: #{_actor_forward.1} parent=0 // pred_check
    _
  $region7: #{_actor_forward.1} parent=0 // pred_check_branch
    %16 = sbr.rel (0) target = $region9
  $region8: #{_actor_forward.1} parent=0 // pred_region
    _
  $region9: #{_actor_forward.1} parent=0 // pred_fallthru
    _
  // Predicated region
  $region10: #{_actor_forward.1} parent=0 // pred_check
    _
  $region11: #{_actor_forward.1} parent=0 // pred_check_branch
    %18 = sbr.rel (0) target = $region13
  $region12: #{_actor_forward.1} parent=0 // pred_region
    _
  $region13: #{_actor_forward.1} parent=0 // pred_fallthru
    _
  // Predicated region
  $region14: #{_actor_forward.1} parent=0 // pred_check
    _
  $region15: #{_actor_forward.1} parent=0 // pred_check_branch
    %20 = sbr.rel (0) target = $region17
  $region16: #{_actor_forward.1} parent=0 // pred_region
    _
  $region17: #{_actor_forward.1} parent=0 // pred_fallthru
    _
  // Predicated region
  $region18: #{_actor_forward.1} parent=0 // pred_check
    _
  $region19: #{_actor_forward.1} parent=0 // pred_check_branch
    %22 = sbr.rel (0) target = $region21
  $region20: #{_actor_forward.1} parent=0 // pred_region
    _
  $region21: #{_actor_forward.1} parent=0 // pred_fallthru
    _
  // Predicated region
  $region22: #{_actor_forward.1} parent=0 // pred_check
    _
  $region23: #{_actor_forward.1} parent=0 // pred_check_branch
    %24 = sbr.rel (0) target = $region25
  $region24: #{_actor_forward.1} parent=0 // pred_region
    _
  $region25: #{_actor_forward.1} parent=0 // pred_fallthru
    _
  // Predicated region
  $region26: #{_actor_forward.1} parent=0 // pred_check
    _
  $region27: #{_actor_forward.1} parent=0 // pred_check_branch
    %26 = sbr.rel (0) target = $region29
  $region28: #{_actor_forward.1} parent=0 // pred_region
    _
  $region29: #{_actor_forward.1} parent=0 // pred_fallthru
    _
  %v27 = vld [vmem:[%s1] sm:$0xff]
  %v28 = vld [vmem:[%s1 + $0x8] sm:$0xff]
  %v29 = vld [vmem:[%s1 + $0x10] sm:$0xff]
  %v30 = vld [vmem:[%s1 + $0x18] sm:$0xff]
  %v31 = vld [vmem:[%s1 + $0x20] sm:$0xff]
  %v32 = vld [vmem:[%s1 + $0x28] sm:$0xff]
  %v33 = vld [vmem:[%s1 + $0x30] sm:$0xff]
  %v34 = vld [vmem:[%s1 + $0x38] sm:$0xff]
  %v35 = vld [vmem:[%s1 + $0x40] sm:$0xff]
  %v36 = vld [vmem:[%s1 + $0x48] sm:$0xff]
  %v37 = vld [vmem:[%s1 + $0x50] sm:$0xff]
  %v38 = vld [vmem:[%s1 + $0x58] sm:$0xff]
  %v39 = vld [vmem:[%s1 + $0x60] sm:$0xff]
  %v40 = vld [vmem:[%s1 + $0x68] sm:$0xff]
  %v41 = vld [vmem:[%s1 + $0x70] sm:$0xff]
  %v42 = vld [vmem:[%s1 + $0x78] sm:$0xff]
  %v43 = vld [vmem:[%s1 + $0x80] sm:$0xff]
  %v44 = vld [vmem:[%s1 + $0x88] sm:$0xff]
  %v45 = vld [vmem:[%s1 + $0x90] sm:$0xff]
  %v46 = vld [vmem:[%s1 + $0x98] sm:$0xff]
  %v47 = vld [vmem:[%s1 + $0xa0] sm:$0xff]
  %v48 = vld [vmem:[%s1 + $0xa8] sm:$0xff]
  %v49 = vld [vmem:[%s1 + $0xb0] sm:$0xff]
  %v50 = vld [vmem:[%s1 + $0xb8] sm:$0xff]
  %v51 = vld [vmem:[%s1 + $0xc0] sm:$0xff]
  %v52 = vld [vmem:[%s1 + $0xc8] sm:$0xff]
  %v53 = vld [vmem:[%s1 + $0xd0] sm:$0xff]
  %v54 = vld [vmem:[%s1 + $0xd8] sm:$0xff]
  %v55 = vld [vmem:[%s1 + $0xe0] sm:$0xff]
  %v56 = vld [vmem:[%s1 + $0xe8] sm:$0xff]
  %v57 = vld [vmem:[%s1 + $0xf0] sm:$0xff]
  %v58 = vld [vmem:[%s1 + $0xf8] sm:$0xff]
  %v59 = vld [vmem:[%s1 + $0x100] sm:$0xff]
  %v60 = vld [vmem:[%s1 + $0x108] sm:$0xff]
  %v61 = vld [vmem:[%s1 + $0x110] sm:$0xff]
  %v62 = vld [vmem:[%s1 + $0x118] sm:$0xff]
  %v63 = vld [vmem:[%s1 + $0x120] sm:$0xff]
  %v64 = vld [vmem:[%s1 + $0x128] sm:$0xff]
  %v65 = vld [vmem:[%s1 + $0x130] sm:$0xff]
  %v66 = vld [vmem:[%s1 + $0x138] sm:$0xff]
  %v67 = vld [vmem:[%s1 + $0x140] sm:$0xff]
  %v68 = vld [vmem:[%s1 + $0x148] sm:$0xff]
  %v69 = vld [vmem:[%s1 + $0x150] sm:$0xff]
  %v70 = vld [vmem:[%s1 + $0x158] sm:$0xff]
  %v71 = vld [vmem:[%s1 + $0x160] sm:$0xff]
  %v72 = vld [vmem:[%s1 + $0x168] sm:$0xff]
  %v73 = vld [vmem:[%s1 + $0x170] sm:$0xff]
  %v74 = vld [vmem:[%s1 + $0x178] sm:$0xff]
  %v75 = vld [vmem:[%s1 + $0x180] sm:$0xff]
  %v76 = vld [vmem:[%s1 + $0x188] sm:$0xff]
  %v77 = vld [vmem:[%s0] sm:$0xf]
  %v78 = vld [vmem:[%s2] sm:$0xff]
  %v79 = vld [vmem:[%s2 + $0x8] sm:$0xff]
  %v80 = vld [vmem:[%s2 + $0x10] sm:$0xff]
  %v81 = vld [vmem:[%s2 + $0x18] sm:$0xff]
  %v82 = vld [vmem:[%s2 + $0x20] sm:$0xff]
  %v83 = vld [vmem:[%s2 + $0x28] sm:$0xff]
  %v84 = vld [vmem:[%s2 + $0x30] sm:$0xff]
  %v85 = vld [vmem:[%s2 + $0x38] sm:$0xff]
  %v86 = vld [vmem:[%s2 + $0x40] sm:$0xff]
  %v87 = vld [vmem:[%s2 + $0x48] sm:$0xff]
  %v88 = vld [vmem:[%s2 + $0x50] sm:$0xff]
  %v89 = vld [vmem:[%s2 + $0x58] sm:$0xff]
  %v90 = vld [vmem:[%s2 + $0x60] sm:$0xff]
  %v91 = vld [vmem:[%s2 + $0x68] sm:$0xff]
  %v92 = vld [vmem:[%s2 + $0x70] sm:$0xff]
  %v93 = vld [vmem:[%s2 + $0x78] sm:$0xff]
  %v94 = vld [vmem:[%s2 + $0x80] sm:$0xff]
  %v95 = vld [vmem:[%s2 + $0x88] sm:$0xff]
  %v96 = vld [vmem:[%s2 + $0x90] sm:$0xff]
  %v97 = vld [vmem:[%s2 + $0x98] sm:$0xff]
  %v98 = vld [vmem:[%s2 + $0xa0] sm:$0xff]
  %v99 = vld [vmem:[%s2 + $0xa8] sm:$0xff]
  %v100 = vld [vmem:[%s2 + $0xb0] sm:$0xff]
  %v101 = vld [vmem:[%s2 + $0xb8] sm:$0xff]
  %v102 = vld [vmem:[%s2 + $0xc0] sm:$0xff]
  %v103 = vld [vmem:[%s2 + $0xc8] sm:$0xff]
  %v104 = vld [vmem:[%s2 + $0xd0] sm:$0xff]
  %v105 = vld [vmem:[%s2 + $0xd8] sm:$0xff]
  %v106 = vld [vmem:[%s2 + $0xe0] sm:$0xff]
  %v107 = vld [vmem:[%s2 + $0xe8] sm:$0xff]
  %v108 = vld [vmem:[%s2 + $0xf0] sm:$0xff]
  %v109 = vld [vmem:[%s2 + $0xf8] sm:$0xff]
  %v110 = vld [vmem:[%s2 + $0x100] sm:$0xff]
  %v111 = vld [vmem:[%s2 + $0x108] sm:$0xff]
  %v112 = vld [vmem:[%s2 + $0x110] sm:$0xff]
  %v113 = vld [vmem:[%s2 + $0x118] sm:$0xff]
  %v114 = vld [vmem:[%s2 + $0x120] sm:$0xff]
  %v115 = vld [vmem:[%s2 + $0x128] sm:$0xff]
  %v116 = vld [vmem:[%s2 + $0x130] sm:$0xff]
  %v117 = vld [vmem:[%s2 + $0x138] sm:$0xff]
  %v118 = vld [vmem:[%s2 + $0x140] sm:$0xff]
  %v119 = vld [vmem:[%s2 + $0x148] sm:$0xff]
  %v120 = vld [vmem:[%s2 + $0x150] sm:$0xff]
  %v121 = vld [vmem:[%s2 + $0x158] sm:$0xff]
  %v122 = vld [vmem:[%s2 + $0x160] sm:$0xff]
  %v123 = vld [vmem:[%s2 + $0x168] sm:$0xff]
  %v124 = vld [vmem:[%s2 + $0x170] sm:$0xff]
  %v125 = vld [vmem:[%s2 + $0x178] sm:$0xff]
  %v126 = vld [vmem:[%s2 + $0x180] sm:$0xff]
  %v127 = vld [vmem:[%s2 + $0x188] sm:$0xff]
  %129 = vset.pattern.permute.xlu0 0
  %130 = vperm.xlu0 %129, %v78
  %v131 = vpop.permute.xlu0 %130
  %134 = vset.pattern.permute.xlu0 0
  %135 = vperm.xlu0 %134, %v79
  %v136 = vpop.permute.xlu0 %135
  %139 = vset.pattern.permute.xlu0 0
  %140 = vperm.xlu0 %139, %v80
  %v141 = vpop.permute.xlu0 %140
  %144 = vset.pattern.permute.xlu0 0
  %145 = vperm.xlu0 %144, %v81
  %v146 = vpop.permute.xlu0 %145
  %149 = vset.pattern.permute.xlu0 0
  %150 = vperm.xlu0 %149, %v82
  %v151 = vpop.permute.xlu0 %150
  %154 = vset.pattern.permute.xlu0 0
  %155 = vperm.xlu0 %154, %v83
  %v156 = vpop.permute.xlu0 %155
  %159 = vset.pattern.permute.xlu0 0
  %160 = vperm.xlu0 %159, %v84
  %v161 = vpop.permute.xlu0 %160
  %164 = vset.pattern.permute.xlu0 0
  %165 = vperm.xlu0 %164, %v85
  %v166 = vpop.permute.xlu0 %165
  %169 = vset.pattern.permute.xlu0 0
  %170 = vperm.xlu0 %169, %v86
  %v171 = vpop.permute.xlu0 %170
  %174 = vset.pattern.permute.xlu0 0
  %175 = vperm.xlu0 %174, %v87
  %v176 = vpop.permute.xlu0 %175
  %179 = vset.pattern.permute.xlu0 0
  %180 = vperm.xlu0 %179, %v88
  %v181 = vpop.permute.xlu0 %180
  %184 = vset.pattern.permute.xlu0 0
  %185 = vperm.xlu0 %184, %v89
  %v186 = vpop.permute.xlu0 %185
  %189 = vset.pattern.permute.xlu0 0
  %190 = vperm.xlu0 %189, %v90
  %v191 = vpop.permute.xlu0 %190
  %194 = vset.pattern.permute.xlu0 0
  %195 = vperm.xlu0 %194, %v91
  %v196 = vpop.permute.xlu0 %195
  %199 = vset.pattern.permute.xlu0 0
  %200 = vperm.xlu0 %199, %v92
  %v201 = vpop.permute.xlu0 %200
  %204 = vset.pattern.permute.xlu0 0
  %205 = vperm.xlu0 %204, %v93
  %v206 = vpop.permute.xlu0 %205
  %209 = vset.pattern.permute.xlu0 0
  %210 = vperm.xlu0 %209, %v94
  %v211 = vpop.permute.xlu0 %210
  %214 = vset.pattern.permute.xlu0 0
  %215 = vperm.xlu0 %214, %v95
  %v216 = vpop.permute.xlu0 %215
  %219 = vset.pattern.permute.xlu0 0
  %220 = vperm.xlu0 %219, %v96
  %v221 = vpop.permute.xlu0 %220
  %224 = vset.pattern.permute.xlu0 0
  %225 = vperm.xlu0 %224, %v97
  %v226 = vpop.permute.xlu0 %225
  %229 = vset.pattern.permute.xlu0 0
  %230 = vperm.xlu0 %229, %v98
  %v231 = vpop.permute.xlu0 %230
  %234 = vset.pattern.permute.xlu0 0
  %235 = vperm.xlu0 %234, %v99
  %v236 = vpop.permute.xlu0 %235
  %239 = vset.pattern.permute.xlu0 0
  %240 = vperm.xlu0 %239, %v100
  %v241 = vpop.permute.xlu0 %240
  %244 = vset.pattern.permute.xlu0 0
  %245 = vperm.xlu0 %244, %v101
  %v246 = vpop.permute.xlu0 %245
  %249 = vset.pattern.permute.xlu0 0
  %250 = vperm.xlu0 %249, %v102
  %v251 = vpop.permute.xlu0 %250
  %254 = vset.pattern.permute.xlu0 0
  %255 = vperm.xlu0 %254, %v103
  %v256 = vpop.permute.xlu0 %255
  %259 = vset.pattern.permute.xlu0 0
  %260 = vperm.xlu0 %259, %v104
  %v261 = vpop.permute.xlu0 %260
  %264 = vset.pattern.permute.xlu0 0
  %265 = vperm.xlu0 %264, %v105
  %v266 = vpop.permute.xlu0 %265
  %269 = vset.pattern.permute.xlu0 0
  %270 = vperm.xlu0 %269, %v106
  %v271 = vpop.permute.xlu0 %270
  %274 = vset.pattern.permute.xlu0 0
  %275 = vperm.xlu0 %274, %v107
  %v276 = vpop.permute.xlu0 %275
  %279 = vset.pattern.permute.xlu0 0
  %280 = vperm.xlu0 %279, %v108
  %v281 = vpop.permute.xlu0 %280
  %284 = vset.pattern.permute.xlu0 0
  %285 = vperm.xlu0 %284, %v109
  %v286 = vpop.permute.xlu0 %285
  %289 = vset.pattern.permute.xlu0 0
  %290 = vperm.xlu0 %289, %v110
  %v291 = vpop.permute.xlu0 %290
  %294 = vset.pattern.permute.xlu0 0
  %295 = vperm.xlu0 %294, %v111
  %v296 = vpop.permute.xlu0 %295
  %299 = vset.pattern.permute.xlu0 0
  %300 = vperm.xlu0 %299, %v112
  %v301 = vpop.permute.xlu0 %300
  %304 = vset.pattern.permute.xlu0 0
  %305 = vperm.xlu0 %304, %v113
  %v306 = vpop.permute.xlu0 %305
  %309 = vset.pattern.permute.xlu0 0
  %310 = vperm.xlu0 %309, %v114
  %v311 = vpop.permute.xlu0 %310
  %314 = vset.pattern.permute.xlu0 0
  %315 = vperm.xlu0 %314, %v115
  %v316 = vpop.permute.xlu0 %315
  %319 = vset.pattern.permute.xlu0 0
  %320 = vperm.xlu0 %319, %v116
  %v321 = vpop.permute.xlu0 %320
  %324 = vset.pattern.permute.xlu0 0
  %325 = vperm.xlu0 %324, %v117
  %v326 = vpop.permute.xlu0 %325
  %329 = vset.pattern.permute.xlu0 0
  %330 = vperm.xlu0 %329, %v118
  %v331 = vpop.permute.xlu0 %330
  %334 = vset.pattern.permute.xlu0 0
  %335 = vperm.xlu0 %334, %v119
  %v336 = vpop.permute.xlu0 %335
  %339 = vset.pattern.permute.xlu0 0
  %340 = vperm.xlu0 %339, %v120
  %v341 = vpop.permute.xlu0 %340
  %344 = vset.pattern.permute.xlu0 0
  %345 = vperm.xlu0 %344, %v121
  %v346 = vpop.permute.xlu0 %345
  %349 = vset.pattern.permute.xlu0 0
  %350 = vperm.xlu0 %349, %v122
  %v351 = vpop.permute.xlu0 %350
  %354 = vset.pattern.permute.xlu0 0
  %355 = vperm.xlu0 %354, %v123
  %v356 = vpop.permute.xlu0 %355
  %359 = vset.pattern.permute.xlu0 0
  %360 = vperm.xlu0 %359, %v124
  %v361 = vpop.permute.xlu0 %360
  %364 = vset.pattern.permute.xlu0 0
  %365 = vperm.xlu0 %364, %v125
  %v366 = vpop.permute.xlu0 %365
  %369 = vset.pattern.permute.xlu0 0
  %370 = vperm.xlu0 %369, %v126
  %v371 = vpop.permute.xlu0 %370
  %374 = vset.pattern.permute.xlu0 0
  %375 = vperm.xlu0 %374, %v127
  %v376 = vpop.permute.xlu0 %375
  %vm378 = vcmask 31744
  %v380 = vsel %vm378, %v27, 0
  %v383 = vsel %vm378, %v28, 0
  %v386 = vsel %vm378, %v29, 0
  %v389 = vsel %vm378, %v30, 0
  %v392 = vsel %vm378, %v31, 0
  %v395 = vsel %vm378, %v32, 0
  %v398 = vsel %vm378, %v33, 0
  %v401 = vsel %vm378, %v34, 0
  %v404 = vsel %vm378, %v35, 0
  %v407 = vsel %vm378, %v36, 0
  %v410 = vsel %vm378, %v37, 0
  %v413 = vsel %vm378, %v38, 0
  %v416 = vsel %vm378, %v39, 0
  %v419 = vsel %vm378, %v40, 0
  %v422 = vsel %vm378, %v41, 0
  %v425 = vsel %vm378, %v42, 0
  %v428 = vsel %vm378, %v43, 0
  %v431 = vsel %vm378, %v44, 0
  %v434 = vsel %vm378, %v45, 0
  %v437 = vsel %vm378, %v46, 0
  %v440 = vsel %vm378, %v47, 0
  %v443 = vsel %vm378, %v48, 0
  %v446 = vsel %vm378, %v49, 0
  %v449 = vsel %vm378, %v50, 0
  %v452 = vsel %vm378, %v51, 0
  %v455 = vsel %vm378, %v52, 0
  %v458 = vsel %vm378, %v53, 0
  %v461 = vsel %vm378, %v54, 0
  %v464 = vsel %vm378, %v55, 0
  %v467 = vsel %vm378, %v56, 0
  %v470 = vsel %vm378, %v57, 0
  %v473 = vsel %vm378, %v58, 0
  %v476 = vsel %vm378, %v59, 0
  %v479 = vsel %vm378, %v60, 0
  %v482 = vsel %vm378, %v61, 0
  %v485 = vsel %vm378, %v62, 0
  %v488 = vsel %vm378, %v63, 0
  %v491 = vsel %vm378, %v64, 0
  %v494 = vsel %vm378, %v65, 0
  %v497 = vsel %vm378, %v66, 0
  %v500 = vsel %vm378, %v67, 0
  %v503 = vsel %vm378, %v68, 0
  %v506 = vsel %vm378, %v69, 0
  %v509 = vsel %vm378, %v70, 0
  %v512 = vsel %vm378, %v71, 0
  %v515 = vsel %vm378, %v72, 0
  %v518 = vsel %vm378, %v73, 0
  %v521 = vsel %vm378, %v74, 0
  %v524 = vsel %vm378, %v75, 0
  %v527 = vsel %vm378, %v76, 0
  %vm529 = vcmask 1043456
  %v531 = vsel %vm529, %v77, 0
  %533 = vmatpush.msra.mxu0 0.0
  %534 = vmatpush.msra.mxu0 0.0
  %535 = vmatpush.msra.mxu0 0.0
  %536 = vmatpush.msra.mxu0 0.0
  %537 = vmatpush.msra.mxu0 0.0
  %538 = vmatpush.msra.mxu0 0.0
  %539 = vmatpush.msra.mxu0 0.0
  %540 = vmatpush.msra.mxu0 0.0
  %541 = vmatpush.msra.mxu0 0.0
  %542 = vmatpush.msra.mxu0 0.0
  %543 = vmatpush.msra.mxu0 0.0
  %544 = vmatpush.msra.mxu0 0.0
  %545 = vmatpush.msra.mxu0 0.0
  %546 = vmatpush.msra.mxu0 0.0
  %547 = vmatpush.msra.mxu0 0.0
  %548 = vmatpush.msra.mxu0 %v531
  %549 = vmatmul.f32.gmra.mxu0 %v380
  %v550 = vpop.f32.mrf.mxu0
  %v551 = vadd.f32 %v131, %v550
  %552 = vmatmul.f32.gmra.mxu0 %v383
  %v553 = vpop.f32.mrf.mxu0
  %v554 = vadd.f32 %v136, %v553
  %555 = vmatmul.f32.gmra.mxu0 %v386
  %v556 = vpop.f32.mrf.mxu0
  %v557 = vadd.f32 %v141, %v556
  %558 = vmatmul.f32.gmra.mxu0 %v389
  %v559 = vpop.f32.mrf.mxu0
  %v560 = vadd.f32 %v146, %v559
  %561 = vmatmul.f32.gmra.mxu0 %v392
  %v562 = vpop.f32.mrf.mxu0
  %v563 = vadd.f32 %v151, %v562
  %564 = vmatmul.f32.gmra.mxu0 %v395
  %v565 = vpop.f32.mrf.mxu0
  %v566 = vadd.f32 %v156, %v565
  %567 = vmatmul.f32.gmra.mxu0 %v398
  %v568 = vpop.f32.mrf.mxu0
  %v569 = vadd.f32 %v161, %v568
  %570 = vmatmul.f32.gmra.mxu0 %v401
  %v571 = vpop.f32.mrf.mxu0
  %v572 = vadd.f32 %v166, %v571
  %573 = vmatmul.f32.gmra.mxu0 %v404
  %v574 = vpop.f32.mrf.mxu0
  %v575 = vadd.f32 %v171, %v574
  %576 = vmatmul.f32.gmra.mxu0 %v407
  %v577 = vpop.f32.mrf.mxu0
  %v578 = vadd.f32 %v176, %v577
  %579 = vmatmul.f32.gmra.mxu0 %v410
  %v580 = vpop.f32.mrf.mxu0
  %v581 = vadd.f32 %v181, %v580
  %582 = vmatmul.f32.gmra.mxu0 %v413
  %v583 = vpop.f32.mrf.mxu0
  %v584 = vadd.f32 %v186, %v583
  %585 = vmatmul.f32.gmra.mxu0 %v416
  %v586 = vpop.f32.mrf.mxu0
  %v587 = vadd.f32 %v191, %v586
  %588 = vmatmul.f32.gmra.mxu0 %v419
  %v589 = vpop.f32.mrf.mxu0
  %v590 = vadd.f32 %v196, %v589
  %591 = vmatmul.f32.gmra.mxu0 %v422
  %v592 = vpop.f32.mrf.mxu0
  %v593 = vadd.f32 %v201, %v592
  %594 = vmatmul.f32.gmra.mxu0 %v425
  %v595 = vpop.f32.mrf.mxu0
  %v596 = vadd.f32 %v206, %v595
  %597 = vmatmul.f32.gmra.mxu0 %v428
  %v598 = vpop.f32.mrf.mxu0
  %v599 = vadd.f32 %v211, %v598
  %600 = vmatmul.f32.gmra.mxu0 %v431
  %v601 = vpop.f32.mrf.mxu0
  %v602 = vadd.f32 %v216, %v601
  %603 = vmatmul.f32.gmra.mxu0 %v434
  %v604 = vpop.f32.mrf.mxu0
  %v605 = vadd.f32 %v221, %v604
  %606 = vmatmul.f32.gmra.mxu0 %v437
  %v607 = vpop.f32.mrf.mxu0
  %v608 = vadd.f32 %v226, %v607
  %609 = vmatmul.f32.gmra.mxu0 %v440
  %v610 = vpop.f32.mrf.mxu0
  %v611 = vadd.f32 %v231, %v610
  %612 = vmatmul.f32.gmra.mxu0 %v443
  %v613 = vpop.f32.mrf.mxu0
  %v614 = vadd.f32 %v236, %v613
  %615 = vmatmul.f32.gmra.mxu0 %v446
  %v616 = vpop.f32.mrf.mxu0
  %v617 = vadd.f32 %v241, %v616
  %618 = vmatmul.f32.gmra.mxu0 %v449
  %v619 = vpop.f32.mrf.mxu0
  %v620 = vadd.f32 %v246, %v619
  %621 = vmatmul.f32.gmra.mxu0 %v452
  %v622 = vpop.f32.mrf.mxu0
  %v623 = vadd.f32 %v251, %v622
  %624 = vmatmul.f32.gmra.mxu0 %v455
  %v625 = vpop.f32.mrf.mxu0
  %v626 = vadd.f32 %v256, %v625
  %627 = vmatmul.f32.gmra.mxu0 %v458
  %v628 = vpop.f32.mrf.mxu0
  %v629 = vadd.f32 %v261, %v628
  %630 = vmatmul.f32.gmra.mxu0 %v461
  %v631 = vpop.f32.mrf.mxu0
  %v632 = vadd.f32 %v266, %v631
  %633 = vmatmul.f32.gmra.mxu0 %v464
  %v634 = vpop.f32.mrf.mxu0
  %v635 = vadd.f32 %v271, %v634
  %636 = vmatmul.f32.gmra.mxu0 %v467
  %v637 = vpop.f32.mrf.mxu0
  %v638 = vadd.f32 %v276, %v637
  %639 = vmatmul.f32.gmra.mxu0 %v470
  %v640 = vpop.f32.mrf.mxu0
  %v641 = vadd.f32 %v281, %v640
  %642 = vmatmul.f32.gmra.mxu0 %v473
  %v643 = vpop.f32.mrf.mxu0
  %v644 = vadd.f32 %v286, %v643
  %645 = vmatmul.f32.gmra.mxu0 %v476
  %v646 = vpop.f32.mrf.mxu0
  %v647 = vadd.f32 %v291, %v646
  %648 = vmatmul.f32.gmra.mxu0 %v479
  %v649 = vpop.f32.mrf.mxu0
  %v650 = vadd.f32 %v296, %v649
  %651 = vmatmul.f32.gmra.mxu0 %v482
  %v652 = vpop.f32.mrf.mxu0
  %v653 = vadd.f32 %v301, %v652
  %654 = vmatmul.f32.gmra.mxu0 %v485
  %v655 = vpop.f32.mrf.mxu0
  %v656 = vadd.f32 %v306, %v655
  %657 = vmatmul.f32.gmra.mxu0 %v488
  %v658 = vpop.f32.mrf.mxu0
  %v659 = vadd.f32 %v311, %v658
  %660 = vmatmul.f32.gmra.mxu0 %v491
  %v661 = vpop.f32.mrf.mxu0
  %v662 = vadd.f32 %v316, %v661
  %663 = vmatmul.f32.gmra.mxu0 %v494
  %v664 = vpop.f32.mrf.mxu0
  %v665 = vadd.f32 %v321, %v664
  %666 = vmatmul.f32.gmra.mxu0 %v497
  %v667 = vpop.f32.mrf.mxu0
  %v668 = vadd.f32 %v326, %v667
  %669 = vmatmul.f32.gmra.mxu0 %v500
  %v670 = vpop.f32.mrf.mxu0
  %v671 = vadd.f32 %v331, %v670
  %672 = vmatmul.f32.gmra.mxu0 %v503
  %v673 = vpop.f32.mrf.mxu0
  %v674 = vadd.f32 %v336, %v673
  %675 = vmatmul.f32.gmra.mxu0 %v506
  %v676 = vpop.f32.mrf.mxu0
  %v677 = vadd.f32 %v341, %v676
  %678 = vmatmul.f32.gmra.mxu0 %v509
  %v679 = vpop.f32.mrf.mxu0
  %v680 = vadd.f32 %v346, %v679
  %681 = vmatmul.f32.gmra.mxu0 %v512
  %v682 = vpop.f32.mrf.mxu0
  %v683 = vadd.f32 %v351, %v682
  %684 = vmatmul.f32.gmra.mxu0 %v515
  %v685 = vpop.f32.mrf.mxu0
  %v686 = vadd.f32 %v356, %v685
  %687 = vmatmul.f32.gmra.mxu0 %v518
  %v688 = vpop.f32.mrf.mxu0
  %v689 = vadd.f32 %v361, %v688
  %690 = vmatmul.f32.gmra.mxu0 %v521
  %v691 = vpop.f32.mrf.mxu0
  %v692 = vadd.f32 %v366, %v691
  %693 = vmatmul.f32.gmra.mxu0 %v524
  %v694 = vpop.f32.mrf.mxu0
  %v695 = vadd.f32 %v371, %v694
  %696 = vmatmul.f32.gmra.mxu0 %v527
  %v697 = vpop.f32.mrf.mxu0
  %v698 = vadd.f32 %v376, %v697
  %699 = vdwg.mxu0
  %v700 = vmax.f32 %v551, 0.0
  %v701 = vmax.f32 %v554, 0.0
  %v702 = vmax.f32 %v557, 0.0
  %v703 = vmax.f32 %v560, 0.0
  %v704 = vmax.f32 %v563, 0.0
  %v705 = vmax.f32 %v566, 0.0
  %v706 = vmax.f32 %v569, 0.0
  %v707 = vmax.f32 %v572, 0.0
  %v708 = vmax.f32 %v575, 0.0
  %v709 = vmax.f32 %v578, 0.0
  %v710 = vmax.f32 %v581, 0.0
  %v711 = vmax.f32 %v584, 0.0
  %v712 = vmax.f32 %v587, 0.0
  %v713 = vmax.f32 %v590, 0.0
  %v714 = vmax.f32 %v593, 0.0
  %v715 = vmax.f32 %v596, 0.0
  %v716 = vmax.f32 %v599, 0.0
  %v717 = vmax.f32 %v602, 0.0
  %v718 = vmax.f32 %v605, 0.0
  %v719 = vmax.f32 %v608, 0.0
  %v720 = vmax.f32 %v611, 0.0
  %v721 = vmax.f32 %v614, 0.0
  %v722 = vmax.f32 %v617, 0.0
  %v723 = vmax.f32 %v620, 0.0
  %v724 = vmax.f32 %v623, 0.0
  %v725 = vmax.f32 %v626, 0.0
  %v726 = vmax.f32 %v629, 0.0
  %v727 = vmax.f32 %v632, 0.0
  %v728 = vmax.f32 %v635, 0.0
  %v729 = vmax.f32 %v638, 0.0
  %v730 = vmax.f32 %v641, 0.0
  %v731 = vmax.f32 %v644, 0.0
  %v732 = vmax.f32 %v647, 0.0
  %v733 = vmax.f32 %v650, 0.0
  %v734 = vmax.f32 %v653, 0.0
  %v735 = vmax.f32 %v656, 0.0
  %v736 = vmax.f32 %v659, 0.0
  %v737 = vmax.f32 %v662, 0.0
  %v738 = vmax.f32 %v665, 0.0
  %v739 = vmax.f32 %v668, 0.0
  %v740 = vmax.f32 %v671, 0.0
  %v741 = vmax.f32 %v674, 0.0
  %v742 = vmax.f32 %v677, 0.0
  %v743 = vmax.f32 %v680, 0.0
  %v744 = vmax.f32 %v683, 0.0
  %v745 = vmax.f32 %v686, 0.0
  %v746 = vmax.f32 %v689, 0.0
  %v747 = vmax.f32 %v692, 0.0
  %v748 = vmax.f32 %v695, 0.0
  %v749 = vmax.f32 %v698, 0.0
  %v750 = vld [vmem:[%s3] sm:$0xff]
  %v751 = vld [vmem:[%s3 + $0x8] sm:$0xff]
  %v752 = vld [vmem:[%s3 + $0x10] sm:$0xff]
  %v753 = vld [vmem:[%s3 + $0x18] sm:$0xff]
  %v754 = vld [vmem:[%s3 + $0x20] sm:$0xff]
  %v755 = vld [vmem:[%s3 + $0x28] sm:$0xff]
  %v756 = vld [vmem:[%s3 + $0x30] sm:$0xff]
  %v757 = vld [vmem:[%s3 + $0x38] sm:$0xff]
  %v758 = vld [vmem:[%s3 + $0x40] sm:$0xff]
  %v759 = vld [vmem:[%s3 + $0x48] sm:$0xff]
  %v760 = vld [vmem:[%s3 + $0x50] sm:$0xff]
  %v761 = vld [vmem:[%s3 + $0x58] sm:$0xff]
  %v762 = vld [vmem:[%s3 + $0x60] sm:$0xff]
  %v763 = vld [vmem:[%s3 + $0x68] sm:$0xff]
  %v764 = vld [vmem:[%s3 + $0x70] sm:$0xff]
  %v765 = vld [vmem:[%s3 + $0x78] sm:$0xff]
  %v766 = vld [vmem:[%s3 + $0x80] sm:$0xff]
  %v767 = vld [vmem:[%s3 + $0x88] sm:$0xff]
  %v768 = vld [vmem:[%s3 + $0x90] sm:$0xff]
  %v769 = vld [vmem:[%s3 + $0x98] sm:$0xff]
  %v770 = vld [vmem:[%s3 + $0xa0] sm:$0xff]
  %v771 = vld [vmem:[%s3 + $0xa8] sm:$0xff]
  %v772 = vld [vmem:[%s3 + $0xb0] sm:$0xff]
  %v773 = vld [vmem:[%s3 + $0xb8] sm:$0xff]
  %v774 = vld [vmem:[%s3 + $0xc0] sm:$0xff]
  %v775 = vld [vmem:[%s3 + $0xc8] sm:$0xff]
  %v776 = vld [vmem:[%s3 + $0xd0] sm:$0xff]
  %v777 = vld [vmem:[%s3 + $0xd8] sm:$0xff]
  %v778 = vld [vmem:[%s3 + $0xe0] sm:$0xff]
  %v779 = vld [vmem:[%s3 + $0xe8] sm:$0xff]
  %v780 = vld [vmem:[%s3 + $0xf0] sm:$0xff]
  %v781 = vld [vmem:[%s3 + $0xf8] sm:$0xff]
  %v782 = vld [vmem:[%s3 + $0x100] sm:$0xff]
  %v783 = vld [vmem:[%s3 + $0x108] sm:$0xff]
  %v784 = vld [vmem:[%s3 + $0x110] sm:$0xff]
  %v785 = vld [vmem:[%s3 + $0x118] sm:$0xff]
  %v786 = vld [vmem:[%s3 + $0x120] sm:$0xff]
  %v787 = vld [vmem:[%s3 + $0x128] sm:$0xff]
  %v788 = vld [vmem:[%s3 + $0x130] sm:$0xff]
  %v789 = vld [vmem:[%s3 + $0x138] sm:$0xff]
  %v790 = vld [vmem:[%s3 + $0x140] sm:$0xff]
  %v791 = vld [vmem:[%s3 + $0x148] sm:$0xff]
  %v792 = vld [vmem:[%s3 + $0x150] sm:$0xff]
  %v793 = vld [vmem:[%s3 + $0x158] sm:$0xff]
  %v794 = vld [vmem:[%s3 + $0x160] sm:$0xff]
  %v795 = vld [vmem:[%s3 + $0x168] sm:$0xff]
  %v796 = vld [vmem:[%s3 + $0x170] sm:$0xff]
  %v797 = vld [vmem:[%s3 + $0x178] sm:$0xff]
  %v798 = vld [vmem:[%s3 + $0x180] sm:$0xff]
  %v799 = vld [vmem:[%s3 + $0x188] sm:$0xff]
  %v800 = vld [vmem:[%s3 + $0x190] sm:$0xff]
  %v801 = vld [vmem:[%s3 + $0x198] sm:$0xff]
  %v802 = vld [vmem:[%s3 + $0x1a0] sm:$0xff]
  %v803 = vld [vmem:[%s3 + $0x1a8] sm:$0xff]
  %v804 = vld [vmem:[%s3 + $0x1b0] sm:$0xff]
  %v805 = vld [vmem:[%s3 + $0x1b8] sm:$0xff]
  %v806 = vld [vmem:[%s3 + $0x1c0] sm:$0xff]
  %v807 = vld [vmem:[%s3 + $0x1c8] sm:$0xff]
  %v808 = vld [vmem:[%s3 + $0x1d0] sm:$0xff]
  %v809 = vld [vmem:[%s3 + $0x1d8] sm:$0xff]
  %v810 = vld [vmem:[%s3 + $0x1e0] sm:$0xff]
  %v811 = vld [vmem:[%s3 + $0x1e8] sm:$0xff]
  %v812 = vld [vmem:[%s3 + $0x1f0] sm:$0xff]
  %v813 = vld [vmem:[%s3 + $0x1f8] sm:$0xff]
  %v814 = vld [vmem:[%s3 + $0x200] sm:$0xff]
  %v815 = vld [vmem:[%s3 + $0x208] sm:$0xff]
  %v816 = vld [vmem:[%s3 + $0x210] sm:$0xff]
  %v817 = vld [vmem:[%s3 + $0x218] sm:$0xff]
  %v818 = vld [vmem:[%s3 + $0x220] sm:$0xff]
  %v819 = vld [vmem:[%s3 + $0x228] sm:$0xff]
  %v820 = vld [vmem:[%s3 + $0x230] sm:$0xff]
  %v821 = vld [vmem:[%s3 + $0x238] sm:$0xff]
  %v822 = vld [vmem:[%s3 + $0x240] sm:$0xff]
  %v823 = vld [vmem:[%s3 + $0x248] sm:$0xff]
  %v824 = vld [vmem:[%s3 + $0x250] sm:$0xff]
  %v825 = vld [vmem:[%s3 + $0x258] sm:$0xff]
  %v826 = vld [vmem:[%s3 + $0x260] sm:$0xff]
  %v827 = vld [vmem:[%s3 + $0x268] sm:$0xff]
  %v828 = vld [vmem:[%s3 + $0x270] sm:$0xff]
  %v829 = vld [vmem:[%s3 + $0x278] sm:$0xff]
  %v830 = vld [vmem:[%s3 + $0x280] sm:$0xff]
  %v831 = vld [vmem:[%s3 + $0x288] sm:$0xff]
  %v832 = vld [vmem:[%s3 + $0x290] sm:$0xff]
  %v833 = vld [vmem:[%s3 + $0x298] sm:$0xff]
  %v834 = vld [vmem:[%s3 + $0x2a0] sm:$0xff]
  %v835 = vld [vmem:[%s3 + $0x2a8] sm:$0xff]
  %v836 = vld [vmem:[%s3 + $0x2b0] sm:$0xff]
  %v837 = vld [vmem:[%s3 + $0x2b8] sm:$0xff]
  %v838 = vld [vmem:[%s3 + $0x2c0] sm:$0xff]
  %v839 = vld [vmem:[%s3 + $0x2c8] sm:$0xff]
  %v840 = vld [vmem:[%s3 + $0x2d0] sm:$0xff]
  %v841 = vld [vmem:[%s3 + $0x2d8] sm:$0xff]
  %v842 = vld [vmem:[%s3 + $0x2e0] sm:$0xff]
  %v843 = vld [vmem:[%s3 + $0x2e8] sm:$0xff]
  %v844 = vld [vmem:[%s3 + $0x2f0] sm:$0xff]
  %v845 = vld [vmem:[%s3 + $0x2f8] sm:$0xff]
  %v846 = vld [vmem:[%s3 + $0x300] sm:$0xff]
  %v847 = vld [vmem:[%s3 + $0x308] sm:$0xff]
  %v848 = vld [vmem:[%s3 + $0x310] sm:$0xff]
  %v849 = vld [vmem:[%s3 + $0x318] sm:$0xff]
  %v850 = vld [vmem:[%s3 + $0x320] sm:$0xff]
  %v851 = vld [vmem:[%s3 + $0x328] sm:$0xff]
  %v852 = vld [vmem:[%s3 + $0x330] sm:$0xff]
  %v853 = vld [vmem:[%s3 + $0x338] sm:$0xff]
  %v854 = vld [vmem:[%s3 + $0x340] sm:$0xff]
  %v855 = vld [vmem:[%s3 + $0x348] sm:$0xff]
  %v856 = vld [vmem:[%s3 + $0x350] sm:$0xff]
  %v857 = vld [vmem:[%s3 + $0x358] sm:$0xff]
  %v858 = vld [vmem:[%s3 + $0x360] sm:$0xff]
  %v859 = vld [vmem:[%s3 + $0x368] sm:$0xff]
  %v860 = vld [vmem:[%s3 + $0x370] sm:$0xff]
  %v861 = vld [vmem:[%s3 + $0x378] sm:$0xff]
  %v862 = vld [vmem:[%s3 + $0x380] sm:$0xff]
  %v863 = vld [vmem:[%s3 + $0x388] sm:$0xff]
  %v864 = vld [vmem:[%s3 + $0x390] sm:$0xff]
  %v865 = vld [vmem:[%s3 + $0x398] sm:$0xff]
  %v866 = vld [vmem:[%s3 + $0x3a0] sm:$0xff]
  %v867 = vld [vmem:[%s3 + $0x3a8] sm:$0xff]
  %v868 = vld [vmem:[%s3 + $0x3b0] sm:$0xff]
  %v869 = vld [vmem:[%s3 + $0x3b8] sm:$0xff]
  %v870 = vld [vmem:[%s3 + $0x3c0] sm:$0xff]
  %v871 = vld [vmem:[%s3 + $0x3c8] sm:$0xff]
  %v872 = vld [vmem:[%s3 + $0x3d0] sm:$0xff]
  %v873 = vld [vmem:[%s3 + $0x3d8] sm:$0xff]
  %v874 = vld [vmem:[%s3 + $0x3e0] sm:$0xff]
  %v875 = vld [vmem:[%s3 + $0x3e8] sm:$0xff]
  %v876 = vld [vmem:[%s3 + $0x3f0] sm:$0xff]
  %v877 = vld [vmem:[%s3 + $0x3f8] sm:$0xff]
  %v878 = vld [vmem:[%s3 + $0x400] sm:$0xff]
  %v879 = vld [vmem:[%s3 + $0x408] sm:$0xff]
  %v880 = vld [vmem:[%s3 + $0x410] sm:$0xff]
  %v881 = vld [vmem:[%s3 + $0x418] sm:$0xff]
  %v882 = vld [vmem:[%s3 + $0x420] sm:$0xff]
  %v883 = vld [vmem:[%s3 + $0x428] sm:$0xff]
  %v884 = vld [vmem:[%s3 + $0x430] sm:$0xff]
  %v885 = vld [vmem:[%s3 + $0x438] sm:$0xff]
  %v886 = vld [vmem:[%s3 + $0x440] sm:$0xff]
  %v887 = vld [vmem:[%s3 + $0x448] sm:$0xff]
  %v888 = vld [vmem:[%s3 + $0x450] sm:$0xff]
  %v889 = vld [vmem:[%s3 + $0x458] sm:$0xff]
  %v890 = vld [vmem:[%s3 + $0x460] sm:$0xff]
  %v891 = vld [vmem:[%s3 + $0x468] sm:$0xff]
  %v892 = vld [vmem:[%s3 + $0x470] sm:$0xff]
  %v893 = vld [vmem:[%s3 + $0x478] sm:$0xff]
  %v894 = vld [vmem:[%s3 + $0x480] sm:$0xff]
  %v895 = vld [vmem:[%s3 + $0x488] sm:$0xff]
  %v896 = vld [vmem:[%s3 + $0x490] sm:$0xff]
  %v897 = vld [vmem:[%s3 + $0x498] sm:$0xff]
  %v898 = vld [vmem:[%s3 + $0x4a0] sm:$0xf]
  %v899 = vld [vmem:[%s3 + $0x4a8] sm:$0xf]
  %v900 = vld [vmem:[%s3 + $0x4b0] sm:$0xf]
  %v901 = vld [vmem:[%s3 + $0x4b8] sm:$0xf]
  %v902 = vld [vmem:[%s4] sm:$0xff]
  %v903 = vld [vmem:[%s4 + $0x8] sm:$0xff]
  %v904 = vld [vmem:[%s4 + $0x10] sm:$0xff]
  %v905 = vld [vmem:[%s4 + $0x18] sm:$0xff]
  %v906 = vld [vmem:[%s4 + $0x20] sm:$0xff]
  %v907 = vld [vmem:[%s4 + $0x28] sm:$0xff]
  %v908 = vld [vmem:[%s4 + $0x30] sm:$0xff]
  %v909 = vld [vmem:[%s4 + $0x38] sm:$0xff]
  %v910 = vld [vmem:[%s4 + $0x40] sm:$0xff]
  %v911 = vld [vmem:[%s4 + $0x48] sm:$0xff]
  %v912 = vld [vmem:[%s4 + $0x50] sm:$0xff]
  %v913 = vld [vmem:[%s4 + $0x58] sm:$0xff]
  %v914 = vld [vmem:[%s4 + $0x60] sm:$0xff]
  %v915 = vld [vmem:[%s4 + $0x68] sm:$0xff]
  %v916 = vld [vmem:[%s4 + $0x70] sm:$0xff]
  %v917 = vld [vmem:[%s4 + $0x78] sm:$0xff]
  %v918 = vld [vmem:[%s4 + $0x80] sm:$0xff]
  %v919 = vld [vmem:[%s4 + $0x88] sm:$0xff]
  %v920 = vld [vmem:[%s4 + $0x90] sm:$0xff]
  %v921 = vld [vmem:[%s4 + $0x98] sm:$0xff]
  %v922 = vld [vmem:[%s4 + $0xa0] sm:$0xff]
  %v923 = vld [vmem:[%s4 + $0xa8] sm:$0xff]
  %v924 = vld [vmem:[%s4 + $0xb0] sm:$0xff]
  %v925 = vld [vmem:[%s4 + $0xb8] sm:$0xff]
  %v926 = vld [vmem:[%s4 + $0xc0] sm:$0xff]
  %v927 = vld [vmem:[%s4 + $0xc8] sm:$0xff]
  %v928 = vld [vmem:[%s4 + $0xd0] sm:$0xff]
  %v929 = vld [vmem:[%s4 + $0xd8] sm:$0xff]
  %v930 = vld [vmem:[%s4 + $0xe0] sm:$0xff]
  %v931 = vld [vmem:[%s4 + $0xe8] sm:$0xff]
  %v932 = vld [vmem:[%s4 + $0xf0] sm:$0xff]
  %v933 = vld [vmem:[%s4 + $0xf8] sm:$0xff]
  %v934 = vld [vmem:[%s4 + $0x100] sm:$0xff]
  %v935 = vld [vmem:[%s4 + $0x108] sm:$0xff]
  %v936 = vld [vmem:[%s4 + $0x110] sm:$0xff]
  %v937 = vld [vmem:[%s4 + $0x118] sm:$0xff]
  %v938 = vld [vmem:[%s4 + $0x120] sm:$0xff]
  %v939 = vld [vmem:[%s4 + $0x128] sm:$0xf]
  %941 = vset.pattern.permute.xlu0 0
  %942 = vperm.xlu0 %941, %v902
  %v943 = vpop.permute.xlu0 %942
  %946 = vset.pattern.permute.xlu0 0
  %947 = vperm.xlu0 %946, %v903
  %v948 = vpop.permute.xlu0 %947
  %951 = vset.pattern.permute.xlu0 0
  %952 = vperm.xlu0 %951, %v904
  %v953 = vpop.permute.xlu0 %952
  %956 = vset.pattern.permute.xlu0 0
  %957 = vperm.xlu0 %956, %v905
  %v958 = vpop.permute.xlu0 %957
  %961 = vset.pattern.permute.xlu0 0
  %962 = vperm.xlu0 %961, %v906
  %v963 = vpop.permute.xlu0 %962
  %966 = vset.pattern.permute.xlu0 0
  %967 = vperm.xlu0 %966, %v907
  %v968 = vpop.permute.xlu0 %967
  %971 = vset.pattern.permute.xlu0 0
  %972 = vperm.xlu0 %971, %v908
  %v973 = vpop.permute.xlu0 %972
  %976 = vset.pattern.permute.xlu0 0
  %977 = vperm.xlu0 %976, %v909
  %v978 = vpop.permute.xlu0 %977
  %981 = vset.pattern.permute.xlu0 0
  %982 = vperm.xlu0 %981, %v910
  %v983 = vpop.permute.xlu0 %982
  %986 = vset.pattern.permute.xlu0 0
  %987 = vperm.xlu0 %986, %v911
  %v988 = vpop.permute.xlu0 %987
  %991 = vset.pattern.permute.xlu0 0
  %992 = vperm.xlu0 %991, %v912
  %v993 = vpop.permute.xlu0 %992
  %996 = vset.pattern.permute.xlu0 0
  %997 = vperm.xlu0 %996, %v913
  %v998 = vpop.permute.xlu0 %997
  %1001 = vset.pattern.permute.xlu0 0
  %1002 = vperm.xlu0 %1001, %v914
  %v1003 = vpop.permute.xlu0 %1002
  %1006 = vset.pattern.permute.xlu0 0
  %1007 = vperm.xlu0 %1006, %v915
  %v1008 = vpop.permute.xlu0 %1007
  %1011 = vset.pattern.permute.xlu0 0
  %1012 = vperm.xlu0 %1011, %v916
  %v1013 = vpop.permute.xlu0 %1012
  %1016 = vset.pattern.permute.xlu0 0
  %1017 = vperm.xlu0 %1016, %v917
  %v1018 = vpop.permute.xlu0 %1017
  %1021 = vset.pattern.permute.xlu0 0
  %1022 = vperm.xlu0 %1021, %v918
  %v1023 = vpop.permute.xlu0 %1022
  %1026 = vset.pattern.permute.xlu0 0
  %1027 = vperm.xlu0 %1026, %v919
  %v1028 = vpop.permute.xlu0 %1027
  %1031 = vset.pattern.permute.xlu0 0
  %1032 = vperm.xlu0 %1031, %v920
  %v1033 = vpop.permute.xlu0 %1032
  %1036 = vset.pattern.permute.xlu0 0
  %1037 = vperm.xlu0 %1036, %v921
  %v1038 = vpop.permute.xlu0 %1037
  %1041 = vset.pattern.permute.xlu0 0
  %1042 = vperm.xlu0 %1041, %v922
  %v1043 = vpop.permute.xlu0 %1042
  %1046 = vset.pattern.permute.xlu0 0
  %1047 = vperm.xlu0 %1046, %v923
  %v1048 = vpop.permute.xlu0 %1047
  %1051 = vset.pattern.permute.xlu0 0
  %1052 = vperm.xlu0 %1051, %v924
  %v1053 = vpop.permute.xlu0 %1052
  %1056 = vset.pattern.permute.xlu0 0
  %1057 = vperm.xlu0 %1056, %v925
  %v1058 = vpop.permute.xlu0 %1057
  %1061 = vset.pattern.permute.xlu0 0
  %1062 = vperm.xlu0 %1061, %v926
  %v1063 = vpop.permute.xlu0 %1062
  %1066 = vset.pattern.permute.xlu0 0
  %1067 = vperm.xlu0 %1066, %v927
  %v1068 = vpop.permute.xlu0 %1067
  %1071 = vset.pattern.permute.xlu0 0
  %1072 = vperm.xlu0 %1071, %v928
  %v1073 = vpop.permute.xlu0 %1072
  %1076 = vset.pattern.permute.xlu0 0
  %1077 = vperm.xlu0 %1076, %v929
  %v1078 = vpop.permute.xlu0 %1077
  %1081 = vset.pattern.permute.xlu0 0
  %1082 = vperm.xlu0 %1081, %v930
  %v1083 = vpop.permute.xlu0 %1082
  %1086 = vset.pattern.permute.xlu0 0
  %1087 = vperm.xlu0 %1086, %v931
  %v1088 = vpop.permute.xlu0 %1087
  %1091 = vset.pattern.permute.xlu0 0
  %1092 = vperm.xlu0 %1091, %v932
  %v1093 = vpop.permute.xlu0 %1092
  %1096 = vset.pattern.permute.xlu0 0
  %1097 = vperm.xlu0 %1096, %v933
  %v1098 = vpop.permute.xlu0 %1097
  %1101 = vset.pattern.permute.xlu0 0
  %1102 = vperm.xlu0 %1101, %v934
  %v1103 = vpop.permute.xlu0 %1102
  %1106 = vset.pattern.permute.xlu0 0
  %1107 = vperm.xlu0 %1106, %v935
  %v1108 = vpop.permute.xlu0 %1107
  %1111 = vset.pattern.permute.xlu0 0
  %1112 = vperm.xlu0 %1111, %v936
  %v1113 = vpop.permute.xlu0 %1112
  %1116 = vset.pattern.permute.xlu0 0
  %1117 = vperm.xlu0 %1116, %v937
  %v1118 = vpop.permute.xlu0 %1117
  %1121 = vset.pattern.permute.xlu0 0
  %1122 = vperm.xlu0 %1121, %v938
  %v1123 = vpop.permute.xlu0 %1122
  %1126 = vset.pattern.permute.xlu0 0
  %1127 = vperm.xlu0 %1126, %v939
  %v1128 = vpop.permute.xlu0 %1127
  %vm1130 = vcmask 130048
  %v1132 = vsel %vm1130, %v753, 0
  %v1135 = vsel %vm1130, %v757, 0
  %v1138 = vsel %vm1130, %v761, 0
  %v1141 = vsel %vm1130, %v765, 0
  %v1144 = vsel %vm1130, %v769, 0
  %v1147 = vsel %vm1130, %v773, 0
  %v1150 = vsel %vm1130, %v777, 0
  %v1153 = vsel %vm1130, %v781, 0
  %v1156 = vsel %vm1130, %v785, 0
  %v1159 = vsel %vm1130, %v789, 0
  %v1162 = vsel %vm1130, %v793, 0
  %v1165 = vsel %vm1130, %v797, 0
  %v1168 = vsel %vm1130, %v801, 0
  %v1171 = vsel %vm1130, %v805, 0
  %v1174 = vsel %vm1130, %v809, 0
  %v1177 = vsel %vm1130, %v813, 0
  %v1180 = vsel %vm1130, %v817, 0
  %v1183 = vsel %vm1130, %v821, 0
  %v1186 = vsel %vm1130, %v825, 0
  %v1189 = vsel %vm1130, %v829, 0
  %v1192 = vsel %vm1130, %v833, 0
  %v1195 = vsel %vm1130, %v837, 0
  %v1198 = vsel %vm1130, %v841, 0
  %v1201 = vsel %vm1130, %v845, 0
  %v1204 = vsel %vm1130, %v849, 0
  %v1207 = vsel %vm1130, %v853, 0
  %v1210 = vsel %vm1130, %v857, 0
  %v1213 = vsel %vm1130, %v861, 0
  %v1216 = vsel %vm1130, %v865, 0
  %v1219 = vsel %vm1130, %v869, 0
  %v1222 = vsel %vm1130, %v873, 0
  %v1225 = vsel %vm1130, %v877, 0
  %v1228 = vsel %vm1130, %v881, 0
  %v1231 = vsel %vm1130, %v885, 0
  %v1234 = vsel %vm1130, %v889, 0
  %v1237 = vsel %vm1130, %v893, 0
  %v1240 = vsel %vm1130, %v897, 0
  %v1243 = vsel %vm1130, %v901, 0
  %1245 = vmatpush.msra.mxu0 %v715
  %1246 = vmatpush.msra.mxu0 %v714
  %1247 = vmatpush.msra.mxu0 %v713
  %1248 = vmatpush.msra.mxu0 %v712
  %1249 = vmatpush.msra.mxu0 %v711
  %1250 = vmatpush.msra.mxu0 %v710
  %1251 = vmatpush.msra.mxu0 %v709
  %1252 = vmatpush.msra.mxu0 %v708
  %1253 = vmatpush.msra.mxu0 %v707
  %1254 = vmatpush.msra.mxu0 %v706
  %1255 = vmatpush.msra.mxu0 %v705
  %1256 = vmatpush.msra.mxu0 %v704
  %1257 = vmatpush.msra.mxu0 %v703
  %1258 = vmatpush.msra.mxu0 %v702
  %1259 = vmatpush.msra.mxu0 %v701
  %1260 = vmatpush.msra.mxu0 %v700
  %1261 = vmatmul.f32.gmra.mxu0 %v750
  %v1262 = vpop.f32.mrf.mxu0
  %v1263 = vadd.f32 %v943, %v1262
  %1264 = vmatmul.f32.gmra.mxu0 %v754
  %v1265 = vpop.f32.mrf.mxu0
  %v1266 = vadd.f32 %v948, %v1265
  %1267 = vmatmul.f32.gmra.mxu0 %v758
  %v1268 = vpop.f32.mrf.mxu0
  %v1269 = vadd.f32 %v953, %v1268
  %1270 = vmatmul.f32.gmra.mxu0 %v762
  %v1271 = vpop.f32.mrf.mxu0
  %v1272 = vadd.f32 %v958, %v1271
  %1273 = vmatmul.f32.gmra.mxu0 %v766
  %v1274 = vpop.f32.mrf.mxu0
  %v1275 = vadd.f32 %v963, %v1274
  %1276 = vmatmul.f32.gmra.mxu0 %v770
  %v1277 = vpop.f32.mrf.mxu0
  %v1278 = vadd.f32 %v968, %v1277
  %1279 = vmatmul.f32.gmra.mxu0 %v774
  %v1280 = vpop.f32.mrf.mxu0
  %v1281 = vadd.f32 %v973, %v1280
  %1282 = vmatmul.f32.gmra.mxu0 %v778
  %v1283 = vpop.f32.mrf.mxu0
  %v1284 = vadd.f32 %v978, %v1283
  %1285 = vmatmul.f32.gmra.mxu0 %v782
  %v1286 = vpop.f32.mrf.mxu0
  %v1287 = vadd.f32 %v983, %v1286
  %1288 = vmatmul.f32.gmra.mxu0 %v786
  %v1289 = vpop.f32.mrf.mxu0
  %v1290 = vadd.f32 %v988, %v1289
  %1291 = vmatmul.f32.gmra.mxu0 %v790
  %v1292 = vpop.f32.mrf.mxu0
  %v1293 = vadd.f32 %v993, %v1292
  %1294 = vmatmul.f32.gmra.mxu0 %v794
  %v1295 = vpop.f32.mrf.mxu0
  %v1296 = vadd.f32 %v998, %v1295
  %1297 = vmatmul.f32.gmra.mxu0 %v798
  %v1298 = vpop.f32.mrf.mxu0
  %v1299 = vadd.f32 %v1003, %v1298
  %1300 = vmatmul.f32.gmra.mxu0 %v802
  %v1301 = vpop.f32.mrf.mxu0
  %v1302 = vadd.f32 %v1008, %v1301
  %1303 = vmatmul.f32.gmra.mxu0 %v806
  %v1304 = vpop.f32.mrf.mxu0
  %v1305 = vadd.f32 %v1013, %v1304
  %1306 = vmatmul.f32.gmra.mxu0 %v810
  %v1307 = vpop.f32.mrf.mxu0
  %v1308 = vadd.f32 %v1018, %v1307
  %1309 = vmatmul.f32.gmra.mxu0 %v814
  %v1310 = vpop.f32.mrf.mxu0
  %v1311 = vadd.f32 %v1023, %v1310
  %1312 = vmatmul.f32.gmra.mxu0 %v818
  %v1313 = vpop.f32.mrf.mxu0
  %v1314 = vadd.f32 %v1028, %v1313
  %1315 = vmatmul.f32.gmra.mxu0 %v822
  %v1316 = vpop.f32.mrf.mxu0
  %v1317 = vadd.f32 %v1033, %v1316
  %1318 = vmatmul.f32.gmra.mxu0 %v826
  %v1319 = vpop.f32.mrf.mxu0
  %v1320 = vadd.f32 %v1038, %v1319
  %1321 = vmatmul.f32.gmra.mxu0 %v830
  %v1322 = vpop.f32.mrf.mxu0
  %v1323 = vadd.f32 %v1043, %v1322
  %1324 = vmatmul.f32.gmra.mxu0 %v834
  %v1325 = vpop.f32.mrf.mxu0
  %v1326 = vadd.f32 %v1048, %v1325
  %1327 = vmatmul.f32.gmra.mxu0 %v838
  %v1328 = vpop.f32.mrf.mxu0
  %v1329 = vadd.f32 %v1053, %v1328
  %1330 = vmatmul.f32.gmra.mxu0 %v842
  %v1331 = vpop.f32.mrf.mxu0
  %v1332 = vadd.f32 %v1058, %v1331
  %1333 = vmatmul.f32.gmra.mxu0 %v846
  %v1334 = vpop.f32.mrf.mxu0
  %v1335 = vadd.f32 %v1063, %v1334
  %1336 = vmatmul.f32.gmra.mxu0 %v850
  %v1337 = vpop.f32.mrf.mxu0
  %v1338 = vadd.f32 %v1068, %v1337
  %1339 = vmatmul.f32.gmra.mxu0 %v854
  %v1340 = vpop.f32.mrf.mxu0
  %v1341 = vadd.f32 %v1073, %v1340
  %1342 = vmatmul.f32.gmra.mxu0 %v858
  %v1343 = vpop.f32.mrf.mxu0
  %v1344 = vadd.f32 %v1078, %v1343
  %1345 = vmatmul.f32.gmra.mxu0 %v862
  %v1346 = vpop.f32.mrf.mxu0
  %v1347 = vadd.f32 %v1083, %v1346
  %1348 = vmatmul.f32.gmra.mxu0 %v866
  %v1349 = vpop.f32.mrf.mxu0
  %v1350 = vadd.f32 %v1088, %v1349
  %1351 = vmatmul.f32.gmra.mxu0 %v870
  %v1352 = vpop.f32.mrf.mxu0
  %v1353 = vadd.f32 %v1093, %v1352
  %1354 = vmatmul.f32.gmra.mxu0 %v874
  %v1355 = vpop.f32.mrf.mxu0
  %v1356 = vadd.f32 %v1098, %v1355
  %1357 = vmatmul.f32.gmra.mxu0 %v878
  %v1358 = vpop.f32.mrf.mxu0
  %v1359 = vadd.f32 %v1103, %v1358
  %1360 = vmatmul.f32.gmra.mxu0 %v882
  %v1361 = vpop.f32.mrf.mxu0
  %v1362 = vadd.f32 %v1108, %v1361
  %1363 = vmatmul.f32.gmra.mxu0 %v886
  %v1364 = vpop.f32.mrf.mxu0
  %v1365 = vadd.f32 %v1113, %v1364
  %1366 = vmatmul.f32.gmra.mxu0 %v890
  %v1367 = vpop.f32.mrf.mxu0
  %v1368 = vadd.f32 %v1118, %v1367
  %1369 = vmatmul.f32.gmra.mxu0 %v894
  %v1370 = vpop.f32.mrf.mxu0
  %v1371 = vadd.f32 %v1123, %v1370
  %1372 = vmatmul.f32.gmra.mxu0 %v898
  %v1373 = vpop.f32.mrf.mxu0
  %v1374 = vadd.f32 %v1128, %v1373
  %1375 = vdwg.mxu0
  %1376 = vmatpush.msra.mxu0 %v731
  %1377 = vmatpush.msra.mxu0 %v730
  %1378 = vmatpush.msra.mxu0 %v729
  %1379 = vmatpush.msra.mxu0 %v728
  %1380 = vmatpush.msra.mxu0 %v727
  %1381 = vmatpush.msra.mxu0 %v726
  %1382 = vmatpush.msra.mxu0 %v725
  %1383 = vmatpush.msra.mxu0 %v724
  %1384 = vmatpush.msra.mxu0 %v723
  %1385 = vmatpush.msra.mxu0 %v722
  %1386 = vmatpush.msra.mxu0 %v721
  %1387 = vmatpush.msra.mxu0 %v720
  %1388 = vmatpush.msra.mxu0 %v719
  %1389 = vmatpush.msra.mxu0 %v718
  %1390 = vmatpush.msra.mxu0 %v717
  %1391 = vmatpush.msra.mxu0 %v716
  %1392 = vmatmul.f32.gmra.mxu0 %v751
  %v1393 = vpop.f32.mrf.mxu0
  %v1394 = vadd.f32 %v1263, %v1393
  %1395 = vmatmul.f32.gmra.mxu0 %v755
  %v1396 = vpop.f32.mrf.mxu0
  %v1397 = vadd.f32 %v1266, %v1396
  %1398 = vmatmul.f32.gmra.mxu0 %v759
  %v1399 = vpop.f32.mrf.mxu0
  %v1400 = vadd.f32 %v1269, %v1399
  %1401 = vmatmul.f32.gmra.mxu0 %v763
  %v1402 = vpop.f32.mrf.mxu0
  %v1403 = vadd.f32 %v1272, %v1402
  %1404 = vmatmul.f32.gmra.mxu0 %v767
  %v1405 = vpop.f32.mrf.mxu0
  %v1406 = vadd.f32 %v1275, %v1405
  %1407 = vmatmul.f32.gmra.mxu0 %v771
  %v1408 = vpop.f32.mrf.mxu0
  %v1409 = vadd.f32 %v1278, %v1408
  %1410 = vmatmul.f32.gmra.mxu0 %v775
  %v1411 = vpop.f32.mrf.mxu0
  %v1412 = vadd.f32 %v1281, %v1411
  %1413 = vmatmul.f32.gmra.mxu0 %v779
  %v1414 = vpop.f32.mrf.mxu0
  %v1415 = vadd.f32 %v1284, %v1414
  %1416 = vmatmul.f32.gmra.mxu0 %v783
  %v1417 = vpop.f32.mrf.mxu0
  %v1418 = vadd.f32 %v1287, %v1417
  %1419 = vmatmul.f32.gmra.mxu0 %v787
  %v1420 = vpop.f32.mrf.mxu0
  %v1421 = vadd.f32 %v1290, %v1420
  %1422 = vmatmul.f32.gmra.mxu0 %v791
  %v1423 = vpop.f32.mrf.mxu0
  %v1424 = vadd.f32 %v1293, %v1423
  %1425 = vmatmul.f32.gmra.mxu0 %v795
  %v1426 = vpop.f32.mrf.mxu0
  %v1427 = vadd.f32 %v1296, %v1426
  %1428 = vmatmul.f32.gmra.mxu0 %v799
  %v1429 = vpop.f32.mrf.mxu0
  %v1430 = vadd.f32 %v1299, %v1429
  %1431 = vmatmul.f32.gmra.mxu0 %v803
  %v1432 = vpop.f32.mrf.mxu0
  %v1433 = vadd.f32 %v1302, %v1432
  %1434 = vmatmul.f32.gmra.mxu0 %v807
  %v1435 = vpop.f32.mrf.mxu0
  %v1436 = vadd.f32 %v1305, %v1435
  %1437 = vmatmul.f32.gmra.mxu0 %v811
  %v1438 = vpop.f32.mrf.mxu0
  %v1439 = vadd.f32 %v1308, %v1438
  %1440 = vmatmul.f32.gmra.mxu0 %v815
  %v1441 = vpop.f32.mrf.mxu0
  %v1442 = vadd.f32 %v1311, %v1441
  %1443 = vmatmul.f32.gmra.mxu0 %v819
  %v1444 = vpop.f32.mrf.mxu0
  %v1445 = vadd.f32 %v1314, %v1444
  %1446 = vmatmul.f32.gmra.mxu0 %v823
  %v1447 = vpop.f32.mrf.mxu0
  %v1448 = vadd.f32 %v1317, %v1447
  %1449 = vmatmul.f32.gmra.mxu0 %v827
  %v1450 = vpop.f32.mrf.mxu0
  %v1451 = vadd.f32 %v1320, %v1450
  %1452 = vmatmul.f32.gmra.mxu0 %v831
  %v1453 = vpop.f32.mrf.mxu0
  %v1454 = vadd.f32 %v1323, %v1453
  %1455 = vmatmul.f32.gmra.mxu0 %v835
  %v1456 = vpop.f32.mrf.mxu0
  %v1457 = vadd.f32 %v1326, %v1456
  %1458 = vmatmul.f32.gmra.mxu0 %v839
  %v1459 = vpop.f32.mrf.mxu0
  %v1460 = vadd.f32 %v1329, %v1459
  %1461 = vmatmul.f32.gmra.mxu0 %v843
  %v1462 = vpop.f32.mrf.mxu0
  %v1463 = vadd.f32 %v1332, %v1462
  %1464 = vmatmul.f32.gmra.mxu0 %v847
  %v1465 = vpop.f32.mrf.mxu0
  %v1466 = vadd.f32 %v1335, %v1465
  %1467 = vmatmul.f32.gmra.mxu0 %v851
  %v1468 = vpop.f32.mrf.mxu0
  %v1469 = vadd.f32 %v1338, %v1468
  %1470 = vmatmul.f32.gmra.mxu0 %v855
  %v1471 = vpop.f32.mrf.mxu0
  %v1472 = vadd.f32 %v1341, %v1471
  %1473 = vmatmul.f32.gmra.mxu0 %v859
  %v1474 = vpop.f32.mrf.mxu0
  %v1475 = vadd.f32 %v1344, %v1474
  %1476 = vmatmul.f32.gmra.mxu0 %v863
  %v1477 = vpop.f32.mrf.mxu0
  %v1478 = vadd.f32 %v1347, %v1477
  %1479 = vmatmul.f32.gmra.mxu0 %v867
  %v1480 = vpop.f32.mrf.mxu0
  %v1481 = vadd.f32 %v1350, %v1480
  %1482 = vmatmul.f32.gmra.mxu0 %v871
  %v1483 = vpop.f32.mrf.mxu0
  %v1484 = vadd.f32 %v1353, %v1483
  %1485 = vmatmul.f32.gmra.mxu0 %v875
  %v1486 = vpop.f32.mrf.mxu0
  %v1487 = vadd.f32 %v1356, %v1486
  %1488 = vmatmul.f32.gmra.mxu0 %v879
  %v1489 = vpop.f32.mrf.mxu0
  %v1490 = vadd.f32 %v1359, %v1489
  %1491 = vmatmul.f32.gmra.mxu0 %v883
  %v1492 = vpop.f32.mrf.mxu0
  %v1493 = vadd.f32 %v1362, %v1492
  %1494 = vmatmul.f32.gmra.mxu0 %v887
  %v1495 = vpop.f32.mrf.mxu0
  %v1496 = vadd.f32 %v1365, %v1495
  %1497 = vmatmul.f32.gmra.mxu0 %v891
  %v1498 = vpop.f32.mrf.mxu0
  %v1499 = vadd.f32 %v1368, %v1498
  %1500 = vmatmul.f32.gmra.mxu0 %v895
  %v1501 = vpop.f32.mrf.mxu0
  %v1502 = vadd.f32 %v1371, %v1501
  %1503 = vmatmul.f32.gmra.mxu0 %v899
  %v1504 = vpop.f32.mrf.mxu0
  %v1505 = vadd.f32 %v1374, %v1504
  %1506 = vdwg.mxu0
  %1507 = vmatpush.msra.mxu0 %v747
  %1508 = vmatpush.msra.mxu0 %v746
  %1509 = vmatpush.msra.mxu0 %v745
  %1510 = vmatpush.msra.mxu0 %v744
  %1511 = vmatpush.msra.mxu0 %v743
  %1512 = vmatpush.msra.mxu0 %v742
  %1513 = vmatpush.msra.mxu0 %v741
  %1514 = vmatpush.msra.mxu0 %v740
  %1515 = vmatpush.msra.mxu0 %v739
  %1516 = vmatpush.msra.mxu0 %v738
  %1517 = vmatpush.msra.mxu0 %v737
  %1518 = vmatpush.msra.mxu0 %v736
  %1519 = vmatpush.msra.mxu0 %v735
  %1520 = vmatpush.msra.mxu0 %v734
  %1521 = vmatpush.msra.mxu0 %v733
  %1522 = vmatpush.msra.mxu0 %v732
  %1523 = vmatmul.f32.gmra.mxu0 %v752
  %v1524 = vpop.f32.mrf.mxu0
  %v1525 = vadd.f32 %v1394, %v1524
  %1526 = vmatmul.f32.gmra.mxu0 %v756
  %v1527 = vpop.f32.mrf.mxu0
  %v1528 = vadd.f32 %v1397, %v1527
  %1529 = vmatmul.f32.gmra.mxu0 %v760
  %v1530 = vpop.f32.mrf.mxu0
  %v1531 = vadd.f32 %v1400, %v1530
  %1532 = vmatmul.f32.gmra.mxu0 %v764
  %v1533 = vpop.f32.mrf.mxu0
  %v1534 = vadd.f32 %v1403, %v1533
  %1535 = vmatmul.f32.gmra.mxu0 %v768
  %v1536 = vpop.f32.mrf.mxu0
  %v1537 = vadd.f32 %v1406, %v1536
  %1538 = vmatmul.f32.gmra.mxu0 %v772
  %v1539 = vpop.f32.mrf.mxu0
  %v1540 = vadd.f32 %v1409, %v1539
  %1541 = vmatmul.f32.gmra.mxu0 %v776
  %v1542 = vpop.f32.mrf.mxu0
  %v1543 = vadd.f32 %v1412, %v1542
  %1544 = vmatmul.f32.gmra.mxu0 %v780
  %v1545 = vpop.f32.mrf.mxu0
  %v1546 = vadd.f32 %v1415, %v1545
  %1547 = vmatmul.f32.gmra.mxu0 %v784
  %v1548 = vpop.f32.mrf.mxu0
  %v1549 = vadd.f32 %v1418, %v1548
  %1550 = vmatmul.f32.gmra.mxu0 %v788
  %v1551 = vpop.f32.mrf.mxu0
  %v1552 = vadd.f32 %v1421, %v1551
  %1553 = vmatmul.f32.gmra.mxu0 %v792
  %v1554 = vpop.f32.mrf.mxu0
  %v1555 = vadd.f32 %v1424, %v1554
  %1556 = vmatmul.f32.gmra.mxu0 %v796
  %v1557 = vpop.f32.mrf.mxu0
  %v1558 = vadd.f32 %v1427, %v1557
  %1559 = vmatmul.f32.gmra.mxu0 %v800
  %v1560 = vpop.f32.mrf.mxu0
  %v1561 = vadd.f32 %v1430, %v1560
  %1562 = vmatmul.f32.gmra.mxu0 %v804
  %v1563 = vpop.f32.mrf.mxu0
  %v1564 = vadd.f32 %v1433, %v1563
  %1565 = vmatmul.f32.gmra.mxu0 %v808
  %v1566 = vpop.f32.mrf.mxu0
  %v1567 = vadd.f32 %v1436, %v1566
  %1568 = vmatmul.f32.gmra.mxu0 %v812
  %v1569 = vpop.f32.mrf.mxu0
  %v1570 = vadd.f32 %v1439, %v1569
  %1571 = vmatmul.f32.gmra.mxu0 %v816
  %v1572 = vpop.f32.mrf.mxu0
  %v1573 = vadd.f32 %v1442, %v1572
  %1574 = vmatmul.f32.gmra.mxu0 %v820
  %v1575 = vpop.f32.mrf.mxu0
  %v1576 = vadd.f32 %v1445, %v1575
  %1577 = vmatmul.f32.gmra.mxu0 %v824
  %v1578 = vpop.f32.mrf.mxu0
  %v1579 = vadd.f32 %v1448, %v1578
  %1580 = vmatmul.f32.gmra.mxu0 %v828
  %v1581 = vpop.f32.mrf.mxu0
  %v1582 = vadd.f32 %v1451, %v1581
  %1583 = vmatmul.f32.gmra.mxu0 %v832
  %v1584 = vpop.f32.mrf.mxu0
  %v1585 = vadd.f32 %v1454, %v1584
  %1586 = vmatmul.f32.gmra.mxu0 %v836
  %v1587 = vpop.f32.mrf.mxu0
  %v1588 = vadd.f32 %v1457, %v1587
  %1589 = vmatmul.f32.gmra.mxu0 %v840
  %v1590 = vpop.f32.mrf.mxu0
  %v1591 = vadd.f32 %v1460, %v1590
  %1592 = vmatmul.f32.gmra.mxu0 %v844
  %v1593 = vpop.f32.mrf.mxu0
  %v1594 = vadd.f32 %v1463, %v1593
  %1595 = vmatmul.f32.gmra.mxu0 %v848
  %v1596 = vpop.f32.mrf.mxu0
  %v1597 = vadd.f32 %v1466, %v1596
  %1598 = vmatmul.f32.gmra.mxu0 %v852
  %v1599 = vpop.f32.mrf.mxu0
  %v1600 = vadd.f32 %v1469, %v1599
  %1601 = vmatmul.f32.gmra.mxu0 %v856
  %v1602 = vpop.f32.mrf.mxu0
  %v1603 = vadd.f32 %v1472, %v1602
  %1604 = vmatmul.f32.gmra.mxu0 %v860
  %v1605 = vpop.f32.mrf.mxu0
  %v1606 = vadd.f32 %v1475, %v1605
  %1607 = vmatmul.f32.gmra.mxu0 %v864
  %v1608 = vpop.f32.mrf.mxu0
  %v1609 = vadd.f32 %v1478, %v1608
  %1610 = vmatmul.f32.gmra.mxu0 %v868
  %v1611 = vpop.f32.mrf.mxu0
  %v1612 = vadd.f32 %v1481, %v1611
  %1613 = vmatmul.f32.gmra.mxu0 %v872
  %v1614 = vpop.f32.mrf.mxu0
  %v1615 = vadd.f32 %v1484, %v1614
  %1616 = vmatmul.f32.gmra.mxu0 %v876
  %v1617 = vpop.f32.mrf.mxu0
  %v1618 = vadd.f32 %v1487, %v1617
  %1619 = vmatmul.f32.gmra.mxu0 %v880
  %v1620 = vpop.f32.mrf.mxu0
  %v1621 = vadd.f32 %v1490, %v1620
  %1622 = vmatmul.f32.gmra.mxu0 %v884
  %v1623 = vpop.f32.mrf.mxu0
  %v1624 = vadd.f32 %v1493, %v1623
  %1625 = vmatmul.f32.gmra.mxu0 %v888
  %v1626 = vpop.f32.mrf.mxu0
  %v1627 = vadd.f32 %v1496, %v1626
  %1628 = vmatmul.f32.gmra.mxu0 %v892
  %v1629 = vpop.f32.mrf.mxu0
  %v1630 = vadd.f32 %v1499, %v1629
  %1631 = vmatmul.f32.gmra.mxu0 %v896
  %v1632 = vpop.f32.mrf.mxu0
  %v1633 = vadd.f32 %v1502, %v1632
  %1634 = vmatmul.f32.gmra.mxu0 %v900
  %v1635 = vpop.f32.mrf.mxu0
  %v1636 = vadd.f32 %v1505, %v1635
  %1637 = vdwg.mxu0
  %1638 = vmatpush.msra.mxu0 0.0
  %1639 = vmatpush.msra.mxu0 0.0
  %1640 = vmatpush.msra.mxu0 0.0
  %1641 = vmatpush.msra.mxu0 0.0
  %1642 = vmatpush.msra.mxu0 0.0
  %1643 = vmatpush.msra.mxu0 0.0
  %1644 = vmatpush.msra.mxu0 0.0
  %1645 = vmatpush.msra.mxu0 0.0
  %1646 = vmatpush.msra.mxu0 0.0
  %1647 = vmatpush.msra.mxu0 0.0
  %1648 = vmatpush.msra.mxu0 0.0
  %1649 = vmatpush.msra.mxu0 0.0
  %1650 = vmatpush.msra.mxu0 0.0
  %1651 = vmatpush.msra.mxu0 0.0
  %1652 = vmatpush.msra.mxu0 %v749
  %1653 = vmatpush.msra.mxu0 %v748
  %1654 = vmatmul.f32.gmra.mxu0 %v1132
  %v1655 = vpop.f32.mrf.mxu0
  %v1656 = vadd.f32 %v1525, %v1655
  %1657 = vmatmul.f32.gmra.mxu0 %v1135
  %v1658 = vpop.f32.mrf.mxu0
  %v1659 = vadd.f32 %v1528, %v1658
  %1660 = vmatmul.f32.gmra.mxu0 %v1138
  %v1661 = vpop.f32.mrf.mxu0
  %v1662 = vadd.f32 %v1531, %v1661
  %1663 = vmatmul.f32.gmra.mxu0 %v1141
  %v1664 = vpop.f32.mrf.mxu0
  %v1665 = vadd.f32 %v1534, %v1664
  %1666 = vmatmul.f32.gmra.mxu0 %v1144
  %v1667 = vpop.f32.mrf.mxu0
  %v1668 = vadd.f32 %v1537, %v1667
  %1669 = vmatmul.f32.gmra.mxu0 %v1147
  %v1670 = vpop.f32.mrf.mxu0
  %v1671 = vadd.f32 %v1540, %v1670
  %1672 = vmatmul.f32.gmra.mxu0 %v1150
  %v1673 = vpop.f32.mrf.mxu0
  %v1674 = vadd.f32 %v1543, %v1673
  %1675 = vmatmul.f32.gmra.mxu0 %v1153
  %v1676 = vpop.f32.mrf.mxu0
  %v1677 = vadd.f32 %v1546, %v1676
  %1678 = vmatmul.f32.gmra.mxu0 %v1156
  %v1679 = vpop.f32.mrf.mxu0
  %v1680 = vadd.f32 %v1549, %v1679
  %1681 = vmatmul.f32.gmra.mxu0 %v1159
  %v1682 = vpop.f32.mrf.mxu0
  %v1683 = vadd.f32 %v1552, %v1682
  %1684 = vmatmul.f32.gmra.mxu0 %v1162
  %v1685 = vpop.f32.mrf.mxu0
  %v1686 = vadd.f32 %v1555, %v1685
  %1687 = vmatmul.f32.gmra.mxu0 %v1165
  %v1688 = vpop.f32.mrf.mxu0
  %v1689 = vadd.f32 %v1558, %v1688
  %1690 = vmatmul.f32.gmra.mxu0 %v1168
  %v1691 = vpop.f32.mrf.mxu0
  %v1692 = vadd.f32 %v1561, %v1691
  %1693 = vmatmul.f32.gmra.mxu0 %v1171
  %v1694 = vpop.f32.mrf.mxu0
  %v1695 = vadd.f32 %v1564, %v1694
  %1696 = vmatmul.f32.gmra.mxu0 %v1174
  %v1697 = vpop.f32.mrf.mxu0
  %v1698 = vadd.f32 %v1567, %v1697
  %1699 = vmatmul.f32.gmra.mxu0 %v1177
  %v1700 = vpop.f32.mrf.mxu0
  %v1701 = vadd.f32 %v1570, %v1700
  %1702 = vmatmul.f32.gmra.mxu0 %v1180
  %v1703 = vpop.f32.mrf.mxu0
  %v1704 = vadd.f32 %v1573, %v1703
  %1705 = vmatmul.f32.gmra.mxu0 %v1183
  %v1706 = vpop.f32.mrf.mxu0
  %v1707 = vadd.f32 %v1576, %v1706
  %1708 = vmatmul.f32.gmra.mxu0 %v1186
  %v1709 = vpop.f32.mrf.mxu0
  %v1710 = vadd.f32 %v1579, %v1709
  %1711 = vmatmul.f32.gmra.mxu0 %v1189
  %v1712 = vpop.f32.mrf.mxu0
  %v1713 = vadd.f32 %v1582, %v1712
  %1714 = vmatmul.f32.gmra.mxu0 %v1192
  %v1715 = vpop.f32.mrf.mxu0
  %v1716 = vadd.f32 %v1585, %v1715
  %1717 = vmatmul.f32.gmra.mxu0 %v1195
  %v1718 = vpop.f32.mrf.mxu0
  %v1719 = vadd.f32 %v1588, %v1718
  %1720 = vmatmul.f32.gmra.mxu0 %v1198
  %v1721 = vpop.f32.mrf.mxu0
  %v1722 = vadd.f32 %v1591, %v1721
  %1723 = vmatmul.f32.gmra.mxu0 %v1201
  %v1724 = vpop.f32.mrf.mxu0
  %v1725 = vadd.f32 %v1594, %v1724
  %1726 = vmatmul.f32.gmra.mxu0 %v1204
  %v1727 = vpop.f32.mrf.mxu0
  %v1728 = vadd.f32 %v1597, %v1727
  %1729 = vmatmul.f32.gmra.mxu0 %v1207
  %v1730 = vpop.f32.mrf.mxu0
  %v1731 = vadd.f32 %v1600, %v1730
  %1732 = vmatmul.f32.gmra.mxu0 %v1210
  %v1733 = vpop.f32.mrf.mxu0
  %v1734 = vadd.f32 %v1603, %v1733
  %1735 = vmatmul.f32.gmra.mxu0 %v1213
  %v1736 = vpop.f32.mrf.mxu0
  %v1737 = vadd.f32 %v1606, %v1736
  %1738 = vmatmul.f32.gmra.mxu0 %v1216
  %v1739 = vpop.f32.mrf.mxu0
  %v1740 = vadd.f32 %v1609, %v1739
  %1741 = vmatmul.f32.gmra.mxu0 %v1219
  %v1742 = vpop.f32.mrf.mxu0
  %v1743 = vadd.f32 %v1612, %v1742
  %1744 = vmatmul.f32.gmra.mxu0 %v1222
  %v1745 = vpop.f32.mrf.mxu0
  %v1746 = vadd.f32 %v1615, %v1745
  %1747 = vmatmul.f32.gmra.mxu0 %v1225
  %v1748 = vpop.f32.mrf.mxu0
  %v1749 = vadd.f32 %v1618, %v1748
  %1750 = vmatmul.f32.gmra.mxu0 %v1228
  %v1751 = vpop.f32.mrf.mxu0
  %v1752 = vadd.f32 %v1621, %v1751
  %1753 = vmatmul.f32.gmra.mxu0 %v1231
  %v1754 = vpop.f32.mrf.mxu0
  %v1755 = vadd.f32 %v1624, %v1754
  %1756 = vmatmul.f32.gmra.mxu0 %v1234
  %v1757 = vpop.f32.mrf.mxu0
  %v1758 = vadd.f32 %v1627, %v1757
  %1759 = vmatmul.f32.gmra.mxu0 %v1237
  %v1760 = vpop.f32.mrf.mxu0
  %v1761 = vadd.f32 %v1630, %v1760
  %1762 = vmatmul.f32.gmra.mxu0 %v1240
  %v1763 = vpop.f32.mrf.mxu0
  %v1764 = vadd.f32 %v1633, %v1763
  %1765 = vmatmul.f32.gmra.mxu0 %v1243
  %v1766 = vpop.f32.mrf.mxu0
  %v1767 = vadd.f32 %v1636, %v1766
  %1768 = vdwg.mxu0
  %v1769 = vmax.f32 %v1656, 0.0
  %v1770 = vmax.f32 %v1659, 0.0
  %v1771 = vmax.f32 %v1662, 0.0
  %v1772 = vmax.f32 %v1665, 0.0
  %v1773 = vmax.f32 %v1668, 0.0
  %v1774 = vmax.f32 %v1671, 0.0
  %v1775 = vmax.f32 %v1674, 0.0
  %v1776 = vmax.f32 %v1677, 0.0
  %v1777 = vmax.f32 %v1680, 0.0
  %v1778 = vmax.f32 %v1683, 0.0
  %v1779 = vmax.f32 %v1686, 0.0
  %v1780 = vmax.f32 %v1689, 0.0
  %v1781 = vmax.f32 %v1692, 0.0
  %v1782 = vmax.f32 %v1695, 0.0
  %v1783 = vmax.f32 %v1698, 0.0
  %v1784 = vmax.f32 %v1701, 0.0
  %v1785 = vmax.f32 %v1704, 0.0
  %v1786 = vmax.f32 %v1707, 0.0
  %v1787 = vmax.f32 %v1710, 0.0
  %v1788 = vmax.f32 %v1713, 0.0
  %v1789 = vmax.f32 %v1716, 0.0
  %v1790 = vmax.f32 %v1719, 0.0
  %v1791 = vmax.f32 %v1722, 0.0
  %v1792 = vmax.f32 %v1725, 0.0
  %v1793 = vmax.f32 %v1728, 0.0
  %v1794 = vmax.f32 %v1731, 0.0
  %v1795 = vmax.f32 %v1734, 0.0
  %v1796 = vmax.f32 %v1737, 0.0
  %v1797 = vmax.f32 %v1740, 0.0
  %v1798 = vmax.f32 %v1743, 0.0
  %v1799 = vmax.f32 %v1746, 0.0
  %v1800 = vmax.f32 %v1749, 0.0
  %v1801 = vmax.f32 %v1752, 0.0
  %v1802 = vmax.f32 %v1755, 0.0
  %v1803 = vmax.f32 %v1758, 0.0
  %v1804 = vmax.f32 %v1761, 0.0
  %v1805 = vmax.f32 %v1764, 0.0
  %v1806 = vmax.f32 %v1767, 0.0
  %v1807 = vld [vmem:[%s5] sm:$0xff]
  %v1808 = vld [vmem:[%s5 + $0x8] sm:$0xff]
  %v1809 = vld [vmem:[%s5 + $0x10] sm:$0xff]
  %v1810 = vld [vmem:[%s5 + $0x18] sm:$0xff]
  %v1811 = vld [vmem:[%s5 + $0x20] sm:$0xff]
  %v1812 = vld [vmem:[%s5 + $0x28] sm:$0xff]
  %v1813 = vld [vmem:[%s5 + $0x30] sm:$0xff]
  %v1814 = vld [vmem:[%s5 + $0x38] sm:$0xff]
  %v1815 = vld [vmem:[%s5 + $0x40] sm:$0xff]
  %v1816 = vld [vmem:[%s5 + $0x48] sm:$0xff]
  %v1817 = vld [vmem:[%s5 + $0x50] sm:$0xff]
  %v1818 = vld [vmem:[%s5 + $0x58] sm:$0xff]
  %v1819 = vld [vmem:[%s5 + $0x60] sm:$0xff]
  %v1820 = vld [vmem:[%s5 + $0x68] sm:$0xff]
  %v1821 = vld [vmem:[%s5 + $0x70] sm:$0xff]
  %v1822 = vld [vmem:[%s5 + $0x78] sm:$0xff]
  %v1823 = vld [vmem:[%s5 + $0x80] sm:$0xff]
  %v1824 = vld [vmem:[%s5 + $0x88] sm:$0xff]
  %v1825 = vld [vmem:[%s5 + $0x90] sm:$0xff]
  %v1826 = vld [vmem:[%s5 + $0x98] sm:$0xff]
  %v1827 = vld [vmem:[%s5 + $0xa0] sm:$0xff]
  %v1828 = vld [vmem:[%s5 + $0xa8] sm:$0xff]
  %v1829 = vld [vmem:[%s5 + $0xb0] sm:$0xff]
  %v1830 = vld [vmem:[%s5 + $0xb8] sm:$0xff]
  %v1831 = vld [vmem:[%s5 + $0xc0] sm:$0xff]
  %v1832 = vld [vmem:[%s5 + $0xc8] sm:$0xff]
  %v1833 = vld [vmem:[%s5 + $0xd0] sm:$0xff]
  %v1834 = vld [vmem:[%s5 + $0xd8] sm:$0xff]
  %v1835 = vld [vmem:[%s5 + $0xe0] sm:$0xff]
  %v1836 = vld [vmem:[%s5 + $0xe8] sm:$0xff]
  %v1837 = vld [vmem:[%s5 + $0xf0] sm:$0xff]
  %v1838 = vld [vmem:[%s5 + $0xf8] sm:$0xff]
  %v1839 = vld [vmem:[%s5 + $0x100] sm:$0xff]
  %v1840 = vld [vmem:[%s5 + $0x108] sm:$0xff]
  %v1841 = vld [vmem:[%s5 + $0x110] sm:$0xff]
  %v1842 = vld [vmem:[%s5 + $0x118] sm:$0xff]
  %v1843 = vld [vmem:[%s5 + $0x120] sm:$0xff]
  %v1844 = vld [vmem:[%s5 + $0x128] sm:$0xf]
  %1846 = vset.pattern.permute.xlu0 0
  %1847 = vperm.xlu0 %1846, %v1807
  %v1848 = vpop.permute.xlu0 %1847
  %1851 = vset.pattern.permute.xlu0 0
  %1852 = vperm.xlu0 %1851, %v1808
  %v1853 = vpop.permute.xlu0 %1852
  %1856 = vset.pattern.permute.xlu0 0
  %1857 = vperm.xlu0 %1856, %v1809
  %v1858 = vpop.permute.xlu0 %1857
  %1861 = vset.pattern.permute.xlu0 0
  %1862 = vperm.xlu0 %1861, %v1810
  %v1863 = vpop.permute.xlu0 %1862
  %1866 = vset.pattern.permute.xlu0 0
  %1867 = vperm.xlu0 %1866, %v1811
  %v1868 = vpop.permute.xlu0 %1867
  %1871 = vset.pattern.permute.xlu0 0
  %1872 = vperm.xlu0 %1871, %v1812
  %v1873 = vpop.permute.xlu0 %1872
  %1876 = vset.pattern.permute.xlu0 0
  %1877 = vperm.xlu0 %1876, %v1813
  %v1878 = vpop.permute.xlu0 %1877
  %1881 = vset.pattern.permute.xlu0 0
  %1882 = vperm.xlu0 %1881, %v1814
  %v1883 = vpop.permute.xlu0 %1882
  %1886 = vset.pattern.permute.xlu0 0
  %1887 = vperm.xlu0 %1886, %v1815
  %v1888 = vpop.permute.xlu0 %1887
  %1891 = vset.pattern.permute.xlu0 0
  %1892 = vperm.xlu0 %1891, %v1816
  %v1893 = vpop.permute.xlu0 %1892
  %1896 = vset.pattern.permute.xlu0 0
  %1897 = vperm.xlu0 %1896, %v1817
  %v1898 = vpop.permute.xlu0 %1897
  %1901 = vset.pattern.permute.xlu0 0
  %1902 = vperm.xlu0 %1901, %v1818
  %v1903 = vpop.permute.xlu0 %1902
  %1906 = vset.pattern.permute.xlu0 0
  %1907 = vperm.xlu0 %1906, %v1819
  %v1908 = vpop.permute.xlu0 %1907
  %1911 = vset.pattern.permute.xlu0 0
  %1912 = vperm.xlu0 %1911, %v1820
  %v1913 = vpop.permute.xlu0 %1912
  %1916 = vset.pattern.permute.xlu0 0
  %1917 = vperm.xlu0 %1916, %v1821
  %v1918 = vpop.permute.xlu0 %1917
  %1921 = vset.pattern.permute.xlu0 0
  %1922 = vperm.xlu0 %1921, %v1822
  %v1923 = vpop.permute.xlu0 %1922
  %1926 = vset.pattern.permute.xlu0 0
  %1927 = vperm.xlu0 %1926, %v1823
  %v1928 = vpop.permute.xlu0 %1927
  %1931 = vset.pattern.permute.xlu0 0
  %1932 = vperm.xlu0 %1931, %v1824
  %v1933 = vpop.permute.xlu0 %1932
  %1936 = vset.pattern.permute.xlu0 0
  %1937 = vperm.xlu0 %1936, %v1825
  %v1938 = vpop.permute.xlu0 %1937
  %1941 = vset.pattern.permute.xlu0 0
  %1942 = vperm.xlu0 %1941, %v1826
  %v1943 = vpop.permute.xlu0 %1942
  %1946 = vset.pattern.permute.xlu0 0
  %1947 = vperm.xlu0 %1946, %v1827
  %v1948 = vpop.permute.xlu0 %1947
  %1951 = vset.pattern.permute.xlu0 0
  %1952 = vperm.xlu0 %1951, %v1828
  %v1953 = vpop.permute.xlu0 %1952
  %1956 = vset.pattern.permute.xlu0 0
  %1957 = vperm.xlu0 %1956, %v1829
  %v1958 = vpop.permute.xlu0 %1957
  %1961 = vset.pattern.permute.xlu0 0
  %1962 = vperm.xlu0 %1961, %v1830
  %v1963 = vpop.permute.xlu0 %1962
  %1966 = vset.pattern.permute.xlu0 0
  %1967 = vperm.xlu0 %1966, %v1831
  %v1968 = vpop.permute.xlu0 %1967
  %1971 = vset.pattern.permute.xlu0 0
  %1972 = vperm.xlu0 %1971, %v1832
  %v1973 = vpop.permute.xlu0 %1972
  %1976 = vset.pattern.permute.xlu0 0
  %1977 = vperm.xlu0 %1976, %v1833
  %v1978 = vpop.permute.xlu0 %1977
  %1981 = vset.pattern.permute.xlu0 0
  %1982 = vperm.xlu0 %1981, %v1834
  %v1983 = vpop.permute.xlu0 %1982
  %1986 = vset.pattern.permute.xlu0 0
  %1987 = vperm.xlu0 %1986, %v1835
  %v1988 = vpop.permute.xlu0 %1987
  %1991 = vset.pattern.permute.xlu0 0
  %1992 = vperm.xlu0 %1991, %v1836
  %v1993 = vpop.permute.xlu0 %1992
  %1996 = vset.pattern.permute.xlu0 0
  %1997 = vperm.xlu0 %1996, %v1837
  %v1998 = vpop.permute.xlu0 %1997
  %2001 = vset.pattern.permute.xlu0 0
  %2002 = vperm.xlu0 %2001, %v1838
  %v2003 = vpop.permute.xlu0 %2002
  %2006 = vset.pattern.permute.xlu0 0
  %2007 = vperm.xlu0 %2006, %v1839
  %v2008 = vpop.permute.xlu0 %2007
  %2011 = vset.pattern.permute.xlu0 0
  %2012 = vperm.xlu0 %2011, %v1840
  %v2013 = vpop.permute.xlu0 %2012
  %2016 = vset.pattern.permute.xlu0 0
  %2017 = vperm.xlu0 %2016, %v1841
  %v2018 = vpop.permute.xlu0 %2017
  %2021 = vset.pattern.permute.xlu0 0
  %2022 = vperm.xlu0 %2021, %v1842
  %v2023 = vpop.permute.xlu0 %2022
  %2026 = vset.pattern.permute.xlu0 0
  %2027 = vperm.xlu0 %2026, %v1843
  %v2028 = vpop.permute.xlu0 %2027
  %2031 = vset.pattern.permute.xlu0 0
  %2032 = vperm.xlu0 %2031, %v1844
  %v2033 = vpop.permute.xlu0 %2032
  %v2035 = vmul.f32 %v1769, %v1848
  %v2036 = vmul.f32 %v1770, %v1853
  %v2037 = vmul.f32 %v1771, %v1858
  %v2038 = vmul.f32 %v1772, %v1863
  %v2039 = vmul.f32 %v1773, %v1868
  %v2040 = vmul.f32 %v1774, %v1873
  %v2041 = vmul.f32 %v1775, %v1878
  %v2042 = vmul.f32 %v1776, %v1883
  %v2043 = vmul.f32 %v1777, %v1888
  %v2044 = vmul.f32 %v1778, %v1893
  %v2045 = vmul.f32 %v1779, %v1898
  %v2046 = vmul.f32 %v1780, %v1903
  %v2047 = vmul.f32 %v1781, %v1908
  %v2048 = vmul.f32 %v1782, %v1913
  %v2049 = vmul.f32 %v1783, %v1918
  %v2050 = vmul.f32 %v1784, %v1923
  %v2051 = vmul.f32 %v1785, %v1928
  %v2052 = vmul.f32 %v1786, %v1933
  %v2053 = vmul.f32 %v1787, %v1938
  %v2054 = vmul.f32 %v1788, %v1943
  %v2055 = vmul.f32 %v1789, %v1948
  %v2056 = vmul.f32 %v1790, %v1953
  %v2057 = vmul.f32 %v1791, %v1958
  %v2058 = vmul.f32 %v1792, %v1963
  %v2059 = vmul.f32 %v1793, %v1968
  %v2060 = vmul.f32 %v1794, %v1973
  %v2061 = vmul.f32 %v1795, %v1978
  %v2062 = vmul.f32 %v1796, %v1983
  %v2063 = vmul.f32 %v1797, %v1988
  %v2064 = vmul.f32 %v1798, %v1993
  %v2065 = vmul.f32 %v1799, %v1998
  %v2066 = vmul.f32 %v1800, %v2003
  %v2067 = vmul.f32 %v1801, %v2008
  %v2068 = vmul.f32 %v1802, %v2013
  %v2069 = vmul.f32 %v1803, %v2018
  %v2070 = vmul.f32 %v1804, %v2023
  %v2071 = vmul.f32 %v1805, %v2028
  %v2072 = vmul.f32 %v1806, %v2033
  %v2073 = vadd.f32 %v2035, %v2036
  %v2074 = vadd.f32 %v2073, %v2037
  %v2075 = vadd.f32 %v2074, %v2038
  %v2076 = vadd.f32 %v2075, %v2039
  %v2077 = vadd.f32 %v2076, %v2040
  %v2078 = vadd.f32 %v2077, %v2041
  %v2079 = vadd.f32 %v2078, %v2042
  %v2080 = vadd.f32 %v2079, %v2043
  %v2081 = vadd.f32 %v2080, %v2044
  %v2082 = vadd.f32 %v2081, %v2045
  %v2083 = vadd.f32 %v2082, %v2046
  %v2084 = vadd.f32 %v2083, %v2047
  %v2085 = vadd.f32 %v2084, %v2048
  %v2086 = vadd.f32 %v2085, %v2049
  %v2087 = vadd.f32 %v2086, %v2050
  %v2088 = vadd.f32 %v2087, %v2051
  %v2089 = vadd.f32 %v2088, %v2052
  %v2090 = vadd.f32 %v2089, %v2053
  %v2091 = vadd.f32 %v2090, %v2054
  %v2092 = vadd.f32 %v2091, %v2055
  %v2093 = vadd.f32 %v2092, %v2056
  %v2094 = vadd.f32 %v2093, %v2057
  %v2095 = vadd.f32 %v2094, %v2058
  %v2096 = vadd.f32 %v2095, %v2059
  %v2097 = vadd.f32 %v2096, %v2060
  %v2098 = vadd.f32 %v2097, %v2061
  %v2099 = vadd.f32 %v2098, %v2062
  %v2100 = vadd.f32 %v2099, %v2063
  %v2101 = vadd.f32 %v2100, %v2064
  %v2102 = vadd.f32 %v2101, %v2065
  %v2103 = vadd.f32 %v2102, %v2066
  %v2104 = vadd.f32 %v2103, %v2067
  %v2105 = vadd.f32 %v2104, %v2068
  %v2106 = vadd.f32 %v2105, %v2069
  %v2107 = vadd.f32 %v2106, %v2070
  %v2108 = vadd.f32 %v2107, %v2071
  %v2109 = vsel %vm529, %v2072, 0.0
  %v2110 = vadd.f32 %v2108, %v2109
  %v2111 = vrot.slane %v2110, 4
  %v2112 = vadd.f32 %v2110, %v2111
  %v2113 = vrot.slane %v2112, 2
  %v2114 = vadd.f32 %v2112, %v2113
  %v2115 = vrot.slane %v2114, 1
  %v2116 = vadd.f32 %v2114, %v2115
  %s2117 = sld [smem:[#allocation2]]
  %v2118 = vstv %s2117
  %v2119 = vadd.f32 %v2116, %v2118
  %v2120 = vtanh.pop %v2119
  %v2121 = vmul.f32 %v2120, 60.0
  %2122 = vst [vmem:[%s7] sm:$0x1] %v2121
  // Predicated region
  $region30: #{_actor_forward.1} parent=0 // pred_check
    _
  $region31: #{_actor_forward.1} parent=0 // pred_check_branch
    %2124 = sbr.rel (0) target = $region33
  $region32: #{_actor_forward.1} parent=0 // pred_region
    _
  $region33: #{_actor_forward.1} parent=0 // pred_fallthru
    _
  // Predicated region
  $region34: #{_actor_forward.1} parent=0 // pred_check
    _
  $region35: #{_actor_forward.1} parent=0 // pred_check_branch
    %2126 = sbr.rel (0) target = $region37
  $region36: #{_actor_forward.1} parent=0 // pred_region
    _
  $region37: #{_actor_forward.1} parent=0 // pred_fallthru
    _

</llo_original>
